<compile_context>
chip_gen: v5e
topology: v5e:2x2
jax: 0.10.0
libtpu: 0.0.40
codegen_flags: <defaults>
</compile_context>

<pallas_src>
import functools
import math

import jax
import jax.numpy as jnp
from jax.experimental import pallas as pl
from jax.experimental.pallas import tpu as pltpu


# ---------------------------------------------------------------------------
# Fused decoder-layer kernel: one grid step == one block of batch elements
# ---------------------------------------------------------------------------

def _decoder_layer_kernel(
    x_ref, cross_ref, qpos_ref, pos_ref,        # (Bb,T,E) / (Bb,S,E) blocks
    wq_ref, wk_ref, wv_ref, wo_ref,             # (E,E) lane-dense, mm dtype
    bqkvo_ref,                                  # (4,1,E) f32: b_q, b_k, b_v, b_o
    w1_ref, b1_ref, w2_ref, b2_ref,             # (E,dff),(1,dff),(dff,E),(1,E)
    g_ref, be_ref,                              # (4,1,E) f32: norm1..3 + final
    o_ref,                                      # (Bb,T,E)
    *, nhead, scale, eps, apply_final_norm, approx_softmax):

    Bb, T, E = x_ref.shape
    S = cross_ref.shape[1]
    H = nhead
    Dh = E // H
    md = wq_ref.dtype                           # MXU input dtype (f32 or bf16)

    def ln(v, i):                               # v: (N, E) rows, f32
        mean = jnp.mean(v, axis=-1, keepdims=True)
        var = jnp.mean(jnp.square(v - mean), axis=-1, keepdims=True)
        return (v - mean) * jax.lax.rsqrt(var + eps) * g_ref[i] + be_ref[i]

    def mm(a, w_ref):                           # (N,K) @ (K,M) -> f32 (N,M)
        return jnp.dot(a.astype(md), w_ref[...],
                       preferred_element_type=jnp.float32)

    # Flatten the batch block into rows: every row-wise op (projections, FFN,
    # LayerNorm) becomes one big matmul / vector op over Bb*T (or Bb*S) rows.
    x = x_ref[...].reshape(Bb * T, E)
    cross = cross_ref[...].reshape(Bb * S, E)
    qpos = qpos_ref[...].reshape(Bb * T, E)
    pos = pos_ref[...].reshape(Bb * S, E)

    # NOTE: the reference layer's self-attention output is discarded (dead
    # code), intentionally not computed.
    xn = ln(x, 0)                               # norm1(x)

    # Full-width projections (one MXU matmul each), biases added once,
    # attention scale folded into Q.
    q = (mm(xn + qpos, wq_ref) + bqkvo_ref[0]) * scale      # (Bb*T, E)
    k = mm(cross + pos, wk_ref) + bqkvo_ref[1]              # (Bb*S, E)
    v = mm(cross, wv_ref) + bqkvo_ref[2]                    # (Bb*S, E)

    # Per-(batch, head) scores / softmax / AV.  Static loop; q/k/v are shared
    # so only (T,S)/(T,Dh) temporaries are live per iteration.
    batch_outs = []
    for b in range(Bb):
        qb = q[b * T:(b + 1) * T]
        kb = k[b * S:(b + 1) * S]
        vb = v[b * S:(b + 1) * S]
        head_outs = []
        for h in range(H):
            qh = qb[:, h * Dh:(h + 1) * Dh]
            kh = kb[:, h * Dh:(h + 1) * Dh]
            vh = vb[:, h * Dh:(h + 1) * Dh]
            s = jax.lax.dot_general(                        # (T, S) = q @ k^T
                qh.astype(md), kh.astype(md),
                (((1,), (1,)), ((), ())),
                preferred_element_type=jnp.float32)
            s = s - jnp.max(s, axis=-1, keepdims=True)
            p = jnp.exp(s)
            denom = jnp.sum(p, axis=-1, keepdims=True)
            if approx_softmax:
                p = p * pl.reciprocal(denom, approx=True)
            else:
                p = p / denom                               # exact by default
            head_outs.append(jnp.dot(p.astype(md), vh.astype(md),
                                     preferred_element_type=jnp.float32))
        batch_outs.append(jnp.concatenate(head_outs, axis=-1))   # (T, E)
    ctx = batch_outs[0] if Bb == 1 else jnp.concatenate(batch_outs, axis=0)

    attn = mm(ctx, wo_ref) + bqkvo_ref[3]                   # single out-proj

    x2 = ln(xn + attn, 1)                                   # norm2
    hid = jnp.maximum(mm(x2, w1_ref) + b1_ref[...], 0.0)    # (Bb*T, dff)
    ffn = mm(hid, w2_ref) + b2_ref[...]                     # (Bb*T, E)
    y = ln(x2 + ffn, 2)                                     # norm3
    if apply_final_norm:                                    # fused Decoder.norm
        y = ln(y, 3)
    o_ref[...] = y.reshape(Bb, T, E)


def decoder_layer(xb, crossb, qposb, posb, lp, *, nhead, eps=1e-5, block_b=1,
                  apply_final_norm=False, final_gamma=None, final_beta=None,
                  approx_softmax=False):
    """xb: (B, T, E) batch-major, crossb: (B, S, E). Returns (B, T, E) f32."""
    B, T, E = xb.shape
    S = crossb.shape[1]
    dff = int(lp["w1"].shape[1])
    assert E % nhead == 0 and B % block_b == 0
    scale = 1.0 / math.sqrt(E // nhead)

    # Row 3 of the norm params is the (optionally fused) final Decoder norm.
    if apply_final_norm:
        g_extra = final_gamma.reshape(1, 1, E).astype(jnp.float32)
        b_extra = final_beta.reshape(1, 1, E).astype(jnp.float32)
    else:
        g_extra = jnp.ones((1, 1, E), jnp.float32)
        b_extra = jnp.zeros((1, 1, E), jnp.float32)
    gammas = jnp.concatenate([lp["gammas"], g_extra], axis=0)   # (4,1,E)
    betas = jnp.concatenate([lp["betas"], b_extra], axis=0)     # (4,1,E)

    kernel = functools.partial(
        _decoder_layer_kernel, nhead=nhead, scale=scale, eps=eps,
        apply_final_norm=apply_final_norm, approx_softmax=approx_softmax)

    def data_spec(seq):
        return pl.BlockSpec((block_b, seq, E), lambda b: (b, 0, 0))

    def const_spec(shape):
        return pl.BlockSpec(shape, lambda b: (0,) * len(shape))

    # Rough per-call roofline numbers so XLA can schedule around the call.
    flops = 2 * B * (2 * T * E * E + 2 * S * E * E + 2 * T * S * E
                     + 2 * T * E * dff)
    transcendentals = B * nhead * T * S + 4 * B * T
    w_bytes = sum(int(a.size) * a.dtype.itemsize
                  for a in (lp["wq"], lp["wk"], lp["wv"], lp["wo"],
                            lp["w1"], lp["w2"]))
    act_bytes = 4 * B * (3 * T * E + 2 * S * E)
    cost = pl.CostEstimate(flops=int(flops),
                           transcendentals=int(transcendentals),
                           bytes_accessed=int(w_bytes + act_bytes))

    return pl.pallas_call(
        kernel,
        out_shape=jax.ShapeDtypeStruct((B, T, E), jnp.float32),
        grid=(B // block_b,),
        in_specs=[
            data_spec(T),                    # x
            data_spec(S),                    # cross
            data_spec(T),                    # query_pos
            data_spec(S),                    # pos
            const_spec((E, E)),              # wq
            const_spec((E, E)),              # wk
            const_spec((E, E)),              # wv
            const_spec((E, E)),              # wo
            const_spec((4, 1, E)),           # b_q, b_k, b_v, b_o
            const_spec((E, dff)),            # w1
            const_spec((1, dff)),            # b1
            const_spec((dff, E)),            # w2
            const_spec((1, E)),              # b2
            const_spec((4, 1, E)),           # norm gammas (+ fused final norm)
            const_spec((4, 1, E)),           # norm betas
        ],
        out_specs=data_spec(T),
        compiler_params=pltpu.CompilerParams(
            dimension_semantics=("parallel",),
            vmem_limit_bytes=32 * 1024 * 1024),
        cost_estimate=cost,
    )(xb, crossb, qposb, posb,
      lp["wq"], lp["wk"], lp["wv"], lp["wo"], lp["b_qkvo"],
      lp["w1"], lp["b1"], lp["w2"], lp["b2"], gammas, betas)


# ---------------------------------------------------------------------------
# Decoder forward: loop layers; the optional final norm is fused into the
# last layer's kernel (matches Decoder.forward semantics).
# ---------------------------------------------------------------------------

def decoder_forward(x, cross, layer_params, norm_params=None, *, nhead,
                    query_pos=None, pos=None, x_mask=None, cross_mask=None,
                    block_b=1, approx_softmax=False):
    """x: (T, B, E) seq-first, cross: (S, B, E). Returns (T, B, E)."""
    # TODO(synk): attention masks (x_mask / cross_mask) are not implemented.
    assert x_mask is None and cross_mask is None, "masks not supported"
    T, B, E = x.shape
    if query_pos is None:
        query_pos = jnp.zeros_like(x)
    if pos is None:
        pos = jnp.zeros_like(cross)

    # One-time layout change to batch-major so the kernel grid is over batch.
    xb = jnp.transpose(x, (1, 0, 2))
    crossb = jnp.transpose(cross, (1, 0, 2))
    qposb = jnp.transpose(query_pos, (1, 0, 2))
    posb = jnp.transpose(pos, (1, 0, 2))

    n = len(layer_params)
    for li, lp in enumerate(layer_params):
        fuse_norm = (norm_params is not None) and (li == n - 1)
        xb = decoder_layer(
            xb, crossb, qposb, posb, lp, nhead=nhead, block_b=block_b,
            approx_softmax=approx_softmax, apply_final_norm=fuse_norm,
            final_gamma=norm_params["weight"] if fuse_norm else None,
            final_beta=norm_params["bias"] if fuse_norm else None)

    if n == 0 and norm_params is not None:
        # Degenerate configuration (no layers): plain-JAX LayerNorm.
        mean = jnp.mean(xb, axis=-1, keepdims=True)
        var = jnp.mean(jnp.square(xb - mean), axis=-1, keepdims=True)
        xb = ((xb - mean) * jax.lax.rsqrt(var + 1e-5)
              * norm_params["weight"] + norm_params["bias"])

    return jnp.transpose(xb, (1, 0, 2))


# ---------------------------------------------------------------------------
# Parameter init (torch layout) + one-time prep into kernel-friendly layout
# ---------------------------------------------------------------------------

def init_layer_params(key, d_model, dim_feedforward):
    ks = jax.random.split(key, 7)
    return {
        "multihead_attn": {
            "in_proj_weight": 0.05 * jax.random.normal(
                ks[0], (3 * d_model, d_model), jnp.float32),
            "in_proj_bias": 0.02 * jax.random.normal(
                ks[1], (3 * d_model,), jnp.float32),
            "out_proj_weight": 0.05 * jax.random.normal(
                ks[2], (d_model, d_model), jnp.float32),
            "out_proj_bias": jnp.zeros((d_model,), jnp.float32),
        },
        "linear1": {
            "weight": 0.05 * jax.random.normal(
                ks[3], (dim_feedforward, d_model), jnp.float32),
            "bias": 0.02 * jax.random.normal(
                ks[4], (dim_feedforward,), jnp.float32),
        },
        "linear2": {
            "weight": 0.05 * jax.random.normal(
                ks[5], (d_model, dim_feedforward), jnp.float32),
            "bias": 0.02 * jax.random.normal(
                ks[6], (d_model,), jnp.float32),
        },
        "norm1": {"weight": jnp.ones((d_model,), jnp.float32),
                  "bias": jnp.zeros((d_model,), jnp.float32)},
        "norm2": {"weight": jnp.ones((d_model,), jnp.float32),
                  "bias": jnp.zeros((d_model,), jnp.float32)},
        "norm3": {"weight": jnp.ones((d_model,), jnp.float32),
                  "bias": jnp.zeros((d_model,), jnp.float32)},
    }


def prepare_layer_params(raw, mm_dtype=jnp.float32):
    """One-time prep: full-width lane-dense weights (heads = contiguous column
    chunks), biases folded to (1,E)/(1,dff) rows, optional bf16 pre-cast of
    the matmul weights (biases / norm params stay f32)."""
    E = raw["norm1"]["weight"].shape[0]
    mha = raw["multihead_attn"]
    w_in, b_in = mha["in_proj_weight"], mha["in_proj_bias"]
    wq, wk, wv = w_in[:E].T, w_in[E:2 * E].T, w_in[2 * E:].T   # (E_in, E_out)
    bq, bk, bv = b_in[:E], b_in[E:2 * E], b_in[2 * E:]
    return {
        "wq": wq.astype(mm_dtype),
        "wk": wk.astype(mm_dtype),
        "wv": wv.astype(mm_dtype),
        "wo": mha["out_proj_weight"].T.astype(mm_dtype),        # (E, E)
        "b_qkvo": jnp.stack([bq, bk, bv,
                             mha["out_proj_bias"]]).reshape(4, 1, E),
        "w1": raw["linear1"]["weight"].T.astype(mm_dtype),      # (E, dff)
        "b1": raw["linear1"]["bias"].reshape(1, -1),
        "w2": raw["linear2"]["weight"].T.astype(mm_dtype),      # (dff, E)
        "b2": raw["linear2"]["bias"].reshape(1, E),
        "gammas": jnp.stack([raw["norm1"]["weight"], raw["norm2"]["weight"],
                             raw["norm3"]["weight"]]).reshape(3, 1, E),
        "betas": jnp.stack([raw["norm1"]["bias"], raw["norm2"]["bias"],
                            raw["norm3"]["bias"]]).reshape(3, 1, E),
    }


# ---------------------------------------------------------------------------
# Pure-JAX reference (same math, HIGHEST matmul precision) for validation
# ---------------------------------------------------------------------------

def reference_forward(x, cross, layer_params, norm_params, *, nhead,
                      query_pos, pos, eps=1e-5):
    hi = jax.lax.Precision.HIGHEST

    def ln(v, g, b):
        m = jnp.mean(v, -1, keepdims=True)
        s = jnp.mean(jnp.square(v - m), -1, keepdims=True)
        return (v - m) * jax.lax.rsqrt(s + eps) * g + b

    def proj(a, w):
        return jnp.einsum("...i,ij->...j", a, w.astype(jnp.float32),
                          precision=hi)

    T, B, E = x.shape
    S = cross.shape[0]
    H = nhead
    Dh = E // H
    for lp in layer_params:
        g, be = lp["gammas"][:, 0], lp["betas"][:, 0]
        xn = ln(x, g[0], be[0])
        q = (proj(xn + query_pos, lp["wq"]) + lp["b_qkvo"][0, 0]) / math.sqrt(Dh)
        k = proj(cross + pos, lp["wk"]) + lp["b_qkvo"][1, 0]
        v = proj(cross, lp["wv"]) + lp["b_qkvo"][2, 0]
        qh = q.reshape(T, B, H, Dh)
        kh = k.reshape(S, B, H, Dh)
        vh = v.reshape(S, B, H, Dh)
        s = jnp.einsum("tbhd,sbhd->bhts", qh, kh, precision=hi)
        p = jax.nn.softmax(s, axis=-1)
        o = jnp.einsum("bhts,sbhd->tbhd", p, vh, precision=hi).reshape(T, B, E)
        a = proj(o, lp["wo"]) + lp["b_qkvo"][3, 0]
        x2 = ln(xn + a, g[1], be[1])
        hid = jax.nn.relu(proj(x2, lp["w1"]) + lp["b1"][0])
        ffn = proj(hid, lp["w2"]) + lp["b2"][0]
        x = ln(x2 + ffn, g[2], be[2])
    if norm_params is not None:
        x = ln(x, norm_params["weight"], norm_params["bias"])
    return x


if __name__ == "__main__":
    d_model, nhead, dim_feedforward = 32, 4, 64
    T, S, B = 8, 8, 2
    num_layers = 2

    key = jax.random.PRNGKey(0)
    kp, k1, k2, k3, k4 = jax.random.split(key, 5)
    layer_keys = jax.random.split(kp, num_layers)
    layer_params = [prepare_layer_params(
        init_layer_params(k, d_model, dim_feedforward)) for k in layer_keys]
    norm_params = {"weight": jnp.ones((d_model,), jnp.float32),
                   "bias": jnp.zeros((d_model,), jnp.float32)}

    x = jax.random.normal(k1, (T, B, d_model), jnp.float32)
    cross = jax.random.normal(k2, (S, B, d_model), jnp.float32)
    query_pos = jax.random.normal(k3, (T, B, d_model), jnp.float32)
    pos = jax.random.normal(k4, (S, B, d_model), jnp.float32)

    fwd = jax.jit(functools.partial(decoder_forward, nhead=nhead))
    out = fwd(x, cross, layer_params, norm_params,
              query_pos=query_pos, pos=pos)
    jax.block_until_ready(out)
    assert out.shape == (T, B, d_model)

    ref = reference_forward(x, cross, layer_params, norm_params, nhead=nhead,
                            query_pos=query_pos, pos=pos)
    max_err = float(jnp.max(jnp.abs(out - ref)))
    assert max_err < 2e-2, f"kernel/reference mismatch: {max_err}"
    print("KERNEL_OK")
</pallas_src>

<mosaic_0001>
module attributes {stable_mosaic.version = 11 : i64} {
  func.func @_decoder_layer_kernel(%arg0: i32, %arg1: memref<1x8x32xf32, #tpu.memory_space<vmem>>, %arg2: memref<1x8x32xf32, #tpu.memory_space<vmem>>, %arg3: memref<1x8x32xf32, #tpu.memory_space<vmem>>, %arg4: memref<1x8x32xf32, #tpu.memory_space<vmem>>, %arg5: memref<32x32xf32, #tpu.memory_space<vmem>>, %arg6: memref<32x32xf32, #tpu.memory_space<vmem>>, %arg7: memref<32x32xf32, #tpu.memory_space<vmem>>, %arg8: memref<32x32xf32, #tpu.memory_space<vmem>>, %arg9: memref<4x1x32xf32, #tpu.memory_space<vmem>>, %arg10: memref<32x64xf32, #tpu.memory_space<vmem>>, %arg11: memref<1x64xf32, #tpu.memory_space<vmem>>, %arg12: memref<64x32xf32, #tpu.memory_space<vmem>>, %arg13: memref<1x32xf32, #tpu.memory_space<vmem>>, %arg14: memref<4x1x32xf32, #tpu.memory_space<vmem>>, %arg15: memref<4x1x32xf32, #tpu.memory_space<vmem>>, %arg16: memref<1x8x32xf32, #tpu.memory_space<vmem>>) attributes {dimension_semantics = [#tpu.dimension_semantics<parallel>], iteration_bounds = array<i64: 2>, scalar_prefetch = 0 : i64, scratch_operands = 0 : i64, tpu.core_type = #tpu.core_type<tc>, window_params = [{transform_indices = @transform_0, window_bounds = array<i64: 1, 8, 32>}, {transform_indices = @transform_1, window_bounds = array<i64: 1, 8, 32>}, {transform_indices = @transform_2, window_bounds = array<i64: 1, 8, 32>}, {transform_indices = @transform_3, window_bounds = array<i64: 1, 8, 32>}, {pipeline_mode = #tpu.pipeline_mode<synchronous>, transform_indices = @transform_4, window_bounds = array<i64: 32, 32>}, {pipeline_mode = #tpu.pipeline_mode<synchronous>, transform_indices = @transform_5, window_bounds = array<i64: 32, 32>}, {pipeline_mode = #tpu.pipeline_mode<synchronous>, transform_indices = @transform_6, window_bounds = array<i64: 32, 32>}, {pipeline_mode = #tpu.pipeline_mode<synchronous>, transform_indices = @transform_7, window_bounds = array<i64: 32, 32>}, {pipeline_mode = #tpu.pipeline_mode<synchronous>, transform_indices = @transform_8, window_bounds = array<i64: 4, 1, 32>}, {pipeline_mode = #tpu.pipeline_mode<synchronous>, transform_indices = @transform_9, window_bounds = array<i64: 32, 64>}, {pipeline_mode = #tpu.pipeline_mode<synchronous>, transform_indices = @transform_10, window_bounds = array<i64: 1, 64>}, {pipeline_mode = #tpu.pipeline_mode<synchronous>, transform_indices = @transform_11, window_bounds = array<i64: 64, 32>}, {pipeline_mode = #tpu.pipeline_mode<synchronous>, transform_indices = @transform_12, window_bounds = array<i64: 1, 32>}, {pipeline_mode = #tpu.pipeline_mode<synchronous>, transform_indices = @transform_13, window_bounds = array<i64: 4, 1, 32>}, {pipeline_mode = #tpu.pipeline_mode<synchronous>, transform_indices = @transform_14, window_bounds = array<i64: 4, 1, 32>}, {transform_indices = @transform_15, window_bounds = array<i64: 1, 8, 32>}]} {
    %c0 = arith.constant 0 : index
    %c0_0 = arith.constant 0 : index
    %c0_1 = arith.constant 0 : index
    %0 = vector.load %arg1[%c0, %c0_0, %c0_1] : memref<1x8x32xf32, #tpu.memory_space<vmem>>, vector<1x8x32xf32>
    %1 = vector.shape_cast %0 : vector<1x8x32xf32> to vector<8x32xf32>
    %c0_2 = arith.constant 0 : index
    %c0_3 = arith.constant 0 : index
    %c0_4 = arith.constant 0 : index
    %2 = vector.load %arg2[%c0_2, %c0_3, %c0_4] : memref<1x8x32xf32, #tpu.memory_space<vmem>>, vector<1x8x32xf32>
    %3 = vector.shape_cast %2 : vector<1x8x32xf32> to vector<8x32xf32>
    %c0_5 = arith.constant 0 : index
    %c0_6 = arith.constant 0 : index
    %c0_7 = arith.constant 0 : index
    %4 = vector.load %arg3[%c0_5, %c0_6, %c0_7] : memref<1x8x32xf32, #tpu.memory_space<vmem>>, vector<1x8x32xf32>
    %5 = vector.shape_cast %4 : vector<1x8x32xf32> to vector<8x32xf32>
    %c0_8 = arith.constant 0 : index
    %c0_9 = arith.constant 0 : index
    %c0_10 = arith.constant 0 : index
    %6 = vector.load %arg4[%c0_8, %c0_9, %c0_10] : memref<1x8x32xf32, #tpu.memory_space<vmem>>, vector<1x8x32xf32>
    %7 = vector.shape_cast %6 : vector<1x8x32xf32> to vector<8x32xf32>
    %cst = arith.constant dense<0.000000e+00> : vector<8xf32>
    %8 = vector.multi_reduction <add>, %1, %cst [1] : vector<8x32xf32> to vector<8xf32>
    %9 = vector.shape_cast %8 : vector<8xf32> to vector<8x1xf32>
    %cst_11 = arith.constant 3.200000e+01 : f32
    %10 = vector.broadcast %cst_11 : f32 to vector<8x1xf32>
    %11 = arith.divf %9, %10 : vector<8x1xf32>
    %12 = vector.broadcast %11 : vector<8x1xf32> to vector<8x32xf32>
    %13 = arith.subf %1, %12 : vector<8x32xf32>
    %14 = arith.mulf %13, %13 : vector<8x32xf32>
    %cst_12 = arith.constant dense<0.000000e+00> : vector<8xf32>
    %15 = vector.multi_reduction <add>, %14, %cst_12 [1] : vector<8x32xf32> to vector<8xf32>
    %16 = vector.shape_cast %15 : vector<8xf32> to vector<8x1xf32>
    %cst_13 = arith.constant 3.200000e+01 : f32
    %17 = vector.broadcast %cst_13 : f32 to vector<8x1xf32>
    %18 = arith.divf %16, %17 : vector<8x1xf32>
    %19 = vector.broadcast %11 : vector<8x1xf32> to vector<8x32xf32>
    %20 = arith.subf %1, %19 : vector<8x32xf32>
    %cst_14 = arith.constant 9.99999974E-6 : f32
    %21 = vector.broadcast %cst_14 : f32 to vector<8x1xf32>
    %22 = arith.addf %18, %21 : vector<8x1xf32>
    %23 = math.rsqrt %22 : vector<8x1xf32>
    %24 = vector.broadcast %23 : vector<8x1xf32> to vector<8x32xf32>
    %25 = arith.mulf %20, %24 : vector<8x32xf32>
    %c0_15 = arith.constant 0 : index
    %c0_16 = arith.constant 0 : index
    %c0_17 = arith.constant 0 : index
    %26 = vector.load %arg14[%c0_15, %c0_16, %c0_17] : memref<4x1x32xf32, #tpu.memory_space<vmem>>, vector<1x1x32xf32>
    %27 = vector.shape_cast %26 : vector<1x1x32xf32> to vector<1x32xf32>
    %28 = vector.broadcast %27 : vector<1x32xf32> to vector<8x32xf32>
    %29 = arith.mulf %25, %28 : vector<8x32xf32>
    %c0_18 = arith.constant 0 : index
    %c0_19 = arith.constant 0 : index
    %c0_20 = arith.constant 0 : index
    %30 = vector.load %arg15[%c0_18, %c0_19, %c0_20] : memref<4x1x32xf32, #tpu.memory_space<vmem>>, vector<1x1x32xf32>
    %31 = vector.shape_cast %30 : vector<1x1x32xf32> to vector<1x32xf32>
    %32 = vector.broadcast %31 : vector<1x32xf32> to vector<8x32xf32>
    %33 = arith.addf %29, %32 : vector<8x32xf32>
    %34 = arith.addf %33, %5 : vector<8x32xf32>
    %c0_21 = arith.constant 0 : index
    %c0_22 = arith.constant 0 : index
    %35 = vector.load %arg5[%c0_21, %c0_22] : memref<32x32xf32, #tpu.memory_space<vmem>>, vector<32x32xf32>
    %cst_23 = arith.constant dense<0.000000e+00> : vector<8x32xf32>
    %36 = tpu.matmul %34, %35, %cst_23 {dimension_numbers = #tpu.dot_dimension_numbers<[1], [0], [0], [1], [0, 0, 1, 1], [], []>} : vector<8x32xf32>, vector<32x32xf32>, vector<8x32xf32> -> vector<8x32xf32>
    %c0_24 = arith.constant 0 : index
    %c0_25 = arith.constant 0 : index
    %c0_26 = arith.constant 0 : index
    %37 = vector.load %arg9[%c0_24, %c0_25, %c0_26] : memref<4x1x32xf32, #tpu.memory_space<vmem>>, vector<1x1x32xf32>
    %38 = vector.shape_cast %37 : vector<1x1x32xf32> to vector<1x32xf32>
    %39 = vector.broadcast %38 : vector<1x32xf32> to vector<8x32xf32>
    %40 = arith.addf %36, %39 : vector<8x32xf32>
    %cst_27 = arith.constant 0.353553385 : f32
    %41 = vector.broadcast %cst_27 : f32 to vector<8x32xf32>
    %42 = arith.mulf %40, %41 : vector<8x32xf32>
    %43 = arith.addf %3, %7 : vector<8x32xf32>
    %c0_28 = arith.constant 0 : index
    %c0_29 = arith.constant 0 : index
    %44 = vector.load %arg6[%c0_28, %c0_29] : memref<32x32xf32, #tpu.memory_space<vmem>>, vector<32x32xf32>
    %cst_30 = arith.constant dense<0.000000e+00> : vector<8x32xf32>
    %45 = tpu.matmul %43, %44, %cst_30 {dimension_numbers = #tpu.dot_dimension_numbers<[1], [0], [0], [1], [0, 0, 1, 1], [], []>} : vector<8x32xf32>, vector<32x32xf32>, vector<8x32xf32> -> vector<8x32xf32>
    %c1 = arith.constant 1 : index
    %c0_31 = arith.constant 0 : index
    %c0_32 = arith.constant 0 : index
    %46 = vector.load %arg9[%c1, %c0_31, %c0_32] : memref<4x1x32xf32, #tpu.memory_space<vmem>>, vector<1x1x32xf32>
    %47 = vector.shape_cast %46 : vector<1x1x32xf32> to vector<1x32xf32>
    %48 = vector.broadcast %47 : vector<1x32xf32> to vector<8x32xf32>
    %49 = arith.addf %45, %48 : vector<8x32xf32>
    %c0_33 = arith.constant 0 : index
    %c0_34 = arith.constant 0 : index
    %50 = vector.load %arg7[%c0_33, %c0_34] : memref<32x32xf32, #tpu.memory_space<vmem>>, vector<32x32xf32>
    %cst_35 = arith.constant dense<0.000000e+00> : vector<8x32xf32>
    %51 = tpu.matmul %3, %50, %cst_35 {dimension_numbers = #tpu.dot_dimension_numbers<[1], [0], [0], [1], [0, 0, 1, 1], [], []>} : vector<8x32xf32>, vector<32x32xf32>, vector<8x32xf32> -> vector<8x32xf32>
    %c2 = arith.constant 2 : index
    %c0_36 = arith.constant 0 : index
    %c0_37 = arith.constant 0 : index
    %52 = vector.load %arg9[%c2, %c0_36, %c0_37] : memref<4x1x32xf32, #tpu.memory_space<vmem>>, vector<1x1x32xf32>
    %53 = vector.shape_cast %52 : vector<1x1x32xf32> to vector<1x32xf32>
    %54 = vector.broadcast %53 : vector<1x32xf32> to vector<8x32xf32>
    %55 = arith.addf %51, %54 : vector<8x32xf32>
    %56 = vector.extract_strided_slice %42 {offsets = [0, 0], sizes = [8, 8], strides = [1, 1]} : vector<8x32xf32> to vector<8x8xf32>
    %57 = vector.extract_strided_slice %49 {offsets = [0, 0], sizes = [8, 8], strides = [1, 1]} : vector<8x32xf32> to vector<8x8xf32>
    %58 = vector.extract_strided_slice %55 {offsets = [0, 0], sizes = [8, 8], strides = [1, 1]} : vector<8x32xf32> to vector<8x8xf32>
    %cst_38 = arith.constant dense<0.000000e+00> : vector<8x8xf32>
    %59 = tpu.matmul %56, %57, %cst_38 {dimension_numbers = #tpu.dot_dimension_numbers<[1], [1], [0], [0], [0, 0, 1, 0], [], []>} : vector<8x8xf32>, vector<8x8xf32>, vector<8x8xf32> -> vector<8x8xf32>
    %cst_39 = arith.constant dense<0xFF800000> : vector<8xf32>
    %60 = vector.multi_reduction <maximumf>, %59, %cst_39 [1] : vector<8x8xf32> to vector<8xf32>
    %61 = vector.shape_cast %60 : vector<8xf32> to vector<8x1xf32>
    %62 = vector.broadcast %61 : vector<8x1xf32> to vector<8x8xf32>
    %63 = arith.subf %59, %62 : vector<8x8xf32>
    %64 = math.exp %63 : vector<8x8xf32>
    %cst_40 = arith.constant dense<0.000000e+00> : vector<8xf32>
    %65 = vector.multi_reduction <add>, %64, %cst_40 [1] : vector<8x8xf32> to vector<8xf32>
    %66 = vector.shape_cast %65 : vector<8xf32> to vector<8x1xf32>
    %67 = vector.broadcast %66 : vector<8x1xf32> to vector<8x8xf32>
    %68 = arith.divf %64, %67 : vector<8x8xf32>
    %cst_41 = arith.constant dense<0.000000e+00> : vector<8x8xf32>
    %69 = tpu.matmul %68, %58, %cst_41 {dimension_numbers = #tpu.dot_dimension_numbers<[1], [0], [0], [1], [0, 0, 1, 1], [], []>} : vector<8x8xf32>, vector<8x8xf32>, vector<8x8xf32> -> vector<8x8xf32>
    %70 = vector.extract_strided_slice %42 {offsets = [0, 8], sizes = [8, 8], strides = [1, 1]} : vector<8x32xf32> to vector<8x8xf32>
    %71 = vector.extract_strided_slice %49 {offsets = [0, 8], sizes = [8, 8], strides = [1, 1]} : vector<8x32xf32> to vector<8x8xf32>
    %72 = vector.extract_strided_slice %55 {offsets = [0, 8], sizes = [8, 8], strides = [1, 1]} : vector<8x32xf32> to vector<8x8xf32>
    %cst_42 = arith.constant dense<0.000000e+00> : vector<8x8xf32>
    %73 = tpu.matmul %70, %71, %cst_42 {dimension_numbers = #tpu.dot_dimension_numbers<[1], [1], [0], [0], [0, 0, 1, 0], [], []>} : vector<8x8xf32>, vector<8x8xf32>, vector<8x8xf32> -> vector<8x8xf32>
    %cst_43 = arith.constant dense<0xFF800000> : vector<8xf32>
    %74 = vector.multi_reduction <maximumf>, %73, %cst_43 [1] : vector<8x8xf32> to vector<8xf32>
    %75 = vector.shape_cast %74 : vector<8xf32> to vector<8x1xf32>
    %76 = vector.broadcast %75 : vector<8x1xf32> to vector<8x8xf32>
    %77 = arith.subf %73, %76 : vector<8x8xf32>
    %78 = math.exp %77 : vector<8x8xf32>
    %cst_44 = arith.constant dense<0.000000e+00> : vector<8xf32>
    %79 = vector.multi_reduction <add>, %78, %cst_44 [1] : vector<8x8xf32> to vector<8xf32>
    %80 = vector.shape_cast %79 : vector<8xf32> to vector<8x1xf32>
    %81 = vector.broadcast %80 : vector<8x1xf32> to vector<8x8xf32>
    %82 = arith.divf %78, %81 : vector<8x8xf32>
    %cst_45 = arith.constant dense<0.000000e+00> : vector<8x8xf32>
    %83 = tpu.matmul %82, %72, %cst_45 {dimension_numbers = #tpu.dot_dimension_numbers<[1], [0], [0], [1], [0, 0, 1, 1], [], []>} : vector<8x8xf32>, vector<8x8xf32>, vector<8x8xf32> -> vector<8x8xf32>
    %84 = vector.extract_strided_slice %42 {offsets = [0, 16], sizes = [8, 8], strides = [1, 1]} : vector<8x32xf32> to vector<8x8xf32>
    %85 = vector.extract_strided_slice %49 {offsets = [0, 16], sizes = [8, 8], strides = [1, 1]} : vector<8x32xf32> to vector<8x8xf32>
    %86 = vector.extract_strided_slice %55 {offsets = [0, 16], sizes = [8, 8], strides = [1, 1]} : vector<8x32xf32> to vector<8x8xf32>
    %cst_46 = arith.constant dense<0.000000e+00> : vector<8x8xf32>
    %87 = tpu.matmul %84, %85, %cst_46 {dimension_numbers = #tpu.dot_dimension_numbers<[1], [1], [0], [0], [0, 0, 1, 0], [], []>} : vector<8x8xf32>, vector<8x8xf32>, vector<8x8xf32> -> vector<8x8xf32>
    %cst_47 = arith.constant dense<0xFF800000> : vector<8xf32>
    %88 = vector.multi_reduction <maximumf>, %87, %cst_47 [1] : vector<8x8xf32> to vector<8xf32>
    %89 = vector.shape_cast %88 : vector<8xf32> to vector<8x1xf32>
    %90 = vector.broadcast %89 : vector<8x1xf32> to vector<8x8xf32>
    %91 = arith.subf %87, %90 : vector<8x8xf32>
    %92 = math.exp %91 : vector<8x8xf32>
    %cst_48 = arith.constant dense<0.000000e+00> : vector<8xf32>
    %93 = vector.multi_reduction <add>, %92, %cst_48 [1] : vector<8x8xf32> to vector<8xf32>
    %94 = vector.shape_cast %93 : vector<8xf32> to vector<8x1xf32>
    %95 = vector.broadcast %94 : vector<8x1xf32> to vector<8x8xf32>
    %96 = arith.divf %92, %95 : vector<8x8xf32>
    %cst_49 = arith.constant dense<0.000000e+00> : vector<8x8xf32>
    %97 = tpu.matmul %96, %86, %cst_49 {dimension_numbers = #tpu.dot_dimension_numbers<[1], [0], [0], [1], [0, 0, 1, 1], [], []>} : vector<8x8xf32>, vector<8x8xf32>, vector<8x8xf32> -> vector<8x8xf32>
    %98 = vector.extract_strided_slice %42 {offsets = [0, 24], sizes = [8, 8], strides = [1, 1]} : vector<8x32xf32> to vector<8x8xf32>
    %99 = vector.extract_strided_slice %49 {offsets = [0, 24], sizes = [8, 8], strides = [1, 1]} : vector<8x32xf32> to vector<8x8xf32>
    %100 = vector.extract_strided_slice %55 {offsets = [0, 24], sizes = [8, 8], strides = [1, 1]} : vector<8x32xf32> to vector<8x8xf32>
    %cst_50 = arith.constant dense<0.000000e+00> : vector<8x8xf32>
    %101 = tpu.matmul %98, %99, %cst_50 {dimension_numbers = #tpu.dot_dimension_numbers<[1], [1], [0], [0], [0, 0, 1, 0], [], []>} : vector<8x8xf32>, vector<8x8xf32>, vector<8x8xf32> -> vector<8x8xf32>
    %cst_51 = arith.constant dense<0xFF800000> : vector<8xf32>
    %102 = vector.multi_reduction <maximumf>, %101, %cst_51 [1] : vector<8x8xf32> to vector<8xf32>
    %103 = vector.shape_cast %102 : vector<8xf32> to vector<8x1xf32>
    %104 = vector.broadcast %103 : vector<8x1xf32> to vector<8x8xf32>
    %105 = arith.subf %101, %104 : vector<8x8xf32>
    %106 = math.exp %105 : vector<8x8xf32>
    %cst_52 = arith.constant dense<0.000000e+00> : vector<8xf32>
    %107 = vector.multi_reduction <add>, %106, %cst_52 [1] : vector<8x8xf32> to vector<8xf32>
    %108 = vector.shape_cast %107 : vector<8xf32> to vector<8x1xf32>
    %109 = vector.broadcast %108 : vector<8x1xf32> to vector<8x8xf32>
    %110 = arith.divf %106, %109 : vector<8x8xf32>
    %cst_53 = arith.constant dense<0.000000e+00> : vector<8x8xf32>
    %111 = tpu.matmul %110, %100, %cst_53 {dimension_numbers = #tpu.dot_dimension_numbers<[1], [0], [0], [1], [0, 0, 1, 1], [], []>} : vector<8x8xf32>, vector<8x8xf32>, vector<8x8xf32> -> vector<8x8xf32>
    %112 = tpu.concatenate %69, %83, %97, %111 in 1 : vector<8x8xf32>, vector<8x8xf32>, vector<8x8xf32>, vector<8x8xf32> -> vector<8x32xf32>
    %c0_54 = arith.constant 0 : index
    %c0_55 = arith.constant 0 : index
    %113 = vector.load %arg8[%c0_54, %c0_55] : memref<32x32xf32, #tpu.memory_space<vmem>>, vector<32x32xf32>
    %cst_56 = arith.constant dense<0.000000e+00> : vector<8x32xf32>
    %114 = tpu.matmul %112, %113, %cst_56 {dimension_numbers = #tpu.dot_dimension_numbers<[1], [0], [0], [1], [0, 0, 1, 1], [], []>} : vector<8x32xf32>, vector<32x32xf32>, vector<8x32xf32> -> vector<8x32xf32>
    %c3 = arith.constant 3 : index
    %c0_57 = arith.constant 0 : index
    %c0_58 = arith.constant 0 : index
    %115 = vector.load %arg9[%c3, %c0_57, %c0_58] : memref<4x1x32xf32, #tpu.memory_space<vmem>>, vector<1x1x32xf32>
    %116 = vector.shape_cast %115 : vector<1x1x32xf32> to vector<1x32xf32>
    %117 = vector.broadcast %116 : vector<1x32xf32> to vector<8x32xf32>
    %118 = arith.addf %114, %117 : vector<8x32xf32>
    %119 = arith.addf %33, %118 : vector<8x32xf32>
    %cst_59 = arith.constant dense<0.000000e+00> : vector<8xf32>
    %120 = vector.multi_reduction <add>, %119, %cst_59 [1] : vector<8x32xf32> to vector<8xf32>
    %121 = vector.shape_cast %120 : vector<8xf32> to vector<8x1xf32>
    %cst_60 = arith.constant 3.200000e+01 : f32
    %122 = vector.broadcast %cst_60 : f32 to vector<8x1xf32>
    %123 = arith.divf %121, %122 : vector<8x1xf32>
    %124 = vector.broadcast %123 : vector<8x1xf32> to vector<8x32xf32>
    %125 = arith.subf %119, %124 : vector<8x32xf32>
    %126 = arith.mulf %125, %125 : vector<8x32xf32>
    %cst_61 = arith.constant dense<0.000000e+00> : vector<8xf32>
    %127 = vector.multi_reduction <add>, %126, %cst_61 [1] : vector<8x32xf32> to vector<8xf32>
    %128 = vector.shape_cast %127 : vector<8xf32> to vector<8x1xf32>
    %cst_62 = arith.constant 3.200000e+01 : f32
    %129 = vector.broadcast %cst_62 : f32 to vector<8x1xf32>
    %130 = arith.divf %128, %129 : vector<8x1xf32>
    %131 = vector.broadcast %123 : vector<8x1xf32> to vector<8x32xf32>
    %132 = arith.subf %119, %131 : vector<8x32xf32>
    %cst_63 = arith.constant 9.99999974E-6 : f32
    %133 = vector.broadcast %cst_63 : f32 to vector<8x1xf32>
    %134 = arith.addf %130, %133 : vector<8x1xf32>
    %135 = math.rsqrt %134 : vector<8x1xf32>
    %136 = vector.broadcast %135 : vector<8x1xf32> to vector<8x32xf32>
    %137 = arith.mulf %132, %136 : vector<8x32xf32>
    %c1_64 = arith.constant 1 : index
    %c0_65 = arith.constant 0 : index
    %c0_66 = arith.constant 0 : index
    %138 = vector.load %arg14[%c1_64, %c0_65, %c0_66] : memref<4x1x32xf32, #tpu.memory_space<vmem>>, vector<1x1x32xf32>
    %139 = vector.shape_cast %138 : vector<1x1x32xf32> to vector<1x32xf32>
    %140 = vector.broadcast %139 : vector<1x32xf32> to vector<8x32xf32>
    %141 = arith.mulf %137, %140 : vector<8x32xf32>
    %c1_67 = arith.constant 1 : index
    %c0_68 = arith.constant 0 : index
    %c0_69 = arith.constant 0 : index
    %142 = vector.load %arg15[%c1_67, %c0_68, %c0_69] : memref<4x1x32xf32, #tpu.memory_space<vmem>>, vector<1x1x32xf32>
    %143 = vector.shape_cast %142 : vector<1x1x32xf32> to vector<1x32xf32>
    %144 = vector.broadcast %143 : vector<1x32xf32> to vector<8x32xf32>
    %145 = arith.addf %141, %144 : vector<8x32xf32>
    %c0_70 = arith.constant 0 : index
    %c0_71 = arith.constant 0 : index
    %146 = vector.load %arg10[%c0_70, %c0_71] : memref<32x64xf32, #tpu.memory_space<vmem>>, vector<32x64xf32>
    %cst_72 = arith.constant dense<0.000000e+00> : vector<8x64xf32>
    %147 = tpu.matmul %145, %146, %cst_72 {dimension_numbers = #tpu.dot_dimension_numbers<[1], [0], [0], [1], [0, 0, 1, 1], [], []>} : vector<8x32xf32>, vector<32x64xf32>, vector<8x64xf32> -> vector<8x64xf32>
    %c0_73 = arith.constant 0 : index
    %c0_74 = arith.constant 0 : index
    %148 = vector.load %arg11[%c0_73, %c0_74] : memref<1x64xf32, #tpu.memory_space<vmem>>, vector<1x64xf32>
    %149 = vector.broadcast %148 : vector<1x64xf32> to vector<8x64xf32>
    %150 = arith.addf %147, %149 : vector<8x64xf32>
    %cst_75 = arith.constant 0.000000e+00 : f32
    %151 = vector.broadcast %cst_75 : f32 to vector<8x64xf32>
    %152 = arith.maximumf %150, %151 : vector<8x64xf32>
    %c0_76 = arith.constant 0 : index
    %c0_77 = arith.constant 0 : index
    %153 = vector.load %arg12[%c0_76, %c0_77] : memref<64x32xf32, #tpu.memory_space<vmem>>, vector<64x32xf32>
    %cst_78 = arith.constant dense<0.000000e+00> : vector<8x32xf32>
    %154 = tpu.matmul %152, %153, %cst_78 {dimension_numbers = #tpu.dot_dimension_numbers<[1], [0], [0], [1], [0, 0, 1, 1], [], []>} : vector<8x64xf32>, vector<64x32xf32>, vector<8x32xf32> -> vector<8x32xf32>
    %c0_79 = arith.constant 0 : index
    %c0_80 = arith.constant 0 : index
    %155 = vector.load %arg13[%c0_79, %c0_80] : memref<1x32xf32, #tpu.memory_space<vmem>>, vector<1x32xf32>
    %156 = vector.broadcast %155 : vector<1x32xf32> to vector<8x32xf32>
    %157 = arith.addf %154, %156 : vector<8x32xf32>
    %158 = arith.addf %145, %157 : vector<8x32xf32>
    %cst_81 = arith.constant dense<0.000000e+00> : vector<8xf32>
    %159 = vector.multi_reduction <add>, %158, %cst_81 [1] : vector<8x32xf32> to vector<8xf32>
    %160 = vector.shape_cast %159 : vector<8xf32> to vector<8x1xf32>
    %cst_82 = arith.constant 3.200000e+01 : f32
    %161 = vector.broadcast %cst_82 : f32 to vector<8x1xf32>
    %162 = arith.divf %160, %161 : vector<8x1xf32>
    %163 = vector.broadcast %162 : vector<8x1xf32> to vector<8x32xf32>
    %164 = arith.subf %158, %163 : vector<8x32xf32>
    %165 = arith.mulf %164, %164 : vector<8x32xf32>
    %cst_83 = arith.constant dense<0.000000e+00> : vector<8xf32>
    %166 = vector.multi_reduction <add>, %165, %cst_83 [1] : vector<8x32xf32> to vector<8xf32>
    %167 = vector.shape_cast %166 : vector<8xf32> to vector<8x1xf32>
    %cst_84 = arith.constant 3.200000e+01 : f32
    %168 = vector.broadcast %cst_84 : f32 to vector<8x1xf32>
    %169 = arith.divf %167, %168 : vector<8x1xf32>
    %170 = vector.broadcast %162 : vector<8x1xf32> to vector<8x32xf32>
    %171 = arith.subf %158, %170 : vector<8x32xf32>
    %cst_85 = arith.constant 9.99999974E-6 : f32
    %172 = vector.broadcast %cst_85 : f32 to vector<8x1xf32>
    %173 = arith.addf %169, %172 : vector<8x1xf32>
    %174 = math.rsqrt %173 : vector<8x1xf32>
    %175 = vector.broadcast %174 : vector<8x1xf32> to vector<8x32xf32>
    %176 = arith.mulf %171, %175 : vector<8x32xf32>
    %c2_86 = arith.constant 2 : index
    %c0_87 = arith.constant 0 : index
    %c0_88 = arith.constant 0 : index
    %177 = vector.load %arg14[%c2_86, %c0_87, %c0_88] : memref<4x1x32xf32, #tpu.memory_space<vmem>>, vector<1x1x32xf32>
    %178 = vector.shape_cast %177 : vector<1x1x32xf32> to vector<1x32xf32>
    %179 = vector.broadcast %178 : vector<1x32xf32> to vector<8x32xf32>
    %180 = arith.mulf %176, %179 : vector<8x32xf32>
    %c2_89 = arith.constant 2 : index
    %c0_90 = arith.constant 0 : index
    %c0_91 = arith.constant 0 : index
    %181 = vector.load %arg15[%c2_89, %c0_90, %c0_91] : memref<4x1x32xf32, #tpu.memory_space<vmem>>, vector<1x1x32xf32>
    %182 = vector.shape_cast %181 : vector<1x1x32xf32> to vector<1x32xf32>
    %183 = vector.broadcast %182 : vector<1x32xf32> to vector<8x32xf32>
    %184 = arith.addf %180, %183 : vector<8x32xf32>
    %185 = vector.shape_cast %184 : vector<8x32xf32> to vector<1x8x32xf32>
    %c0_92 = arith.constant 0 : index
    %c0_93 = arith.constant 0 : index
    %c0_94 = arith.constant 0 : index
    %186 = vector.load %arg16[%c0_92, %c0_93, %c0_94] : memref<1x8x32xf32, #tpu.memory_space<vmem>>, vector<1x8x32xf32>
    tpu.vector_store %arg16[%c0_92, %c0_93, %c0_94], %185 {strides = array<i32>} : memref<1x8x32xf32, #tpu.memory_space<vmem>>, vector<1x8x32xf32>,
    return
  }
  func.func @transform_0(%arg0: i32) -> (i32, i32, i32) {
    %c0_i32 = arith.constant 0 : i32
    %c0_i32_0 = arith.constant 0 : i32
    %c0_i32_1 = arith.constant 0 : i32
    return %arg0, %c0_i32, %c0_i32_0 : i32, i32, i32
  }
  func.func @transform_1(%arg0: i32) -> (i32, i32, i32) {
    %c0_i32 = arith.constant 0 : i32
    %c0_i32_0 = arith.constant 0 : i32
    %c0_i32_1 = arith.constant 0 : i32
    return %arg0, %c0_i32, %c0_i32_0 : i32, i32, i32
  }
  func.func @transform_2(%arg0: i32) -> (i32, i32, i32) {
    %c0_i32 = arith.constant 0 : i32
    %c0_i32_0 = arith.constant 0 : i32
    %c0_i32_1 = arith.constant 0 : i32
    return %arg0, %c0_i32, %c0_i32_0 : i32, i32, i32
  }
  func.func @transform_3(%arg0: i32) -> (i32, i32, i32) {
    %c0_i32 = arith.constant 0 : i32
    %c0_i32_0 = arith.constant 0 : i32
    %c0_i32_1 = arith.constant 0 : i32
    return %arg0, %c0_i32, %c0_i32_0 : i32, i32, i32
  }
  func.func @transform_4(%arg0: i32) -> (i32, i32) {
    %c0_i32 = arith.constant 0 : i32
    %c0_i32_0 = arith.constant 0 : i32
    %c0_i32_1 = arith.constant 0 : i32
    return %c0_i32, %c0_i32_0 : i32, i32
  }
  func.func @transform_5(%arg0: i32) -> (i32, i32) {
    %c0_i32 = arith.constant 0 : i32
    %c0_i32_0 = arith.constant 0 : i32
    %c0_i32_1 = arith.constant 0 : i32
    return %c0_i32, %c0_i32_0 : i32, i32
  }
  func.func @transform_6(%arg0: i32) -> (i32, i32) {
    %c0_i32 = arith.constant 0 : i32
    %c0_i32_0 = arith.constant 0 : i32
    %c0_i32_1 = arith.constant 0 : i32
    return %c0_i32, %c0_i32_0 : i32, i32
  }
  func.func @transform_7(%arg0: i32) -> (i32, i32) {
    %c0_i32 = arith.constant 0 : i32
    %c0_i32_0 = arith.constant 0 : i32
    %c0_i32_1 = arith.constant 0 : i32
    return %c0_i32, %c0_i32_0 : i32, i32
  }
  func.func @transform_8(%arg0: i32) -> (i32, i32, i32) {
    %c0_i32 = arith.constant 0 : i32
    %c0_i32_0 = arith.constant 0 : i32
    %c0_i32_1 = arith.constant 0 : i32
    %c0_i32_2 = arith.constant 0 : i32
    return %c0_i32, %c0_i32_0, %c0_i32_1 : i32, i32, i32
  }
  func.func @transform_9(%arg0: i32) -> (i32, i32) {
    %c0_i32 = arith.constant 0 : i32
    %c0_i32_0 = arith.constant 0 : i32
    %c0_i32_1 = arith.constant 0 : i32
    return %c0_i32, %c0_i32_0 : i32, i32
  }
  func.func @transform_10(%arg0: i32) -> (i32, i32) {
    %c0_i32 = arith.constant 0 : i32
    %c0_i32_0 = arith.constant 0 : i32
    %c0_i32_1 = arith.constant 0 : i32
    return %c0_i32, %c0_i32_0 : i32, i32
  }
  func.func @transform_11(%arg0: i32) -> (i32, i32) {
    %c0_i32 = arith.constant 0 : i32
    %c0_i32_0 = arith.constant 0 : i32
    %c0_i32_1 = arith.constant 0 : i32
    return %c0_i32, %c0_i32_0 : i32, i32
  }
  func.func @transform_12(%arg0: i32) -> (i32, i32) {
    %c0_i32 = arith.constant 0 : i32
    %c0_i32_0 = arith.constant 0 : i32
    %c0_i32_1 = arith.constant 0 : i32
    return %c0_i32, %c0_i32_0 : i32, i32
  }
  func.func @transform_13(%arg0: i32) -> (i32, i32, i32) {
    %c0_i32 = arith.constant 0 : i32
    %c0_i32_0 = arith.constant 0 : i32
    %c0_i32_1 = arith.constant 0 : i32
    %c0_i32_2 = arith.constant 0 : i32
    return %c0_i32, %c0_i32_0, %c0_i32_1 : i32, i32, i32
  }
  func.func @transform_14(%arg0: i32) -> (i32, i32, i32) {
    %c0_i32 = arith.constant 0 : i32
    %c0_i32_0 = arith.constant 0 : i32
    %c0_i32_1 = arith.constant 0 : i32
    %c0_i32_2 = arith.constant 0 : i32
    return %c0_i32, %c0_i32_0, %c0_i32_1 : i32, i32, i32
  }
  func.func @transform_15(%arg0: i32) -> (i32, i32, i32) {
    %c0_i32 = arith.constant 0 : i32
    %c0_i32_0 = arith.constant 0 : i32
    %c0_i32_1 = arith.constant 0 : i32
    return %arg0, %c0_i32, %c0_i32_0 : i32, i32, i32
  }
}

module attributes {stable_mosaic.version = 11 : i64} {
  func.func @_decoder_layer_kernel(%arg0: i32, %arg1: memref<1x8x32xf32, #tpu.memory_space<vmem>>, %arg2: memref<1x8x32xf32, #tpu.memory_space<vmem>>, %arg3: memref<1x8x32xf32, #tpu.memory_space<vmem>>, %arg4: memref<1x8x32xf32, #tpu.memory_space<vmem>>, %arg5: memref<32x32xf32, #tpu.memory_space<vmem>>, %arg6: memref<32x32xf32, #tpu.memory_space<vmem>>, %arg7: memref<32x32xf32, #tpu.memory_space<vmem>>, %arg8: memref<32x32xf32, #tpu.memory_space<vmem>>, %arg9: memref<4x1x32xf32, #tpu.memory_space<vmem>>, %arg10: memref<32x64xf32, #tpu.memory_space<vmem>>, %arg11: memref<1x64xf32, #tpu.memory_space<vmem>>, %arg12: memref<64x32xf32, #tpu.memory_space<vmem>>, %arg13: memref<1x32xf32, #tpu.memory_space<vmem>>, %arg14: memref<4x1x32xf32, #tpu.memory_space<vmem>>, %arg15: memref<4x1x32xf32, #tpu.memory_space<vmem>>, %arg16: memref<1x8x32xf32, #tpu.memory_space<vmem>>) attributes {dimension_semantics = [#tpu.dimension_semantics<parallel>], iteration_bounds = array<i64: 2>, scalar_prefetch = 0 : i64, scratch_operands = 0 : i64, tpu.core_type = #tpu.core_type<tc>, window_params = [{transform_indices = @transform_0, window_bounds = array<i64: 1, 8, 32>}, {transform_indices = @transform_1, window_bounds = array<i64: 1, 8, 32>}, {transform_indices = @transform_2, window_bounds = array<i64: 1, 8, 32>}, {transform_indices = @transform_3, window_bounds = array<i64: 1, 8, 32>}, {pipeline_mode = #tpu.pipeline_mode<synchronous>, transform_indices = @transform_4, window_bounds = array<i64: 32, 32>}, {pipeline_mode = #tpu.pipeline_mode<synchronous>, transform_indices = @transform_5, window_bounds = array<i64: 32, 32>}, {pipeline_mode = #tpu.pipeline_mode<synchronous>, transform_indices = @transform_6, window_bounds = array<i64: 32, 32>}, {pipeline_mode = #tpu.pipeline_mode<synchronous>, transform_indices = @transform_7, window_bounds = array<i64: 32, 32>}, {pipeline_mode = #tpu.pipeline_mode<synchronous>, transform_indices = @transform_8, window_bounds = array<i64: 4, 1, 32>}, {pipeline_mode = #tpu.pipeline_mode<synchronous>, transform_indices = @transform_9, window_bounds = array<i64: 32, 64>}, {pipeline_mode = #tpu.pipeline_mode<synchronous>, transform_indices = @transform_10, window_bounds = array<i64: 1, 64>}, {pipeline_mode = #tpu.pipeline_mode<synchronous>, transform_indices = @transform_11, window_bounds = array<i64: 64, 32>}, {pipeline_mode = #tpu.pipeline_mode<synchronous>, transform_indices = @transform_12, window_bounds = array<i64: 1, 32>}, {pipeline_mode = #tpu.pipeline_mode<synchronous>, transform_indices = @transform_13, window_bounds = array<i64: 4, 1, 32>}, {pipeline_mode = #tpu.pipeline_mode<synchronous>, transform_indices = @transform_14, window_bounds = array<i64: 4, 1, 32>}, {transform_indices = @transform_15, window_bounds = array<i64: 1, 8, 32>}]} {
    %c0 = arith.constant 0 : index
    %c0_0 = arith.constant 0 : index
    %c0_1 = arith.constant 0 : index
    %0 = vector.load %arg1[%c0, %c0_0, %c0_1] : memref<1x8x32xf32, #tpu.memory_space<vmem>>, vector<1x8x32xf32>
    %1 = vector.shape_cast %0 : vector<1x8x32xf32> to vector<8x32xf32>
    %c0_2 = arith.constant 0 : index
    %c0_3 = arith.constant 0 : index
    %c0_4 = arith.constant 0 : index
    %2 = vector.load %arg2[%c0_2, %c0_3, %c0_4] : memref<1x8x32xf32, #tpu.memory_space<vmem>>, vector<1x8x32xf32>
    %3 = vector.shape_cast %2 : vector<1x8x32xf32> to vector<8x32xf32>
    %c0_5 = arith.constant 0 : index
    %c0_6 = arith.constant 0 : index
    %c0_7 = arith.constant 0 : index
    %4 = vector.load %arg3[%c0_5, %c0_6, %c0_7] : memref<1x8x32xf32, #tpu.memory_space<vmem>>, vector<1x8x32xf32>
    %5 = vector.shape_cast %4 : vector<1x8x32xf32> to vector<8x32xf32>
    %c0_8 = arith.constant 0 : index
    %c0_9 = arith.constant 0 : index
    %c0_10 = arith.constant 0 : index
    %6 = vector.load %arg4[%c0_8, %c0_9, %c0_10] : memref<1x8x32xf32, #tpu.memory_space<vmem>>, vector<1x8x32xf32>
    %7 = vector.shape_cast %6 : vector<1x8x32xf32> to vector<8x32xf32>
    %cst = arith.constant dense<0.000000e+00> : vector<8xf32>
    %8 = vector.multi_reduction <add>, %1, %cst [1] : vector<8x32xf32> to vector<8xf32>
    %9 = vector.shape_cast %8 : vector<8xf32> to vector<8x1xf32>
    %cst_11 = arith.constant 3.200000e+01 : f32
    %10 = vector.broadcast %cst_11 : f32 to vector<8x1xf32>
    %11 = arith.divf %9, %10 : vector<8x1xf32>
    %12 = vector.broadcast %11 : vector<8x1xf32> to vector<8x32xf32>
    %13 = arith.subf %1, %12 : vector<8x32xf32>
    %14 = arith.mulf %13, %13 : vector<8x32xf32>
    %cst_12 = arith.constant dense<0.000000e+00> : vector<8xf32>
    %15 = vector.multi_reduction <add>, %14, %cst_12 [1] : vector<8x32xf32> to vector<8xf32>
    %16 = vector.shape_cast %15 : vector<8xf32> to vector<8x1xf32>
    %cst_13 = arith.constant 3.200000e+01 : f32
    %17 = vector.broadcast %cst_13 : f32 to vector<8x1xf32>
    %18 = arith.divf %16, %17 : vector<8x1xf32>
    %19 = vector.broadcast %11 : vector<8x1xf32> to vector<8x32xf32>
    %20 = arith.subf %1, %19 : vector<8x32xf32>
    %cst_14 = arith.constant 9.99999974E-6 : f32
    %21 = vector.broadcast %cst_14 : f32 to vector<8x1xf32>
    %22 = arith.addf %18, %21 : vector<8x1xf32>
    %23 = math.rsqrt %22 : vector<8x1xf32>
    %24 = vector.broadcast %23 : vector<8x1xf32> to vector<8x32xf32>
    %25 = arith.mulf %20, %24 : vector<8x32xf32>
    %c0_15 = arith.constant 0 : index
    %c0_16 = arith.constant 0 : index
    %c0_17 = arith.constant 0 : index
    %26 = vector.load %arg14[%c0_15, %c0_16, %c0_17] : memref<4x1x32xf32, #tpu.memory_space<vmem>>, vector<1x1x32xf32>
    %27 = vector.shape_cast %26 : vector<1x1x32xf32> to vector<1x32xf32>
    %28 = vector.broadcast %27 : vector<1x32xf32> to vector<8x32xf32>
    %29 = arith.mulf %25, %28 : vector<8x32xf32>
    %c0_18 = arith.constant 0 : index
    %c0_19 = arith.constant 0 : index
    %c0_20 = arith.constant 0 : index
    %30 = vector.load %arg15[%c0_18, %c0_19, %c0_20] : memref<4x1x32xf32, #tpu.memory_space<vmem>>, vector<1x1x32xf32>
    %31 = vector.shape_cast %30 : vector<1x1x32xf32> to vector<1x32xf32>
    %32 = vector.broadcast %31 : vector<1x32xf32> to vector<8x32xf32>
    %33 = arith.addf %29, %32 : vector<8x32xf32>
    %34 = arith.addf %33, %5 : vector<8x32xf32>
    %c0_21 = arith.constant 0 : index
    %c0_22 = arith.constant 0 : index
    %35 = vector.load %arg5[%c0_21, %c0_22] : memref<32x32xf32, #tpu.memory_space<vmem>>, vector<32x32xf32>
    %cst_23 = arith.constant dense<0.000000e+00> : vector<8x32xf32>
    %36 = tpu.matmul %34, %35, %cst_23 {dimension_numbers = #tpu.dot_dimension_numbers<[1], [0], [0], [1], [0, 0, 1, 1], [], []>} : vector<8x32xf32>, vector<32x32xf32>, vector<8x32xf32> -> vector<8x32xf32>
    %c0_24 = arith.constant 0 : index
    %c0_25 = arith.constant 0 : index
    %c0_26 = arith.constant 0 : index
    %37 = vector.load %arg9[%c0_24, %c0_25, %c0_26] : memref<4x1x32xf32, #tpu.memory_space<vmem>>, vector<1x1x32xf32>
    %38 = vector.shape_cast %37 : vector<1x1x32xf32> to vector<1x32xf32>
    %39 = vector.broadcast %38 : vector<1x32xf32> to vector<8x32xf32>
    %40 = arith.addf %36, %39 : vector<8x32xf32>
    %cst_27 = arith.constant 0.353553385 : f32
    %41 = vector.broadcast %cst_27 : f32 to vector<8x32xf32>
    %42 = arith.mulf %40, %41 : vector<8x32xf32>
    %43 = arith.addf %3, %7 : vector<8x32xf32>
    %c0_28 = arith.constant 0 : index
    %c0_29 = arith.constant 0 : index
    %44 = vector.load %arg6[%c0_28, %c0_29] : memref<32x32xf32, #tpu.memory_space<vmem>>, vector<32x32xf32>
    %cst_30 = arith.constant dense<0.000000e+00> : vector<8x32xf32>
    %45 = tpu.matmul %43, %44, %cst_30 {dimension_numbers = #tpu.dot_dimension_numbers<[1], [0], [0], [1], [0, 0, 1, 1], [], []>} : vector<8x32xf32>, vector<32x32xf32>, vector<8x32xf32> -> vector<8x32xf32>
    %c1 = arith.constant 1 : index
    %c0_31 = arith.constant 0 : index
    %c0_32 = arith.constant 0 : index
    %46 = vector.load %arg9[%c1, %c0_31, %c0_32] : memref<4x1x32xf32, #tpu.memory_space<vmem>>, vector<1x1x32xf32>
    %47 = vector.shape_cast %46 : vector<1x1x32xf32> to vector<1x32xf32>
    %48 = vector.broadcast %47 : vector<1x32xf32> to vector<8x32xf32>
    %49 = arith.addf %45, %48 : vector<8x32xf32>
    %c0_33 = arith.constant 0 : index
    %c0_34 = arith.constant 0 : index
    %50 = vector.load %arg7[%c0_33, %c0_34] : memref<32x32xf32, #tpu.memory_space<vmem>>, vector<32x32xf32>
    %cst_35 = arith.constant dense<0.000000e+00> : vector<8x32xf32>
    %51 = tpu.matmul %3, %50, %cst_35 {dimension_numbers = #tpu.dot_dimension_numbers<[1], [0], [0], [1], [0, 0, 1, 1], [], []>} : vector<8x32xf32>, vector<32x32xf32>, vector<8x32xf32> -> vector<8x32xf32>
    %c2 = arith.constant 2 : index
    %c0_36 = arith.constant 0 : index
    %c0_37 = arith.constant 0 : index
    %52 = vector.load %arg9[%c2, %c0_36, %c0_37] : memref<4x1x32xf32, #tpu.memory_space<vmem>>, vector<1x1x32xf32>
    %53 = vector.shape_cast %52 : vector<1x1x32xf32> to vector<1x32xf32>
    %54 = vector.broadcast %53 : vector<1x32xf32> to vector<8x32xf32>
    %55 = arith.addf %51, %54 : vector<8x32xf32>
    %56 = vector.extract_strided_slice %42 {offsets = [0, 0], sizes = [8, 8], strides = [1, 1]} : vector<8x32xf32> to vector<8x8xf32>
    %57 = vector.extract_strided_slice %49 {offsets = [0, 0], sizes = [8, 8], strides = [1, 1]} : vector<8x32xf32> to vector<8x8xf32>
    %58 = vector.extract_strided_slice %55 {offsets = [0, 0], sizes = [8, 8], strides = [1, 1]} : vector<8x32xf32> to vector<8x8xf32>
    %cst_38 = arith.constant dense<0.000000e+00> : vector<8x8xf32>
    %59 = tpu.matmul %56, %57, %cst_38 {dimension_numbers = #tpu.dot_dimension_numbers<[1], [1], [0], [0], [0, 0, 1, 0], [], []>} : vector<8x8xf32>, vector<8x8xf32>, vector<8x8xf32> -> vector<8x8xf32>
    %cst_39 = arith.constant dense<0xFF800000> : vector<8xf32>
    %60 = vector.multi_reduction <maximumf>, %59, %cst_39 [1] : vector<8x8xf32> to vector<8xf32>
    %61 = vector.shape_cast %60 : vector<8xf32> to vector<8x1xf32>
    %62 = vector.broadcast %61 : vector<8x1xf32> to vector<8x8xf32>
    %63 = arith.subf %59, %62 : vector<8x8xf32>
    %64 = math.exp %63 : vector<8x8xf32>
    %cst_40 = arith.constant dense<0.000000e+00> : vector<8xf32>
    %65 = vector.multi_reduction <add>, %64, %cst_40 [1] : vector<8x8xf32> to vector<8xf32>
    %66 = vector.shape_cast %65 : vector<8xf32> to vector<8x1xf32>
    %67 = vector.broadcast %66 : vector<8x1xf32> to vector<8x8xf32>
    %68 = arith.divf %64, %67 : vector<8x8xf32>
    %cst_41 = arith.constant dense<0.000000e+00> : vector<8x8xf32>
    %69 = tpu.matmul %68, %58, %cst_41 {dimension_numbers = #tpu.dot_dimension_numbers<[1], [0], [0], [1], [0, 0, 1, 1], [], []>} : vector<8x8xf32>, vector<8x8xf32>, vector<8x8xf32> -> vector<8x8xf32>
    %70 = vector.extract_strided_slice %42 {offsets = [0, 8], sizes = [8, 8], strides = [1, 1]} : vector<8x32xf32> to vector<8x8xf32>
    %71 = vector.extract_strided_slice %49 {offsets = [0, 8], sizes = [8, 8], strides = [1, 1]} : vector<8x32xf32> to vector<8x8xf32>
    %72 = vector.extract_strided_slice %55 {offsets = [0, 8], sizes = [8, 8], strides = [1, 1]} : vector<8x32xf32> to vector<8x8xf32>
    %cst_42 = arith.constant dense<0.000000e+00> : vector<8x8xf32>
    %73 = tpu.matmul %70, %71, %cst_42 {dimension_numbers = #tpu.dot_dimension_numbers<[1], [1], [0], [0], [0, 0, 1, 0], [], []>} : vector<8x8xf32>, vector<8x8xf32>, vector<8x8xf32> -> vector<8x8xf32>
    %cst_43 = arith.constant dense<0xFF800000> : vector<8xf32>
    %74 = vector.multi_reduction <maximumf>, %73, %cst_43 [1] : vector<8x8xf32> to vector<8xf32>
    %75 = vector.shape_cast %74 : vector<8xf32> to vector<8x1xf32>
    %76 = vector.broadcast %75 : vector<8x1xf32> to vector<8x8xf32>
    %77 = arith.subf %73, %76 : vector<8x8xf32>
    %78 = math.exp %77 : vector<8x8xf32>
    %cst_44 = arith.constant dense<0.000000e+00> : vector<8xf32>
    %79 = vector.multi_reduction <add>, %78, %cst_44 [1] : vector<8x8xf32> to vector<8xf32>
    %80 = vector.shape_cast %79 : vector<8xf32> to vector<8x1xf32>
    %81 = vector.broadcast %80 : vector<8x1xf32> to vector<8x8xf32>
    %82 = arith.divf %78, %81 : vector<8x8xf32>
    %cst_45 = arith.constant dense<0.000000e+00> : vector<8x8xf32>
    %83 = tpu.matmul %82, %72, %cst_45 {dimension_numbers = #tpu.dot_dimension_numbers<[1], [0], [0], [1], [0, 0, 1, 1], [], []>} : vector<8x8xf32>, vector<8x8xf32>, vector<8x8xf32> -> vector<8x8xf32>
    %84 = vector.extract_strided_slice %42 {offsets = [0, 16], sizes = [8, 8], strides = [1, 1]} : vector<8x32xf32> to vector<8x8xf32>
    %85 = vector.extract_strided_slice %49 {offsets = [0, 16], sizes = [8, 8], strides = [1, 1]} : vector<8x32xf32> to vector<8x8xf32>
    %86 = vector.extract_strided_slice %55 {offsets = [0, 16], sizes = [8, 8], strides = [1, 1]} : vector<8x32xf32> to vector<8x8xf32>
    %cst_46 = arith.constant dense<0.000000e+00> : vector<8x8xf32>
    %87 = tpu.matmul %84, %85, %cst_46 {dimension_numbers = #tpu.dot_dimension_numbers<[1], [1], [0], [0], [0, 0, 1, 0], [], []>} : vector<8x8xf32>, vector<8x8xf32>, vector<8x8xf32> -> vector<8x8xf32>
    %cst_47 = arith.constant dense<0xFF800000> : vector<8xf32>
    %88 = vector.multi_reduction <maximumf>, %87, %cst_47 [1] : vector<8x8xf32> to vector<8xf32>
    %89 = vector.shape_cast %88 : vector<8xf32> to vector<8x1xf32>
    %90 = vector.broadcast %89 : vector<8x1xf32> to vector<8x8xf32>
    %91 = arith.subf %87, %90 : vector<8x8xf32>
    %92 = math.exp %91 : vector<8x8xf32>
    %cst_48 = arith.constant dense<0.000000e+00> : vector<8xf32>
    %93 = vector.multi_reduction <add>, %92, %cst_48 [1] : vector<8x8xf32> to vector<8xf32>
    %94 = vector.shape_cast %93 : vector<8xf32> to vector<8x1xf32>
    %95 = vector.broadcast %94 : vector<8x1xf32> to vector<8x8xf32>
    %96 = arith.divf %92, %95 : vector<8x8xf32>
    %cst_49 = arith.constant dense<0.000000e+00> : vector<8x8xf32>
    %97 = tpu.matmul %96, %86, %cst_49 {dimension_numbers = #tpu.dot_dimension_numbers<[1], [0], [0], [1], [0, 0, 1, 1], [], []>} : vector<8x8xf32>, vector<8x8xf32>, vector<8x8xf32> -> vector<8x8xf32>
    %98 = vector.extract_strided_slice %42 {offsets = [0, 24], sizes = [8, 8], strides = [1, 1]} : vector<8x32xf32> to vector<8x8xf32>
    %99 = vector.extract_strided_slice %49 {offsets = [0, 24], sizes = [8, 8], strides = [1, 1]} : vector<8x32xf32> to vector<8x8xf32>
    %100 = vector.extract_strided_slice %55 {offsets = [0, 24], sizes = [8, 8], strides = [1, 1]} : vector<8x32xf32> to vector<8x8xf32>
    %cst_50 = arith.constant dense<0.000000e+00> : vector<8x8xf32>
    %101 = tpu.matmul %98, %99, %cst_50 {dimension_numbers = #tpu.dot_dimension_numbers<[1], [1], [0], [0], [0, 0, 1, 0], [], []>} : vector<8x8xf32>, vector<8x8xf32>, vector<8x8xf32> -> vector<8x8xf32>
    %cst_51 = arith.constant dense<0xFF800000> : vector<8xf32>
    %102 = vector.multi_reduction <maximumf>, %101, %cst_51 [1] : vector<8x8xf32> to vector<8xf32>
    %103 = vector.shape_cast %102 : vector<8xf32> to vector<8x1xf32>
    %104 = vector.broadcast %103 : vector<8x1xf32> to vector<8x8xf32>
    %105 = arith.subf %101, %104 : vector<8x8xf32>
    %106 = math.exp %105 : vector<8x8xf32>
    %cst_52 = arith.constant dense<0.000000e+00> : vector<8xf32>
    %107 = vector.multi_reduction <add>, %106, %cst_52 [1] : vector<8x8xf32> to vector<8xf32>
    %108 = vector.shape_cast %107 : vector<8xf32> to vector<8x1xf32>
    %109 = vector.broadcast %108 : vector<8x1xf32> to vector<8x8xf32>
    %110 = arith.divf %106, %109 : vector<8x8xf32>
    %cst_53 = arith.constant dense<0.000000e+00> : vector<8x8xf32>
    %111 = tpu.matmul %110, %100, %cst_53 {dimension_numbers = #tpu.dot_dimension_numbers<[1], [0], [0], [1], [0, 0, 1, 1], [], []>} : vector<8x8xf32>, vector<8x8xf32>, vector<8x8xf32> -> vector<8x8xf32>
    %112 = tpu.concatenate %69, %83, %97, %111 in 1 : vector<8x8xf32>, vector<8x8xf32>, vector<8x8xf32>, vector<8x8xf32> -> vector<8x32xf32>
    %c0_54 = arith.constant 0 : index
    %c0_55 = arith.constant 0 : index
    %113 = vector.load %arg8[%c0_54, %c0_55] : memref<32x32xf32, #tpu.memory_space<vmem>>, vector<32x32xf32>
    %cst_56 = arith.constant dense<0.000000e+00> : vector<8x32xf32>
    %114 = tpu.matmul %112, %113, %cst_56 {dimension_numbers = #tpu.dot_dimension_numbers<[1], [0], [0], [1], [0, 0, 1, 1], [], []>} : vector<8x32xf32>, vector<32x32xf32>, vector<8x32xf32> -> vector<8x32xf32>
    %c3 = arith.constant 3 : index
    %c0_57 = arith.constant 0 : index
    %c0_58 = arith.constant 0 : index
    %115 = vector.load %arg9[%c3, %c0_57, %c0_58] : memref<4x1x32xf32, #tpu.memory_space<vmem>>, vector<1x1x32xf32>
    %116 = vector.shape_cast %115 : vector<1x1x32xf32> to vector<1x32xf32>
    %117 = vector.broadcast %116 : vector<1x32xf32> to vector<8x32xf32>
    %118 = arith.addf %114, %117 : vector<8x32xf32>
    %119 = arith.addf %33, %118 : vector<8x32xf32>
    %cst_59 = arith.constant dense<0.000000e+00> : vector<8xf32>
    %120 = vector.multi_reduction <add>, %119, %cst_59 [1] : vector<8x32xf32> to vector<8xf32>
    %121 = vector.shape_cast %120 : vector<8xf32> to vector<8x1xf32>
    %cst_60 = arith.constant 3.200000e+01 : f32
    %122 = vector.broadcast %cst_60 : f32 to vector<8x1xf32>
    %123 = arith.divf %121, %122 : vector<8x1xf32>
    %124 = vector.broadcast %123 : vector<8x1xf32> to vector<8x32xf32>
    %125 = arith.subf %119, %124 : vector<8x32xf32>
    %126 = arith.mulf %125, %125 : vector<8x32xf32>
    %cst_61 = arith.constant dense<0.000000e+00> : vector<8xf32>
    %127 = vector.multi_reduction <add>, %126, %cst_61 [1] : vector<8x32xf32> to vector<8xf32>
    %128 = vector.shape_cast %127 : vector<8xf32> to vector<8x1xf32>
    %cst_62 = arith.constant 3.200000e+01 : f32
    %129 = vector.broadcast %cst_62 : f32 to vector<8x1xf32>
    %130 = arith.divf %128, %129 : vector<8x1xf32>
    %131 = vector.broadcast %123 : vector<8x1xf32> to vector<8x32xf32>
    %132 = arith.subf %119, %131 : vector<8x32xf32>
    %cst_63 = arith.constant 9.99999974E-6 : f32
    %133 = vector.broadcast %cst_63 : f32 to vector<8x1xf32>
    %134 = arith.addf %130, %133 : vector<8x1xf32>
    %135 = math.rsqrt %134 : vector<8x1xf32>
    %136 = vector.broadcast %135 : vector<8x1xf32> to vector<8x32xf32>
    %137 = arith.mulf %132, %136 : vector<8x32xf32>
    %c1_64 = arith.constant 1 : index
    %c0_65 = arith.constant 0 : index
    %c0_66 = arith.constant 0 : index
    %138 = vector.load %arg14[%c1_64, %c0_65, %c0_66] : memref<4x1x32xf32, #tpu.memory_space<vmem>>, vector<1x1x32xf32>
    %139 = vector.shape_cast %138 : vector<1x1x32xf32> to vector<1x32xf32>
    %140 = vector.broadcast %139 : vector<1x32xf32> to vector<8x32xf32>
    %141 = arith.mulf %137, %140 : vector<8x32xf32>
    %c1_67 = arith.constant 1 : index
    %c0_68 = arith.constant 0 : index
    %c0_69 = arith.constant 0 : index
    %142 = vector.load %arg15[%c1_67, %c0_68, %c0_69] : memref<4x1x32xf32, #tpu.memory_space<vmem>>, vector<1x1x32xf32>
    %143 = vector.shape_cast %142 : vector<1x1x32xf32> to vector<1x32xf32>
    %144 = vector.broadcast %143 : vector<1x32xf32> to vector<8x32xf32>
    %145 = arith.addf %141, %144 : vector<8x32xf32>
    %c0_70 = arith.constant 0 : index
    %c0_71 = arith.constant 0 : index
    %146 = vector.load %arg10[%c0_70, %c0_71] : memref<32x64xf32, #tpu.memory_space<vmem>>, vector<32x64xf32>
    %cst_72 = arith.constant dense<0.000000e+00> : vector<8x64xf32>
    %147 = tpu.matmul %145, %146, %cst_72 {dimension_numbers = #tpu.dot_dimension_numbers<[1], [0], [0], [1], [0, 0, 1, 1], [], []>} : vector<8x32xf32>, vector<32x64xf32>, vector<8x64xf32> -> vector<8x64xf32>
    %c0_73 = arith.constant 0 : index
    %c0_74 = arith.constant 0 : index
    %148 = vector.load %arg11[%c0_73, %c0_74] : memref<1x64xf32, #tpu.memory_space<vmem>>, vector<1x64xf32>
    %149 = vector.broadcast %148 : vector<1x64xf32> to vector<8x64xf32>
    %150 = arith.addf %147, %149 : vector<8x64xf32>
    %cst_75 = arith.constant 0.000000e+00 : f32
    %151 = vector.broadcast %cst_75 : f32 to vector<8x64xf32>
    %152 = arith.maximumf %150, %151 : vector<8x64xf32>
    %c0_76 = arith.constant 0 : index
    %c0_77 = arith.constant 0 : index
    %153 = vector.load %arg12[%c0_76, %c0_77] : memref<64x32xf32, #tpu.memory_space<vmem>>, vector<64x32xf32>
    %cst_78 = arith.constant dense<0.000000e+00> : vector<8x32xf32>
    %154 = tpu.matmul %152, %153, %cst_78 {dimension_numbers = #tpu.dot_dimension_numbers<[1], [0], [0], [1], [0, 0, 1, 1], [], []>} : vector<8x64xf32>, vector<64x32xf32>, vector<8x32xf32> -> vector<8x32xf32>
    %c0_79 = arith.constant 0 : index
    %c0_80 = arith.constant 0 : index
    %155 = vector.load %arg13[%c0_79, %c0_80] : memref<1x32xf32, #tpu.memory_space<vmem>>, vector<1x32xf32>
    %156 = vector.broadcast %155 : vector<1x32xf32> to vector<8x32xf32>
    %157 = arith.addf %154, %156 : vector<8x32xf32>
    %158 = arith.addf %145, %157 : vector<8x32xf32>
    %cst_81 = arith.constant dense<0.000000e+00> : vector<8xf32>
    %159 = vector.multi_reduction <add>, %158, %cst_81 [1] : vector<8x32xf32> to vector<8xf32>
    %160 = vector.shape_cast %159 : vector<8xf32> to vector<8x1xf32>
    %cst_82 = arith.constant 3.200000e+01 : f32
    %161 = vector.broadcast %cst_82 : f32 to vector<8x1xf32>
    %162 = arith.divf %160, %161 : vector<8x1xf32>
    %163 = vector.broadcast %162 : vector<8x1xf32> to vector<8x32xf32>
    %164 = arith.subf %158, %163 : vector<8x32xf32>
    %165 = arith.mulf %164, %164 : vector<8x32xf32>
    %cst_83 = arith.constant dense<0.000000e+00> : vector<8xf32>
    %166 = vector.multi_reduction <add>, %165, %cst_83 [1] : vector<8x32xf32> to vector<8xf32>
    %167 = vector.shape_cast %166 : vector<8xf32> to vector<8x1xf32>
    %cst_84 = arith.constant 3.200000e+01 : f32
    %168 = vector.broadcast %cst_84 : f32 to vector<8x1xf32>
    %169 = arith.divf %167, %168 : vector<8x1xf32>
    %170 = vector.broadcast %162 : vector<8x1xf32> to vector<8x32xf32>
    %171 = arith.subf %158, %170 : vector<8x32xf32>
    %cst_85 = arith.constant 9.99999974E-6 : f32
    %172 = vector.broadcast %cst_85 : f32 to vector<8x1xf32>
    %173 = arith.addf %169, %172 : vector<8x1xf32>
    %174 = math.rsqrt %173 : vector<8x1xf32>
    %175 = vector.broadcast %174 : vector<8x1xf32> to vector<8x32xf32>
    %176 = arith.mulf %171, %175 : vector<8x32xf32>
    %c2_86 = arith.constant 2 : index
    %c0_87 = arith.constant 0 : index
    %c0_88 = arith.constant 0 : index
    %177 = vector.load %arg14[%c2_86, %c0_87, %c0_88] : memref<4x1x32xf32, #tpu.memory_space<vmem>>, vector<1x1x32xf32>
    %178 = vector.shape_cast %177 : vector<1x1x32xf32> to vector<1x32xf32>
    %179 = vector.broadcast %178 : vector<1x32xf32> to vector<8x32xf32>
    %180 = arith.mulf %176, %179 : vector<8x32xf32>
    %c2_89 = arith.constant 2 : index
    %c0_90 = arith.constant 0 : index
    %c0_91 = arith.constant 0 : index
    %181 = vector.load %arg15[%c2_89, %c0_90, %c0_91] : memref<4x1x32xf32, #tpu.memory_space<vmem>>, vector<1x1x32xf32>
    %182 = vector.shape_cast %181 : vector<1x1x32xf32> to vector<1x32xf32>
    %183 = vector.broadcast %182 : vector<1x32xf32> to vector<8x32xf32>
    %184 = arith.addf %180, %183 : vector<8x32xf32>
    %cst_92 = arith.constant dense<0.000000e+00> : vector<8xf32>
    %185 = vector.multi_reduction <add>, %184, %cst_92 [1] : vector<8x32xf32> to vector<8xf32>
    %186 = vector.shape_cast %185 : vector<8xf32> to vector<8x1xf32>
    %cst_93 = arith.constant 3.200000e+01 : f32
    %187 = vector.broadcast %cst_93 : f32 to vector<8x1xf32>
    %188 = arith.divf %186, %187 : vector<8x1xf32>
    %189 = vector.broadcast %188 : vector<8x1xf32> to vector<8x32xf32>
    %190 = arith.subf %184, %189 : vector<8x32xf32>
    %191 = arith.mulf %190, %190 : vector<8x32xf32>
    %cst_94 = arith.constant dense<0.000000e+00> : vector<8xf32>
    %192 = vector.multi_reduction <add>, %191, %cst_94 [1] : vector<8x32xf32> to vector<8xf32>
    %193 = vector.shape_cast %192 : vector<8xf32> to vector<8x1xf32>
    %cst_95 = arith.constant 3.200000e+01 : f32
    %194 = vector.broadcast %cst_95 : f32 to vector<8x1xf32>
    %195 = arith.divf %193, %194 : vector<8x1xf32>
    %196 = vector.broadcast %188 : vector<8x1xf32> to vector<8x32xf32>
    %197 = arith.subf %184, %196 : vector<8x32xf32>
    %cst_96 = arith.constant 9.99999974E-6 : f32
    %198 = vector.broadcast %cst_96 : f32 to vector<8x1xf32>
    %199 = arith.addf %195, %198 : vector<8x1xf32>
    %200 = math.rsqrt %199 : vector<8x1xf32>
    %201 = vector.broadcast %200 : vector<8x1xf32> to vector<8x32xf32>
    %202 = arith.mulf %197, %201 : vector<8x32xf32>
    %c3_97 = arith.constant 3 : index
    %c0_98 = arith.constant 0 : index
    %c0_99 = arith.constant 0 : index
    %203 = vector.load %arg14[%c3_97, %c0_98, %c0_99] : memref<4x1x32xf32, #tpu.memory_space<vmem>>, vector<1x1x32xf32>
    %204 = vector.shape_cast %203 : vector<1x1x32xf32> to vector<1x32xf32>
    %205 = vector.broadcast %204 : vector<1x32xf32> to vector<8x32xf32>
    %206 = arith.mulf %202, %205 : vector<8x32xf32>
    %c3_100 = arith.constant 3 : index
    %c0_101 = arith.constant 0 : index
    %c0_102 = arith.constant 0 : index
    %207 = vector.load %arg15[%c3_100, %c0_101, %c0_102] : memref<4x1x32xf32, #tpu.memory_space<vmem>>, vector<1x1x32xf32>
    %208 = vector.shape_cast %207 : vector<1x1x32xf32> to vector<1x32xf32>
    %209 = vector.broadcast %208 : vector<1x32xf32> to vector<8x32xf32>
    %210 = arith.addf %206, %209 : vector<8x32xf32>
    %211 = vector.shape_cast %210 : vector<8x32xf32> to vector<1x8x32xf32>
    %c0_103 = arith.constant 0 : index
    %c0_104 = arith.constant 0 : index
    %c0_105 = arith.constant 0 : index
    %212 = vector.load %arg16[%c0_103, %c0_104, %c0_105] : memref<1x8x32xf32, #tpu.memory_space<vmem>>, vector<1x8x32xf32>
    tpu.vector_store %arg16[%c0_103, %c0_104, %c0_105], %211 {strides = array<i32>} : memref<1x8x32xf32, #tpu.memory_space<vmem>>, vector<1x8x32xf32>,
    return
  }
  func.func @transform_0(%arg0: i32) -> (i32, i32, i32) {
    %c0_i32 = arith.constant 0 : i32
    %c0_i32_0 = arith.constant 0 : i32
    %c0_i32_1 = arith.constant 0 : i32
    return %arg0, %c0_i32, %c0_i32_0 : i32, i32, i32
  }
  func.func @transform_1(%arg0: i32) -> (i32, i32, i32) {
    %c0_i32 = arith.constant 0 : i32
    %c0_i32_0 = arith.constant 0 : i32
    %c0_i32_1 = arith.constant 0 : i32
    return %arg0, %c0_i32, %c0_i32_0 : i32, i32, i32
  }
  func.func @transform_2(%arg0: i32) -> (i32, i32, i32) {
    %c0_i32 = arith.constant 0 : i32
    %c0_i32_0 = arith.constant 0 : i32
    %c0_i32_1 = arith.constant 0 : i32
    return %arg0, %c0_i32, %c0_i32_0 : i32, i32, i32
  }
  func.func @transform_3(%arg0: i32) -> (i32, i32, i32) {
    %c0_i32 = arith.constant 0 : i32
    %c0_i32_0 = arith.constant 0 : i32
    %c0_i32_1 = arith.constant 0 : i32
    return %arg0, %c0_i32, %c0_i32_0 : i32, i32, i32
  }
  func.func @transform_4(%arg0: i32) -> (i32, i32) {
    %c0_i32 = arith.constant 0 : i32
    %c0_i32_0 = arith.constant 0 : i32
    %c0_i32_1 = arith.constant 0 : i32
    return %c0_i32, %c0_i32_0 : i32, i32
  }
  func.func @transform_5(%arg0: i32) -> (i32, i32) {
    %c0_i32 = arith.constant 0 : i32
    %c0_i32_0 = arith.constant 0 : i32
    %c0_i32_1 = arith.constant 0 : i32
    return %c0_i32, %c0_i32_0 : i32, i32
  }
  func.func @transform_6(%arg0: i32) -> (i32, i32) {
    %c0_i32 = arith.constant 0 : i32
    %c0_i32_0 = arith.constant 0 : i32
    %c0_i32_1 = arith.constant 0 : i32
    return %c0_i32, %c0_i32_0 : i32, i32
  }
  func.func @transform_7(%arg0: i32) -> (i32, i32) {
    %c0_i32 = arith.constant 0 : i32
    %c0_i32_0 = arith.constant 0 : i32
    %c0_i32_1 = arith.constant 0 : i32
    return %c0_i32, %c0_i32_0 : i32, i32
  }
  func.func @transform_8(%arg0: i32) -> (i32, i32, i32) {
    %c0_i32 = arith.constant 0 : i32
    %c0_i32_0 = arith.constant 0 : i32
    %c0_i32_1 = arith.constant 0 : i32
    %c0_i32_2 = arith.constant 0 : i32
    return %c0_i32, %c0_i32_0, %c0_i32_1 : i32, i32, i32
  }
  func.func @transform_9(%arg0: i32) -> (i32, i32) {
    %c0_i32 = arith.constant 0 : i32
    %c0_i32_0 = arith.constant 0 : i32
    %c0_i32_1 = arith.constant 0 : i32
    return %c0_i32, %c0_i32_0 : i32, i32
  }
  func.func @transform_10(%arg0: i32) -> (i32, i32) {
    %c0_i32 = arith.constant 0 : i32
    %c0_i32_0 = arith.constant 0 : i32
    %c0_i32_1 = arith.constant 0 : i32
    return %c0_i32, %c0_i32_0 : i32, i32
  }
  func.func @transform_11(%arg0: i32) -> (i32, i32) {
    %c0_i32 = arith.constant 0 : i32
    %c0_i32_0 = arith.constant 0 : i32
    %c0_i32_1 = arith.constant 0 : i32
    return %c0_i32, %c0_i32_0 : i32, i32
  }
  func.func @transform_12(%arg0: i32) -> (i32, i32) {
    %c0_i32 = arith.constant 0 : i32
    %c0_i32_0 = arith.constant 0 : i32
    %c0_i32_1 = arith.constant 0 : i32
    return %c0_i32, %c0_i32_0 : i32, i32
  }
  func.func @transform_13(%arg0: i32) -> (i32, i32, i32) {
    %c0_i32 = arith.constant 0 : i32
    %c0_i32_0 = arith.constant 0 : i32
    %c0_i32_1 = arith.constant 0 : i32
    %c0_i32_2 = arith.constant 0 : i32
    return %c0_i32, %c0_i32_0, %c0_i32_1 : i32, i32, i32
  }
  func.func @transform_14(%arg0: i32) -> (i32, i32, i32) {
    %c0_i32 = arith.constant 0 : i32
    %c0_i32_0 = arith.constant 0 : i32
    %c0_i32_1 = arith.constant 0 : i32
    %c0_i32_2 = arith.constant 0 : i32
    return %c0_i32, %c0_i32_0, %c0_i32_1 : i32, i32, i32
  }
  func.func @transform_15(%arg0: i32) -> (i32, i32, i32) {
    %c0_i32 = arith.constant 0 : i32
    %c0_i32_0 = arith.constant 0 : i32
    %c0_i32_1 = arith.constant 0 : i32
    return %arg0, %c0_i32, %c0_i32_0 : i32, i32, i32
  }
}

</mosaic_0001>

<llo_original>
// kernel: decoder_forward.3
$region0: #{decoder_forward.3}
  #allocation0 [shape = 'u32[]', space=smem, size = 0x4, offset = 0x4, fixed_abs, tag = 'smem constant byte address 0x4 - core index']
  #allocation1 [shape = 'u32[72,128]{1,0:T(1,128)}', space=vmem, size = 0x9000, scoped, tag = 'internal scratch']
  %s0 = inlined_call_operand.vmem [shape: f32[2,8,32], index: 0, kind: input, shape index: {}]
  %s1 = inlined_call_operand.vmem [shape: f32[2,8,32], index: 1, kind: input, shape index: {}]
  %s2 = inlined_call_operand.vmem [shape: f32[2,8,32], index: 2, kind: input, shape index: {}]
  %s3 = inlined_call_operand.vmem [shape: f32[2,8,32], index: 3, kind: input, shape index: {}]
  %s4 = inlined_call_operand.vmem [shape: f32[32,32], index: 4, kind: input, shape index: {}]
  %s5 = inlined_call_operand.vmem [shape: f32[32,32], index: 5, kind: input, shape index: {}]
  %s6 = inlined_call_operand.vmem [shape: f32[32,32], index: 6, kind: input, shape index: {}]
  %s7 = inlined_call_operand.vmem [shape: f32[32,32], index: 7, kind: input, shape index: {}]
  %s8 = inlined_call_operand.vmem [shape: f32[4,1,32], index: 8, kind: input, shape index: {}]
  %s9 = inlined_call_operand.vmem [shape: f32[32,64], index: 9, kind: input, shape index: {}]
  %s10 = inlined_call_operand.vmem [shape: f32[1,64], index: 10, kind: input, shape index: {}]
  %s11 = inlined_call_operand.vmem [shape: f32[64,32], index: 11, kind: input, shape index: {}]
  %s12 = inlined_call_operand.hbm [shape: f32[1,32], index: 12, kind: input, shape index: {}]
  %s13 = inlined_call_operand.vmem [shape: f32[4,1,32], index: 13, kind: input, shape index: {}]
  %s14 = inlined_call_operand.vmem [shape: f32[4,1,32], index: 14, kind: input, shape index: {}]
  %s15 = inlined_call_operand.vmem [shape: f32[2,8,32], index: 15, kind: output, shape index: {}]
  %s16 = sld [smem:[#allocation0]]
  $region97: #{decoder_forward.3} parent=0
    _
  %s18 = ssub.s32 1, %s16
  %s19 = scalar_select 0, %s18, %s16
  $region1: #{decoder_forward.3} parent=0
    #allocation2 [shape = 'u8[512]{0}', space=vmem, size = 0x400, scoped, tag = 'input window, operand 12, single buffered']
    #allocation3 [shape = 's32[2]{0}', space=sflag, size = 0x8, scoped, tag = 'scoped memory for decoder_forward.3']
    %20 = vsyncpa [#allocation3], 0
    loop: start=0, step=1, limit=4
    $region2: #{decoder_forward.3} parent=1 // loop_pre_header
      _
    $region3: #{decoder_forward.3} parent=1 // loop_header
      %s22 = sphi 0, %s26
      %p23 = scmp.ge.s32.totalorder %s22, 4
      %s32 = sphi 0, %s34
      %s35 = sphi 0, %s32
      %s36 = sphi 0, %s35
      %s52 = sphi 0, %s36
      %s58 = sphi 0, %s60
      %s61 = sphi 0, %s58
      %s62 = sphi 0, %s61
      %s78 = sphi 0, %s62
      %s84 = sphi 0, %s86
      %s87 = sphi 0, %s84
      %s88 = sphi 0, %s87
      %s104 = sphi 0, %s88
      %s110 = sphi 0, %s112
      %s113 = sphi 0, %s110
      %s114 = sphi 0, %s113
      %s130 = sphi 0, %s114
      %s134 = sphi 0, %s134
      %s136 = sphi 0, %s134
      %s137 = sphi 0, %s136
      %s151 = sphi 0, %s137
      %s155 = sphi 0, %s155
      %s157 = sphi 0, %s155
      %s158 = sphi 0, %s157
      %s172 = sphi 0, %s158
      %s176 = sphi 0, %s176
      %s178 = sphi 0, %s176
      %s179 = sphi 0, %s178
      %s193 = sphi 0, %s179
      %s197 = sphi 0, %s197
      %s199 = sphi 0, %s197
      %s200 = sphi 0, %s199
      %s214 = sphi 0, %s200
      %s218 = sphi 0, %s218
      %s220 = sphi 0, %s218
      %s221 = sphi 0, %s220
      %s235 = sphi 0, %s221
      %s239 = sphi 0, %s239
      %s241 = sphi 0, %s239
      %s242 = sphi 0, %s241
      %s256 = sphi 0, %s242
      %s260 = sphi 0, %s260
      %s262 = sphi 0, %s260
      %s263 = sphi 0, %s262
      %s277 = sphi 0, %s263
      %s281 = sphi 0, %s281
      %s283 = sphi 0, %s281
      %s284 = sphi 0, %s283
      %s298 = sphi 0, %s284
      %s302 = sphi 0, %s302
      %s304 = sphi 0, %s302
      %s305 = sphi 0, %s304
      %s319 = sphi 0, %s305
      %s323 = sphi 0, %s323
      %s325 = sphi 0, %s323
      %s326 = sphi 0, %s325
      %s340 = sphi 0, %s326
      %s344 = sphi 0, %s344
      %s346 = sphi 0, %s344
      %s347 = sphi 0, %s346
      %s361 = sphi 0, %s347
      %s367 = sphi 0, %s369
      %s370 = sphi 0, %s367
      %s371 = sphi 0, %s370
      %s387 = sphi 0, %s371
    $region4: #{decoder_forward.3} parent=1 // loop_header_branch
      %25 = sbr.rel (%p23) target = $region8
    $region5: #{decoder_forward.3} parent=1 // loop_body
      %s27 = ssub.s32 %s22, 1
      %s28 = ssub.s32 %s22, 2
      %s29 = sadd.s32 %s22, 1
      %s30 = ssub.s32 %s22, %s29
      %p31 = scmp.eq.s32.totalorder %s30, 0
      %s33 = sadd.s32 %s32, 1
      %s34 = scalar_select %p31, %s32, %s33
      %p37 = pneg %p31
      %p38 = scmp.eq.s32.totalorder %s22, 1
      %p39 = por %p37, %p38
      %p40 = scmp.ne.s32.totalorder %s32, %s35
      %p41 = scmp.eq.s32.totalorder %s22, 0
      %p42 = por %p40, %p41
      %p43 = scmp.ne.s32.totalorder %s32, %s35
      %p44 = scmp.eq.s32.totalorder %s27, 1
      %p45 = por %p43, %p44
      %p46 = scmp.ne.s32.totalorder %s35, %s36
      %p47 = scmp.eq.s32.totalorder %s27, 0
      %p48 = por %p46, %p47
      %p49 = scmp.ne.s32.totalorder %s35, %s36
      %p50 = scmp.eq.s32.totalorder %s28, 1
      %p51 = por %p49, %p50
      %p53 = scmp.ne.s32.totalorder %s36, %s52
      %p54 = scmp.eq.s32.totalorder %s28, 0
      %p55 = por %p53, %p54
      %s56 = ssub.s32 %s22, %s29
      %p57 = scmp.eq.s32.totalorder %s56, 0
      %s59 = sadd.s32 %s58, 1
      %s60 = scalar_select %p57, %s58, %s59
      %p63 = pneg %p57
      %p64 = scmp.eq.s32.totalorder %s22, 1
      %p65 = por %p63, %p64
      %p66 = scmp.ne.s32.totalorder %s58, %s61
      %p67 = scmp.eq.s32.totalorder %s22, 0
      %p68 = por %p66, %p67
      %p69 = scmp.ne.s32.totalorder %s58, %s61
      %p70 = scmp.eq.s32.totalorder %s27, 1
      %p71 = por %p69, %p70
      %p72 = scmp.ne.s32.totalorder %s61, %s62
      %p73 = scmp.eq.s32.totalorder %s27, 0
      %p74 = por %p72, %p73
      %p75 = scmp.ne.s32.totalorder %s61, %s62
      %p76 = scmp.eq.s32.totalorder %s28, 1
      %p77 = por %p75, %p76
      %p79 = scmp.ne.s32.totalorder %s62, %s78
      %p80 = scmp.eq.s32.totalorder %s28, 0
      %p81 = por %p79, %p80
      %s82 = ssub.s32 %s22, %s29
      %p83 = scmp.eq.s32.totalorder %s82, 0
      %s85 = sadd.s32 %s84, 1
      %s86 = scalar_select %p83, %s84, %s85
      %p89 = pneg %p83
      %p90 = scmp.eq.s32.totalorder %s22, 1
      %p91 = por %p89, %p90
      %p92 = scmp.ne.s32.totalorder %s84, %s87
      %p93 = scmp.eq.s32.totalorder %s22, 0
      %p94 = por %p92, %p93
      %p95 = scmp.ne.s32.totalorder %s84, %s87
      %p96 = scmp.eq.s32.totalorder %s27, 1
      %p97 = por %p95, %p96
      %p98 = scmp.ne.s32.totalorder %s87, %s88
      %p99 = scmp.eq.s32.totalorder %s27, 0
      %p100 = por %p98, %p99
      %p101 = scmp.ne.s32.totalorder %s87, %s88
      %p102 = scmp.eq.s32.totalorder %s28, 1
      %p103 = por %p101, %p102
      %p105 = scmp.ne.s32.totalorder %s88, %s104
      %p106 = scmp.eq.s32.totalorder %s28, 0
      %p107 = por %p105, %p106
      %s108 = ssub.s32 %s22, %s29
      %p109 = scmp.eq.s32.totalorder %s108, 0
      %s111 = sadd.s32 %s110, 1
      %s112 = scalar_select %p109, %s110, %s111
      %p115 = pneg %p109
      %p116 = scmp.eq.s32.totalorder %s22, 1
      %p117 = por %p115, %p116
      %p118 = scmp.ne.s32.totalorder %s110, %s113
      %p119 = scmp.eq.s32.totalorder %s22, 0
      %p120 = por %p118, %p119
      %p121 = scmp.ne.s32.totalorder %s110, %s113
      %p122 = scmp.eq.s32.totalorder %s27, 1
      %p123 = por %p121, %p122
      %p124 = scmp.ne.s32.totalorder %s113, %s114
      %p125 = scmp.eq.s32.totalorder %s27, 0
      %p126 = por %p124, %p125
      %p127 = scmp.ne.s32.totalorder %s113, %s114
      %p128 = scmp.eq.s32.totalorder %s28, 1
      %p129 = por %p127, %p128
      %p131 = scmp.ne.s32.totalorder %s114, %s130
      %p132 = scmp.eq.s32.totalorder %s28, 0
      %p133 = por %p131, %p132
      %s135 = sadd.s32 %s134, 1
      %p138 = scmp.eq.s32.totalorder %s22, 1
      %p139 = scmp.ne.s32.totalorder %s134, %s136
      %p140 = scmp.eq.s32.totalorder %s22, 0
      %p141 = por %p139, %p140
      %p142 = scmp.ne.s32.totalorder %s134, %s136
      %p143 = scmp.eq.s32.totalorder %s27, 1
      %p144 = por %p142, %p143
      %p145 = scmp.ne.s32.totalorder %s136, %s137
      %p146 = scmp.eq.s32.totalorder %s27, 0
      %p147 = por %p145, %p146
      %p148 = scmp.ne.s32.totalorder %s136, %s137
      %p149 = scmp.eq.s32.totalorder %s28, 1
      %p150 = por %p148, %p149
      %p152 = scmp.ne.s32.totalorder %s137, %s151
      %p153 = scmp.eq.s32.totalorder %s28, 0
      %p154 = por %p152, %p153
      %s156 = sadd.s32 %s155, 1
      %p159 = scmp.eq.s32.totalorder %s22, 1
      %p160 = scmp.ne.s32.totalorder %s155, %s157
      %p161 = scmp.eq.s32.totalorder %s22, 0
      %p162 = por %p160, %p161
      %p163 = scmp.ne.s32.totalorder %s155, %s157
      %p164 = scmp.eq.s32.totalorder %s27, 1
      %p165 = por %p163, %p164
      %p166 = scmp.ne.s32.totalorder %s157, %s158
      %p167 = scmp.eq.s32.totalorder %s27, 0
      %p168 = por %p166, %p167
      %p169 = scmp.ne.s32.totalorder %s157, %s158
      %p170 = scmp.eq.s32.totalorder %s28, 1
      %p171 = por %p169, %p170
      %p173 = scmp.ne.s32.totalorder %s158, %s172
      %p174 = scmp.eq.s32.totalorder %s28, 0
      %p175 = por %p173, %p174
      %s177 = sadd.s32 %s176, 1
      %p180 = scmp.eq.s32.totalorder %s22, 1
      %p181 = scmp.ne.s32.totalorder %s176, %s178
      %p182 = scmp.eq.s32.totalorder %s22, 0
      %p183 = por %p181, %p182
      %p184 = scmp.ne.s32.totalorder %s176, %s178
      %p185 = scmp.eq.s32.totalorder %s27, 1
      %p186 = por %p184, %p185
      %p187 = scmp.ne.s32.totalorder %s178, %s179
      %p188 = scmp.eq.s32.totalorder %s27, 0
      %p189 = por %p187, %p188
      %p190 = scmp.ne.s32.totalorder %s178, %s179
      %p191 = scmp.eq.s32.totalorder %s28, 1
      %p192 = por %p190, %p191
      %p194 = scmp.ne.s32.totalorder %s179, %s193
      %p195 = scmp.eq.s32.totalorder %s28, 0
      %p196 = por %p194, %p195
      %s198 = sadd.s32 %s197, 1
      %p201 = scmp.eq.s32.totalorder %s22, 1
      %p202 = scmp.ne.s32.totalorder %s197, %s199
      %p203 = scmp.eq.s32.totalorder %s22, 0
      %p204 = por %p202, %p203
      %p205 = scmp.ne.s32.totalorder %s197, %s199
      %p206 = scmp.eq.s32.totalorder %s27, 1
      %p207 = por %p205, %p206
      %p208 = scmp.ne.s32.totalorder %s199, %s200
      %p209 = scmp.eq.s32.totalorder %s27, 0
      %p210 = por %p208, %p209
      %p211 = scmp.ne.s32.totalorder %s199, %s200
      %p212 = scmp.eq.s32.totalorder %s28, 1
      %p213 = por %p211, %p212
      %p215 = scmp.ne.s32.totalorder %s200, %s214
      %p216 = scmp.eq.s32.totalorder %s28, 0
      %p217 = por %p215, %p216
      %s219 = sadd.s32 %s218, 1
      %p222 = scmp.eq.s32.totalorder %s22, 1
      %p223 = scmp.ne.s32.totalorder %s218, %s220
      %p224 = scmp.eq.s32.totalorder %s22, 0
      %p225 = por %p223, %p224
      %p226 = scmp.ne.s32.totalorder %s218, %s220
      %p227 = scmp.eq.s32.totalorder %s27, 1
      %p228 = por %p226, %p227
      %p229 = scmp.ne.s32.totalorder %s220, %s221
      %p230 = scmp.eq.s32.totalorder %s27, 0
      %p231 = por %p229, %p230
      %p232 = scmp.ne.s32.totalorder %s220, %s221
      %p233 = scmp.eq.s32.totalorder %s28, 1
      %p234 = por %p232, %p233
      %p236 = scmp.ne.s32.totalorder %s221, %s235
      %p237 = scmp.eq.s32.totalorder %s28, 0
      %p238 = por %p236, %p237
      %s240 = sadd.s32 %s239, 1
      %p243 = scmp.eq.s32.totalorder %s22, 1
      %p244 = scmp.ne.s32.totalorder %s239, %s241
      %p245 = scmp.eq.s32.totalorder %s22, 0
      %p246 = por %p244, %p245
      %p247 = scmp.ne.s32.totalorder %s239, %s241
      %p248 = scmp.eq.s32.totalorder %s27, 1
      %p249 = por %p247, %p248
      %p250 = scmp.ne.s32.totalorder %s241, %s242
      %p251 = scmp.eq.s32.totalorder %s27, 0
      %p252 = por %p250, %p251
      %p253 = scmp.ne.s32.totalorder %s241, %s242
      %p254 = scmp.eq.s32.totalorder %s28, 1
      %p255 = por %p253, %p254
      %p257 = scmp.ne.s32.totalorder %s242, %s256
      %p258 = scmp.eq.s32.totalorder %s28, 0
      %p259 = por %p257, %p258
      %s261 = sadd.s32 %s260, 1
      %p264 = scmp.eq.s32.totalorder %s22, 1
      %p265 = scmp.ne.s32.totalorder %s260, %s262
      %p266 = scmp.eq.s32.totalorder %s22, 0
      %p267 = por %p265, %p266
      %p268 = scmp.ne.s32.totalorder %s260, %s262
      %p269 = scmp.eq.s32.totalorder %s27, 1
      %p270 = por %p268, %p269
      %p271 = scmp.ne.s32.totalorder %s262, %s263
      %p272 = scmp.eq.s32.totalorder %s27, 0
      %p273 = por %p271, %p272
      %p274 = scmp.ne.s32.totalorder %s262, %s263
      %p275 = scmp.eq.s32.totalorder %s28, 1
      %p276 = por %p274, %p275
      %p278 = scmp.ne.s32.totalorder %s263, %s277
      %p279 = scmp.eq.s32.totalorder %s28, 0
      %p280 = por %p278, %p279
      %s282 = sadd.s32 %s281, 1
      %p285 = scmp.eq.s32.totalorder %s22, 1
      %p286 = scmp.ne.s32.totalorder %s281, %s283
      %p287 = scmp.eq.s32.totalorder %s22, 0
      %p288 = por %p286, %p287
      %p289 = scmp.ne.s32.totalorder %s281, %s283
      %p290 = scmp.eq.s32.totalorder %s27, 1
      %p291 = por %p289, %p290
      %p292 = scmp.ne.s32.totalorder %s283, %s284
      %p293 = scmp.eq.s32.totalorder %s27, 0
      %p294 = por %p292, %p293
      %p295 = scmp.ne.s32.totalorder %s283, %s284
      %p296 = scmp.eq.s32.totalorder %s28, 1
      %p297 = por %p295, %p296
      %p299 = scmp.ne.s32.totalorder %s284, %s298
      %p300 = scmp.eq.s32.totalorder %s28, 0
      %p301 = por %p299, %p300
      %s303 = sadd.s32 %s302, 1
      %p306 = scmp.eq.s32.totalorder %s22, 1
      %p307 = scmp.ne.s32.totalorder %s302, %s304
      %p308 = scmp.eq.s32.totalorder %s22, 0
      %p309 = por %p307, %p308
      %p310 = scmp.ne.s32.totalorder %s302, %s304
      %p311 = scmp.eq.s32.totalorder %s27, 1
      %p312 = por %p310, %p311
      %p313 = scmp.ne.s32.totalorder %s304, %s305
      %p314 = scmp.eq.s32.totalorder %s27, 0
      %p315 = por %p313, %p314
      %p316 = scmp.ne.s32.totalorder %s304, %s305
      %p317 = scmp.eq.s32.totalorder %s28, 1
      %p318 = por %p316, %p317
      %p320 = scmp.ne.s32.totalorder %s305, %s319
      %p321 = scmp.eq.s32.totalorder %s28, 0
      %p322 = por %p320, %p321
      %s324 = sadd.s32 %s323, 1
      %p327 = scmp.eq.s32.totalorder %s22, 1
      %p328 = scmp.ne.s32.totalorder %s323, %s325
      %p329 = scmp.eq.s32.totalorder %s22, 0
      %p330 = por %p328, %p329
      %p331 = scmp.ne.s32.totalorder %s323, %s325
      %p332 = scmp.eq.s32.totalorder %s27, 1
      %p333 = por %p331, %p332
      %p334 = scmp.ne.s32.totalorder %s325, %s326
      %p335 = scmp.eq.s32.totalorder %s27, 0
      %p336 = por %p334, %p335
      %p337 = scmp.ne.s32.totalorder %s325, %s326
      %p338 = scmp.eq.s32.totalorder %s28, 1
      %p339 = por %p337, %p338
      %p341 = scmp.ne.s32.totalorder %s326, %s340
      %p342 = scmp.eq.s32.totalorder %s28, 0
      %p343 = por %p341, %p342
      %s345 = sadd.s32 %s344, 1
      %p348 = scmp.eq.s32.totalorder %s22, 1
      %p349 = scmp.ne.s32.totalorder %s344, %s346
      %p350 = scmp.eq.s32.totalorder %s22, 0
      %p351 = por %p349, %p350
      %p352 = scmp.ne.s32.totalorder %s344, %s346
      %p353 = scmp.eq.s32.totalorder %s27, 1
      %p354 = por %p352, %p353
      %p355 = scmp.ne.s32.totalorder %s346, %s347
      %p356 = scmp.eq.s32.totalorder %s27, 0
      %p357 = por %p355, %p356
      %p358 = scmp.ne.s32.totalorder %s346, %s347
      %p359 = scmp.eq.s32.totalorder %s28, 1
      %p360 = por %p358, %p359
      %p362 = scmp.ne.s32.totalorder %s347, %s361
      %p363 = scmp.eq.s32.totalorder %s28, 0
      %p364 = por %p362, %p363
      %s365 = ssub.s32 %s22, %s29
      %p366 = scmp.eq.s32.totalorder %s365, 0
      %s368 = sadd.s32 %s367, 1
      %s369 = scalar_select %p366, %s367, %s368
      %p372 = pneg %p366
      %p373 = scmp.eq.s32.totalorder %s22, 1
      %p374 = por %p372, %p373
      %p375 = scmp.ne.s32.totalorder %s367, %s370
      %p376 = scmp.eq.s32.totalorder %s22, 0
      %p377 = por %p375, %p376
      %p378 = scmp.ne.s32.totalorder %s367, %s370
      %p379 = scmp.eq.s32.totalorder %s27, 1
      %p380 = por %p378, %p379
      %p381 = scmp.ne.s32.totalorder %s370, %s371
      %p382 = scmp.eq.s32.totalorder %s27, 0
      %p383 = por %p381, %p382
      %p384 = scmp.ne.s32.totalorder %s370, %s371
      %p385 = scmp.eq.s32.totalorder %s28, 1
      %p386 = por %p384, %p385
      %p388 = scmp.ne.s32.totalorder %s371, %s387
      %p389 = scmp.eq.s32.totalorder %s28, 0
      %p390 = por %p388, %p389
      %p391 = scmp.le.s32.totalorder 1, %s22
      %p392 = scmp.lt.s32.totalorder %s22, 3
      %p393 = pnand %p391, %p392
      %p394 = pneg %p393
      // Predicated region
      $region9: #{decoder_forward.3} parent=5 // pred_check
        _
      $region10: #{decoder_forward.3} parent=5 // pred_check_branch
        %396 = sbr.rel (%p393) target = $region12
      $region11: #{decoder_forward.3} parent=5 // pred_region
        %s397 = ssub.s32 %s22, 1
        // Predicated region
        $region13: #{decoder_forward.3} parent=11 // pred_check
          %p398 = pneg %p147
        $region14: #{decoder_forward.3} parent=11 // pred_check_branch
          %400 = sbr.rel (%p398) target = $region16
        $region15: #{decoder_forward.3} parent=11 // pred_region
          _
        $region16: #{decoder_forward.3} parent=11 // pred_fallthru
          _
        // Predicated region
        $region17: #{decoder_forward.3} parent=11 // pred_check
          %p401 = pneg %p168
        $region18: #{decoder_forward.3} parent=11 // pred_check_branch
          %403 = sbr.rel (%p401) target = $region20
        $region19: #{decoder_forward.3} parent=11 // pred_region
          _
        $region20: #{decoder_forward.3} parent=11 // pred_fallthru
          _
        // Predicated region
        $region21: #{decoder_forward.3} parent=11 // pred_check
          %p404 = pneg %p189
        $region22: #{decoder_forward.3} parent=11 // pred_check_branch
          %406 = sbr.rel (%p404) target = $region24
        $region23: #{decoder_forward.3} parent=11 // pred_region
          _
        $region24: #{decoder_forward.3} parent=11 // pred_fallthru
          _
        // Predicated region
        $region25: #{decoder_forward.3} parent=11 // pred_check
          %p407 = pneg %p210
        $region26: #{decoder_forward.3} parent=11 // pred_check_branch
          %409 = sbr.rel (%p407) target = $region28
        $region27: #{decoder_forward.3} parent=11 // pred_region
          _
        $region28: #{decoder_forward.3} parent=11 // pred_fallthru
          _
        // Predicated region
        $region29: #{decoder_forward.3} parent=11 // pred_check
          %p410 = pneg %p231
        $region30: #{decoder_forward.3} parent=11 // pred_check_branch
          %412 = sbr.rel (%p410) target = $region32
        $region31: #{decoder_forward.3} parent=11 // pred_region
          _
        $region32: #{decoder_forward.3} parent=11 // pred_fallthru
          _
        // Predicated region
        $region33: #{decoder_forward.3} parent=11 // pred_check
          %p413 = pneg %p252
        $region34: #{decoder_forward.3} parent=11 // pred_check_branch
          %415 = sbr.rel (%p413) target = $region36
        $region35: #{decoder_forward.3} parent=11 // pred_region
          _
        $region36: #{decoder_forward.3} parent=11 // pred_fallthru
          _
        // Predicated region
        $region37: #{decoder_forward.3} parent=11 // pred_check
          %p416 = pneg %p273
        $region38: #{decoder_forward.3} parent=11 // pred_check_branch
          %418 = sbr.rel (%p416) target = $region40
        $region39: #{decoder_forward.3} parent=11 // pred_region
          _
        $region40: #{decoder_forward.3} parent=11 // pred_fallthru
          _
        // Predicated region
        $region41: #{decoder_forward.3} parent=11 // pred_check
          %p419 = pneg %p294
        $region42: #{decoder_forward.3} parent=11 // pred_check_branch
          %421 = sbr.rel (%p419) target = $region44
        $region43: #{decoder_forward.3} parent=11 // pred_region
          _
        $region44: #{decoder_forward.3} parent=11 // pred_fallthru
          _
        // Predicated region
        $region45: #{decoder_forward.3} parent=11 // pred_check
          %p422 = pneg %p315
        $region46: #{decoder_forward.3} parent=11 // pred_check_branch
          %424 = sbr.rel (%p422) target = $region48
        $region47: #{decoder_forward.3} parent=11 // pred_region
          %426 = vsyncadd [#allocation3], 0
          %s428 = sshll.u32 %s12, 4
          %s429 = int_to_ptr.hbm [resolvable:$true] %s428
          %s430 = sshll.u32 [#allocation2], 4
          %s431 = int_to_ptr.vmem [resolvable:$true] %s430
          %433 = dma.hbm_to_vmem [thread:$0]  %s429, 16, %s431, [#allocation3]
        $region48: #{decoder_forward.3} parent=11 // pred_fallthru
          _
        // Predicated region
        $region49: #{decoder_forward.3} parent=11 // pred_check
          %p434 = pneg %p336
        $region50: #{decoder_forward.3} parent=11 // pred_check_branch
          %436 = sbr.rel (%p434) target = $region52
        $region51: #{decoder_forward.3} parent=11 // pred_region
          _
        $region52: #{decoder_forward.3} parent=11 // pred_fallthru
          _
        // Predicated region
        $region53: #{decoder_forward.3} parent=11 // pred_check
          %p437 = pneg %p357
        $region54: #{decoder_forward.3} parent=11 // pred_check_branch
          %439 = sbr.rel (%p437) target = $region56
        $region55: #{decoder_forward.3} parent=11 // pred_region
          _
        $region56: #{decoder_forward.3} parent=11 // pred_fallthru
          _
      $region12: #{decoder_forward.3} parent=5 // pred_fallthru
        _
      %p440 = scmp.lt.s32.totalorder %s22, 2
      // Predicated region
      $region57: #{decoder_forward.3} parent=5 // pred_check
        %p441 = pneg %p440
      $region58: #{decoder_forward.3} parent=5 // pred_check_branch
        %443 = sbr.rel (%p441) target = $region60
      $region59: #{decoder_forward.3} parent=5 // pred_region
        // Predicated region
        $region61: #{decoder_forward.3} parent=59 // pred_check
          %p444 = pneg %p42
        $region62: #{decoder_forward.3} parent=59 // pred_check_branch
          %446 = sbr.rel (%p444) target = $region64
        $region63: #{decoder_forward.3} parent=59 // pred_region
          %p447 = scmp.lt.s32.totalorder %s22, 1
          %s448 = scalar_select %p447, %s22, 1
          %s449 = smul.addr %s448, 8
          %s450 = scalar_lea.vmem %s0, %s449
        $region64: #{decoder_forward.3} parent=59 // pred_fallthru
          _
        // Predicated region
        $region65: #{decoder_forward.3} parent=59 // pred_check
          %p451 = pneg %p68
        $region66: #{decoder_forward.3} parent=59 // pred_check_branch
          %453 = sbr.rel (%p451) target = $region68
        $region67: #{decoder_forward.3} parent=59 // pred_region
          %p454 = scmp.lt.s32.totalorder %s22, 1
          %s455 = scalar_select %p454, %s22, 1
          %s456 = smul.addr %s455, 8
          %s457 = scalar_lea.vmem %s1, %s456
        $region68: #{decoder_forward.3} parent=59 // pred_fallthru
          _
        // Predicated region
        $region69: #{decoder_forward.3} parent=59 // pred_check
          %p458 = pneg %p94
        $region70: #{decoder_forward.3} parent=59 // pred_check_branch
          %460 = sbr.rel (%p458) target = $region72
        $region71: #{decoder_forward.3} parent=59 // pred_region
          %p461 = scmp.lt.s32.totalorder %s22, 1
          %s462 = scalar_select %p461, %s22, 1
          %s463 = smul.addr %s462, 8
          %s464 = scalar_lea.vmem %s2, %s463
        $region72: #{decoder_forward.3} parent=59 // pred_fallthru
          _
        // Predicated region
        $region73: #{decoder_forward.3} parent=59 // pred_check
          %p465 = pneg %p120
        $region74: #{decoder_forward.3} parent=59 // pred_check_branch
          %467 = sbr.rel (%p465) target = $region76
        $region75: #{decoder_forward.3} parent=59 // pred_region
          %p468 = scmp.lt.s32.totalorder %s22, 1
          %s469 = scalar_select %p468, %s22, 1
          %s470 = smul.addr %s469, 8
          %s471 = scalar_lea.vmem %s3, %s470
        $region76: #{decoder_forward.3} parent=59 // pred_fallthru
          _
      $region60: #{decoder_forward.3} parent=5 // pred_fallthru
        _
      %p472 = scmp.le.s32.totalorder 1, %s22
      %p473 = scmp.lt.s32.totalorder %s22, 3
      %p474 = pnand %p472, %p473
      %p475 = pneg %p474
      // Predicated region
      $region77: #{decoder_forward.3} parent=5 // pred_check
        _
      $region78: #{decoder_forward.3} parent=5 // pred_check_branch
        %477 = sbr.rel (%p474) target = $region80
      $region79: #{decoder_forward.3} parent=5 // pred_region
        %s478 = ssub.s32 %s22, 1
        // Predicated region
        $region81: #{decoder_forward.3} parent=79 // pred_check
          %p479 = pneg %p315
        $region82: #{decoder_forward.3} parent=79 // pred_check_branch
          %481 = sbr.rel (%p479) target = $region84
        $region83: #{decoder_forward.3} parent=79 // pred_region
          %483 = dma.done [#allocation3], 16
        $region84: #{decoder_forward.3} parent=79 // pred_fallthru
          _
        %p484 = scmp.lt.s32.totalorder %s27, 1
        %s485 = scalar_select %p484, %s27, 1
        %s486 = smul.addr %s485, 8
        %s487 = scalar_lea.vmem %s0, %s486
        %p488 = pneg %p48
        %p489 = pneg %p45
        %p490 = scmp.lt.s32.totalorder %s27, 1
        %s491 = scalar_select %p490, %s27, 1
        %s492 = smul.addr %s491, 8
        %s493 = scalar_lea.vmem %s1, %s492
        %p494 = pneg %p74
        %p495 = pneg %p71
        %p496 = scmp.lt.s32.totalorder %s27, 1
        %s497 = scalar_select %p496, %s27, 1
        %s498 = smul.addr %s497, 8
        %s499 = scalar_lea.vmem %s2, %s498
        %p500 = pneg %p100
        %p501 = pneg %p97
        %p502 = scmp.lt.s32.totalorder %s27, 1
        %s503 = scalar_select %p502, %s27, 1
        %s504 = smul.addr %s503, 8
        %s505 = scalar_lea.vmem %s3, %s504
        %p506 = pneg %p126
        %p507 = pneg %p123
        %p508 = pneg %p147
        %p509 = pneg %p144
        %p510 = pneg %p168
        %p511 = pneg %p165
        %p512 = pneg %p189
        %p513 = pneg %p186
        %p514 = pneg %p210
        %p515 = pneg %p207
        %p516 = pneg %p231
        %p517 = pneg %p228
        %p518 = pneg %p252
        %p519 = pneg %p249
        %p520 = pneg %p273
        %p521 = pneg %p270
        %p522 = pneg %p294
        %p523 = pneg %p291
        %p524 = pneg %p315
        %p525 = pneg %p312
        %p526 = pneg %p336
        %p527 = pneg %p333
        %p528 = pneg %p357
        %p529 = pneg %p354
        %p530 = pneg %p383
        %p531 = pneg %p380
        %p532 = scmp.lt.s32.totalorder %s27, 1
        %s533 = scalar_select %p532, %s27, 1
        %s534 = smul.addr %s533, 8
        %s535 = scalar_lea.vmem %s15, %s534
        %p536 = scmp.lt.s32.totalorder %s27, 1
        %s537 = scalar_select %p536, %s27, 1
        %s538 = smul.addr %s537, 8
        %s539 = scalar_lea.vmem %s0, %s538
        %p540 = scmp.lt.s32.totalorder %s27, 1
        %s541 = scalar_select %p540, %s27, 1
        %s542 = smul.addr %s541, 8
        %s543 = scalar_lea.vmem %s1, %s542
        %p544 = scmp.lt.s32.totalorder %s27, 1
        %s545 = scalar_select %p544, %s27, 1
        %s546 = smul.addr %s545, 8
        %s547 = scalar_lea.vmem %s2, %s546
        %p548 = scmp.lt.s32.totalorder %s27, 1
        %s549 = scalar_select %p548, %s27, 1
        %s550 = smul.addr %s549, 8
        %s551 = scalar_lea.vmem %s3, %s550
        %p552 = scmp.lt.s32.totalorder %s27, 1
        %s553 = scalar_select %p552, %s27, 1
        %s554 = smul.addr %s553, 8
        %s555 = scalar_lea.vmem %s15, %s554
        %v556 = vld [vmem:[%s539] sm:$0xff]
        %v557 = vld [vmem:[%s543] sm:$0xff]
        %v558 = vld [vmem:[%s547] sm:$0xff]
        %v559 = vld [vmem:[%s551] sm:$0xff]
        %vm560 = vcmask 261120
        %v561 = vsel %vm560, %v556, 0.0
        %562 = vadd.xlane.f32.xlu0 %v561
        %v563 = vpop.xlane.xlu0 %562
        %v564 = vrcp.pop 32.0
        %v565 = vmul.f32 32.0, %v564
        %v566 = vsub.f32 1.0, %v565
        %v567 = vmul.f32 %v564, %v566
        %v568 = vadd.f32 %v564, %v567
        %vm569 = vweird.f32 %v564
        %v570 = vsel %vm569, %v564, %v568
        %v571 = vmul.f32 %v563, %v570
        %v572 = vsub.f32 %v556, %v571
        %v573 = vmul.f32 %v572, %v572
        %v574 = vsel %vm560, %v573, 0.0
        %575 = vadd.xlane.f32.xlu0 %v574
        %v576 = vpop.xlane.xlu0 %575
        %v577 = vmul.f32 %v576, %v570
        %v578 = vadd.f32 %v577, 1e-05
        %v579 = vrsqrt.pop %v578
        %v580 = vmul.f32 %v579, %v578
        %v581 = vmul.f32 %v580, %v579
        %v582 = vmul.f32 0.5, %v581
        %v583 = vsub.f32 1.5, %v582
        %v584 = vmul.f32 %v579, %v583
        %vm585 = vweird.f32 %v578
        %vm586 = vweird.f32 %v579
        %vm587 = vmor %vm585, %vm586
        %v588 = vsel %vm587, %v579, %v584
        %v589 = vmul.f32 %v572, %v588
        %v590 = vld [vmem:[%s13] sm:$0x1]
        %v592 = vperm.slane %v590, 0
        %v594 = vmul.f32 %v589, %v592
        %v595 = vld [vmem:[%s14] sm:$0x1]
        %v597 = vperm.slane %v595, 0
        %v599 = vadd.f32 %v594, %v597
        %v600 = vadd.f32 %v599, %v558
        %v601 = vld [vmem:[%s4] sm:$0xff]
        %v602 = vld [vmem:[%s4 + $0x8] sm:$0xff]
        %v603 = vld [vmem:[%s4 + $0x10] sm:$0xff]
        %v604 = vld [vmem:[%s4 + $0x18] sm:$0xff]
        %v605 = vld [vmem:[%s8] sm:$0x1]
        %v607 = vperm.slane %v605, 0
        %v610 = vsel %vm560, %v600, 0
        %612 = vmatpush.msra.mxu0 0.0
        %613 = vmatpush.msra.mxu0 0.0
        %614 = vmatpush.msra.mxu0 0.0
        %615 = vmatpush.msra.mxu0 0.0
        %616 = vmatpush.msra.mxu0 0.0
        %617 = vmatpush.msra.mxu0 0.0
        %618 = vmatpush.msra.mxu0 0.0
        %619 = vmatpush.msra.mxu0 0.0
        %620 = vmatpush.msra.mxu0 0.0
        %621 = vmatpush.msra.mxu0 0.0
        %622 = vmatpush.msra.mxu0 0.0
        %623 = vmatpush.msra.mxu0 0.0
        %624 = vmatpush.msra.mxu0 %v604
        %625 = vmatpush.msra.mxu0 %v603
        %626 = vmatpush.msra.mxu0 %v602
        %627 = vmatpush.msra.mxu0 %v601
        %628 = vmatmul.f32.gmra.mxu0 %v610
        %v629 = vpop.f32.mrf.mxu0
        %v630 = vadd.f32 %v607, %v629
        %631 = vdwg.mxu0
        %v632 = vmul.f32 %v630, 0.35355338
        %v633 = vadd.f32 %v557, %v559
        %v634 = vld [vmem:[%s5] sm:$0xff]
        %v635 = vld [vmem:[%s5 + $0x8] sm:$0xff]
        %v636 = vld [vmem:[%s5 + $0x10] sm:$0xff]
        %v637 = vld [vmem:[%s5 + $0x18] sm:$0xff]
        %s638 = scalar_lea.vmem %s8, 1
        %v639 = vld [vmem:[%s638] sm:$0x1]
        %v641 = vperm.slane %v639, 0
        %v644 = vsel %vm560, %v633, 0
        %646 = vmatpush.msra.mxu0 0.0
        %647 = vmatpush.msra.mxu0 0.0
        %648 = vmatpush.msra.mxu0 0.0
        %649 = vmatpush.msra.mxu0 0.0
        %650 = vmatpush.msra.mxu0 0.0
        %651 = vmatpush.msra.mxu0 0.0
        %652 = vmatpush.msra.mxu0 0.0
        %653 = vmatpush.msra.mxu0 0.0
        %654 = vmatpush.msra.mxu0 0.0
        %655 = vmatpush.msra.mxu0 0.0
        %656 = vmatpush.msra.mxu0 0.0
        %657 = vmatpush.msra.mxu0 0.0
        %658 = vmatpush.msra.mxu0 %v637
        %659 = vmatpush.msra.mxu0 %v636
        %660 = vmatpush.msra.mxu0 %v635
        %661 = vmatpush.msra.mxu0 %v634
        %662 = vmatmul.f32.gmra.mxu0 %v644
        %v663 = vpop.f32.mrf.mxu0
        %v664 = vadd.f32 %v641, %v663
        %665 = vdwg.mxu0
        %v666 = vld [vmem:[%s6] sm:$0xff]
        %v667 = vld [vmem:[%s6 + $0x8] sm:$0xff]
        %v668 = vld [vmem:[%s6 + $0x10] sm:$0xff]
        %v669 = vld [vmem:[%s6 + $0x18] sm:$0xff]
        %s670 = scalar_lea.vmem %s8, 2
        %v671 = vld [vmem:[%s670] sm:$0x1]
        %v673 = vperm.slane %v671, 0
        %v676 = vsel %vm560, %v557, 0
        %678 = vmatpush.msra.mxu0 0.0
        %679 = vmatpush.msra.mxu0 0.0
        %680 = vmatpush.msra.mxu0 0.0
        %681 = vmatpush.msra.mxu0 0.0
        %682 = vmatpush.msra.mxu0 0.0
        %683 = vmatpush.msra.mxu0 0.0
        %684 = vmatpush.msra.mxu0 0.0
        %685 = vmatpush.msra.mxu0 0.0
        %686 = vmatpush.msra.mxu0 0.0
        %687 = vmatpush.msra.mxu0 0.0
        %688 = vmatpush.msra.mxu0 0.0
        %689 = vmatpush.msra.mxu0 0.0
        %690 = vmatpush.msra.mxu0 %v669
        %691 = vmatpush.msra.mxu0 %v668
        %692 = vmatpush.msra.mxu0 %v667
        %693 = vmatpush.msra.mxu0 %v666
        %694 = vmatmul.f32.gmra.mxu0 %v676
        %v695 = vpop.f32.mrf.mxu0
        %v696 = vadd.f32 %v673, %v695
        %697 = vdwg.mxu0
        %vm698 = vcmask 64512
        %v700 = vsel %vm698, %v632, 0
        %v703 = vsel %vm698, %v664, 0
        %705 = vmatpush.xpose.msra.mxu0 0.0
        %706 = vmatpush.xpose.msra.mxu0 0.0
        %707 = vmatpush.xpose.msra.mxu0 0.0
        %708 = vmatpush.xpose.msra.mxu0 0.0
        %709 = vmatpush.xpose.msra.mxu0 0.0
        %710 = vmatpush.xpose.msra.mxu0 0.0
        %711 = vmatpush.xpose.msra.mxu0 0.0
        %712 = vmatpush.xpose.msra.mxu0 0.0
        %713 = vmatpush.xpose.msra.mxu0 0.0
        %714 = vmatpush.xpose.msra.mxu0 0.0
        %715 = vmatpush.xpose.msra.mxu0 0.0
        %716 = vmatpush.xpose.msra.mxu0 0.0
        %717 = vmatpush.xpose.msra.mxu0 0.0
        %718 = vmatpush.xpose.msra.mxu0 0.0
        %719 = vmatpush.xpose.msra.mxu0 0.0
        %720 = vmatpush.xpose.msra.mxu0 %v703
        %721 = vmatmul.f32.gmra.mxu0 %v700
        %v722 = vpop.f32.mrf.mxu0
        %v723 = vadd.f32 0.0, %v722
        %724 = vdwg.mxu0
        %v725 = vsel %vm698, %v723, -inf
        %726 = vmax.xlane.f32.xlu0 %v725
        %v727 = vpop.xlane.xlu0 %726
        %v728 = vsub.f32 %v723, %v727
        %v729 = vmul.f32 %v728, 1.442695
        %v730 = vpow.pop %v729
        %v731 = vsel %vm698, %v730, 0.0
        %732 = vadd.xlane.f32.xlu0 %v731
        %v733 = vpop.xlane.xlu0 %732
        %v734 = vrcp.pop %v733
        %v735 = vmul.f32 %v733, %v734
        %v736 = vsub.f32 1.0, %v735
        %v737 = vmul.f32 %v734, %v736
        %v738 = vadd.f32 %v734, %v737
        %vm739 = vweird.f32 %v733
        %vm740 = vweird.f32 %v734
        %vm741 = vmor %vm739, %vm740
        %v742 = vsel %vm741, %v734, %v738
        %v743 = vand.u32 2147483647, %v733
        %vm744 = vcmp.eq.f32.partialorder %v743, 8.507059e+37
        %v745 = vand.u32 %v733, 2147483648
        %v746 = vor.u32 1.1754944e-38, %v745
        %v747 = vsel %vm744, %v746, %v742
        %v748 = vmul.f32 %v730, %v747
        %v750 = vsel %vm698, %v748, 0
        %752 = vmatpush.msra.mxu0 0.0
        %753 = vmatpush.msra.mxu0 0.0
        %754 = vmatpush.msra.mxu0 0.0
        %755 = vmatpush.msra.mxu0 0.0
        %756 = vmatpush.msra.mxu0 0.0
        %757 = vmatpush.msra.mxu0 0.0
        %758 = vmatpush.msra.mxu0 0.0
        %759 = vmatpush.msra.mxu0 0.0
        %760 = vmatpush.msra.mxu0 0.0
        %761 = vmatpush.msra.mxu0 0.0
        %762 = vmatpush.msra.mxu0 0.0
        %763 = vmatpush.msra.mxu0 0.0
        %764 = vmatpush.msra.mxu0 0.0
        %765 = vmatpush.msra.mxu0 0.0
        %766 = vmatpush.msra.mxu0 0.0
        %767 = vmatpush.msra.mxu0 %v696
        %768 = vmatmul.f32.gmra.mxu0 %v750
        %v769 = vpop.f32.mrf.mxu0
        %v770 = vadd.f32 0.0, %v769
        %771 = vdwg.mxu0
        %772 = vrot.lane.b32.xlu0 %v632, 120
        %v773 = vpop.permute.xlu0 %772
        %774 = vrot.lane.b32.xlu0 %v664, 120
        %v775 = vpop.permute.xlu0 %774
        %v776 = vsel %vm698, %v773, 0
        %v778 = vsel %vm698, %v775, 0
        %780 = vmatpush.xpose.msra.mxu0 0.0
        %781 = vmatpush.xpose.msra.mxu0 0.0
        %782 = vmatpush.xpose.msra.mxu0 0.0
        %783 = vmatpush.xpose.msra.mxu0 0.0
        %784 = vmatpush.xpose.msra.mxu0 0.0
        %785 = vmatpush.xpose.msra.mxu0 0.0
        %786 = vmatpush.xpose.msra.mxu0 0.0
        %787 = vmatpush.xpose.msra.mxu0 0.0
        %788 = vmatpush.xpose.msra.mxu0 0.0
        %789 = vmatpush.xpose.msra.mxu0 0.0
        %790 = vmatpush.xpose.msra.mxu0 0.0
        %791 = vmatpush.xpose.msra.mxu0 0.0
        %792 = vmatpush.xpose.msra.mxu0 0.0
        %793 = vmatpush.xpose.msra.mxu0 0.0
        %794 = vmatpush.xpose.msra.mxu0 0.0
        %795 = vmatpush.xpose.msra.mxu0 %v778
        %796 = vmatmul.f32.gmra.mxu0 %v776
        %v797 = vpop.f32.mrf.mxu0
        %v798 = vadd.f32 0.0, %v797
        %799 = vdwg.mxu0
        %v800 = vsel %vm698, %v798, -inf
        %801 = vmax.xlane.f32.xlu0 %v800
        %v802 = vpop.xlane.xlu0 %801
        %v803 = vsub.f32 %v798, %v802
        %v804 = vmul.f32 %v803, 1.442695
        %v805 = vpow.pop %v804
        %v806 = vsel %vm698, %v805, 0.0
        %807 = vadd.xlane.f32.xlu0 %v806
        %v808 = vpop.xlane.xlu0 %807
        %v809 = vrcp.pop %v808
        %v810 = vmul.f32 %v808, %v809
        %v811 = vsub.f32 1.0, %v810
        %v812 = vmul.f32 %v809, %v811
        %v813 = vadd.f32 %v809, %v812
        %vm814 = vweird.f32 %v808
        %vm815 = vweird.f32 %v809
        %vm816 = vmor %vm814, %vm815
        %v817 = vsel %vm816, %v809, %v813
        %v818 = vand.u32 2147483647, %v808
        %vm819 = vcmp.eq.f32.partialorder %v818, 8.507059e+37
        %v820 = vand.u32 %v808, 2147483648
        %v821 = vor.u32 1.1754944e-38, %v820
        %v822 = vsel %vm819, %v821, %v817
        %v823 = vmul.f32 %v805, %v822
        %825 = vrot.lane.b32.xlu0 %v696, 120
        %v826 = vpop.permute.xlu0 %825
        %v829 = vsel %vm698, %v823, 0
        %831 = vmatpush.msra.mxu0 0.0
        %832 = vmatpush.msra.mxu0 0.0
        %833 = vmatpush.msra.mxu0 0.0
        %834 = vmatpush.msra.mxu0 0.0
        %835 = vmatpush.msra.mxu0 0.0
        %836 = vmatpush.msra.mxu0 0.0
        %837 = vmatpush.msra.mxu0 0.0
        %838 = vmatpush.msra.mxu0 0.0
        %839 = vmatpush.msra.mxu0 0.0
        %840 = vmatpush.msra.mxu0 0.0
        %841 = vmatpush.msra.mxu0 0.0
        %842 = vmatpush.msra.mxu0 0.0
        %843 = vmatpush.msra.mxu0 0.0
        %844 = vmatpush.msra.mxu0 0.0
        %845 = vmatpush.msra.mxu0 0.0
        %846 = vmatpush.msra.mxu0 %v826
        %847 = vmatmul.f32.gmra.mxu0 %v829
        %v848 = vpop.f32.mrf.mxu0
        %v849 = vadd.f32 0.0, %v848
        %850 = vdwg.mxu0
        %851 = vrot.lane.b32.xlu0 %v632, 112
        %v852 = vpop.permute.xlu0 %851
        %853 = vrot.lane.b32.xlu0 %v664, 112
        %v854 = vpop.permute.xlu0 %853
        %v855 = vsel %vm698, %v852, 0
        %v857 = vsel %vm698, %v854, 0
        %859 = vmatpush.xpose.msra.mxu0 0.0
        %860 = vmatpush.xpose.msra.mxu0 0.0
        %861 = vmatpush.xpose.msra.mxu0 0.0
        %862 = vmatpush.xpose.msra.mxu0 0.0
        %863 = vmatpush.xpose.msra.mxu0 0.0
        %864 = vmatpush.xpose.msra.mxu0 0.0
        %865 = vmatpush.xpose.msra.mxu0 0.0
        %866 = vmatpush.xpose.msra.mxu0 0.0
        %867 = vmatpush.xpose.msra.mxu0 0.0
        %868 = vmatpush.xpose.msra.mxu0 0.0
        %869 = vmatpush.xpose.msra.mxu0 0.0
        %870 = vmatpush.xpose.msra.mxu0 0.0
        %871 = vmatpush.xpose.msra.mxu0 0.0
        %872 = vmatpush.xpose.msra.mxu0 0.0
        %873 = vmatpush.xpose.msra.mxu0 0.0
        %874 = vmatpush.xpose.msra.mxu0 %v857
        %875 = vmatmul.f32.gmra.mxu0 %v855
        %v876 = vpop.f32.mrf.mxu0
        %v877 = vadd.f32 0.0, %v876
        %878 = vdwg.mxu0
        %v879 = vsel %vm698, %v877, -inf
        %880 = vmax.xlane.f32.xlu0 %v879
        %v881 = vpop.xlane.xlu0 %880
        %v882 = vsub.f32 %v877, %v881
        %v883 = vmul.f32 %v882, 1.442695
        %v884 = vpow.pop %v883
        %v885 = vsel %vm698, %v884, 0.0
        %886 = vadd.xlane.f32.xlu0 %v885
        %v887 = vpop.xlane.xlu0 %886
        %v888 = vrcp.pop %v887
        %v889 = vmul.f32 %v887, %v888
        %v890 = vsub.f32 1.0, %v889
        %v891 = vmul.f32 %v888, %v890
        %v892 = vadd.f32 %v888, %v891
        %vm893 = vweird.f32 %v887
        %vm894 = vweird.f32 %v888
        %vm895 = vmor %vm893, %vm894
        %v896 = vsel %vm895, %v888, %v892
        %v897 = vand.u32 2147483647, %v887
        %vm898 = vcmp.eq.f32.partialorder %v897, 8.507059e+37
        %v899 = vand.u32 %v887, 2147483648
        %v900 = vor.u32 1.1754944e-38, %v899
        %v901 = vsel %vm898, %v900, %v896
        %v902 = vmul.f32 %v884, %v901
        %903 = vrot.lane.b32.xlu0 %v696, 112
        %v904 = vpop.permute.xlu0 %903
        %v907 = vsel %vm698, %v902, 0
        %909 = vmatpush.msra.mxu0 0.0
        %910 = vmatpush.msra.mxu0 0.0
        %911 = vmatpush.msra.mxu0 0.0
        %912 = vmatpush.msra.mxu0 0.0
        %913 = vmatpush.msra.mxu0 0.0
        %914 = vmatpush.msra.mxu0 0.0
        %915 = vmatpush.msra.mxu0 0.0
        %916 = vmatpush.msra.mxu0 0.0
        %917 = vmatpush.msra.mxu0 0.0
        %918 = vmatpush.msra.mxu0 0.0
        %919 = vmatpush.msra.mxu0 0.0
        %920 = vmatpush.msra.mxu0 0.0
        %921 = vmatpush.msra.mxu0 0.0
        %922 = vmatpush.msra.mxu0 0.0
        %923 = vmatpush.msra.mxu0 0.0
        %924 = vmatpush.msra.mxu0 %v904
        %925 = vmatmul.f32.gmra.mxu0 %v907
        %v926 = vpop.f32.mrf.mxu0
        %v927 = vadd.f32 0.0, %v926
        %928 = vdwg.mxu0
        %929 = vrot.lane.b32.xlu0 %v632, 104
        %v930 = vpop.permute.xlu0 %929
        %931 = vrot.lane.b32.xlu0 %v664, 104
        %v932 = vpop.permute.xlu0 %931
        %v933 = vsel %vm698, %v930, 0
        %v935 = vsel %vm698, %v932, 0
        %937 = vmatpush.xpose.msra.mxu0 0.0
        %938 = vmatpush.xpose.msra.mxu0 0.0
        %939 = vmatpush.xpose.msra.mxu0 0.0
        %940 = vmatpush.xpose.msra.mxu0 0.0
        %941 = vmatpush.xpose.msra.mxu0 0.0
        %942 = vmatpush.xpose.msra.mxu0 0.0
        %943 = vmatpush.xpose.msra.mxu0 0.0
        %944 = vmatpush.xpose.msra.mxu0 0.0
        %945 = vmatpush.xpose.msra.mxu0 0.0
        %946 = vmatpush.xpose.msra.mxu0 0.0
        %947 = vmatpush.xpose.msra.mxu0 0.0
        %948 = vmatpush.xpose.msra.mxu0 0.0
        %949 = vmatpush.xpose.msra.mxu0 0.0
        %950 = vmatpush.xpose.msra.mxu0 0.0
        %951 = vmatpush.xpose.msra.mxu0 0.0
        %952 = vmatpush.xpose.msra.mxu0 %v935
        %953 = vmatmul.f32.gmra.mxu0 %v933
        %v954 = vpop.f32.mrf.mxu0
        %v955 = vadd.f32 0.0, %v954
        %956 = vdwg.mxu0
        %v957 = vsel %vm698, %v955, -inf
        %958 = vmax.xlane.f32.xlu0 %v957
        %v959 = vpop.xlane.xlu0 %958
        %v960 = vsub.f32 %v955, %v959
        %v961 = vmul.f32 %v960, 1.442695
        %v962 = vpow.pop %v961
        %v963 = vsel %vm698, %v962, 0.0
        %964 = vadd.xlane.f32.xlu0 %v963
        %v965 = vpop.xlane.xlu0 %964
        %v966 = vrcp.pop %v965
        %v967 = vmul.f32 %v965, %v966
        %v968 = vsub.f32 1.0, %v967
        %v969 = vmul.f32 %v966, %v968
        %v970 = vadd.f32 %v966, %v969
        %vm971 = vweird.f32 %v965
        %vm972 = vweird.f32 %v966
        %vm973 = vmor %vm971, %vm972
        %v974 = vsel %vm973, %v966, %v970
        %v975 = vand.u32 2147483647, %v965
        %vm976 = vcmp.eq.f32.partialorder %v975, 8.507059e+37
        %v977 = vand.u32 %v965, 2147483648
        %v978 = vor.u32 1.1754944e-38, %v977
        %v979 = vsel %vm976, %v978, %v974
        %v980 = vmul.f32 %v962, %v979
        %981 = vrot.lane.b32.xlu0 %v696, 104
        %v982 = vpop.permute.xlu0 %981
        %v985 = vsel %vm698, %v980, 0
        %987 = vmatpush.msra.mxu0 0.0
        %988 = vmatpush.msra.mxu0 0.0
        %989 = vmatpush.msra.mxu0 0.0
        %990 = vmatpush.msra.mxu0 0.0
        %991 = vmatpush.msra.mxu0 0.0
        %992 = vmatpush.msra.mxu0 0.0
        %993 = vmatpush.msra.mxu0 0.0
        %994 = vmatpush.msra.mxu0 0.0
        %995 = vmatpush.msra.mxu0 0.0
        %996 = vmatpush.msra.mxu0 0.0
        %997 = vmatpush.msra.mxu0 0.0
        %998 = vmatpush.msra.mxu0 0.0
        %999 = vmatpush.msra.mxu0 0.0
        %1000 = vmatpush.msra.mxu0 0.0
        %1001 = vmatpush.msra.mxu0 0.0
        %1002 = vmatpush.msra.mxu0 %v982
        %1003 = vmatmul.f32.gmra.mxu0 %v985
        %v1004 = vpop.f32.mrf.mxu0
        %v1005 = vadd.f32 0.0, %v1004
        %1006 = vdwg.mxu0
        %1008 = vrot.lane.b32.xlu0 %v849, 8
        %v1009 = vpop.permute.xlu0 %1008
        %1012 = vrot.lane.b32.xlu0 %v927, 16
        %v1013 = vpop.permute.xlu0 %1012
        %1016 = vrot.lane.b32.xlu0 %v1005, 24
        %v1017 = vpop.permute.xlu0 %1016
        %v1019 = vsel %vm698, %v770, %v1009
        %vm1020 = vcmask 130048
        %v1021 = vsel %vm1020, %v1019, %v1013
        %vm1022 = vcmask 195584
        %v1023 = vsel %vm1022, %v1021, %v1017
        %v1024 = vld [vmem:[%s7] sm:$0xff]
        %v1025 = vld [vmem:[%s7 + $0x8] sm:$0xff]
        %v1026 = vld [vmem:[%s7 + $0x10] sm:$0xff]
        %v1027 = vld [vmem:[%s7 + $0x18] sm:$0xff]
        %s1028 = scalar_lea.vmem %s8, 3
        %v1029 = vld [vmem:[%s1028] sm:$0x1]
        %v1031 = vperm.slane %v1029, 0
        %v1034 = vsel %vm560, %v1023, 0
        %1036 = vmatpush.msra.mxu0 0.0
        %1037 = vmatpush.msra.mxu0 0.0
        %1038 = vmatpush.msra.mxu0 0.0
        %1039 = vmatpush.msra.mxu0 0.0
        %1040 = vmatpush.msra.mxu0 0.0
        %1041 = vmatpush.msra.mxu0 0.0
        %1042 = vmatpush.msra.mxu0 0.0
        %1043 = vmatpush.msra.mxu0 0.0
        %1044 = vmatpush.msra.mxu0 0.0
        %1045 = vmatpush.msra.mxu0 0.0
        %1046 = vmatpush.msra.mxu0 0.0
        %1047 = vmatpush.msra.mxu0 0.0
        %1048 = vmatpush.msra.mxu0 %v1027
        %1049 = vmatpush.msra.mxu0 %v1026
        %1050 = vmatpush.msra.mxu0 %v1025
        %1051 = vmatpush.msra.mxu0 %v1024
        %1052 = vmatmul.f32.gmra.mxu0 %v1034
        %v1053 = vpop.f32.mrf.mxu0
        %v1054 = vadd.f32 %v1031, %v1053
        %1055 = vdwg.mxu0
        %v1056 = vadd.f32 %v599, %v1054
        %v1057 = vsel %vm560, %v1056, 0.0
        %1058 = vadd.xlane.f32.xlu0 %v1057
        %v1059 = vpop.xlane.xlu0 %1058
        %v1060 = vmul.f32 %v1059, %v570
        %v1061 = vsub.f32 %v1056, %v1060
        %v1062 = vmul.f32 %v1061, %v1061
        %v1063 = vsel %vm560, %v1062, 0.0
        %1064 = vadd.xlane.f32.xlu0 %v1063
        %v1065 = vpop.xlane.xlu0 %1064
        %v1066 = vmul.f32 %v1065, %v570
        %v1067 = vadd.f32 %v1066, 1e-05
        %v1068 = vrsqrt.pop %v1067
        %v1069 = vmul.f32 %v1068, %v1067
        %v1070 = vmul.f32 %v1069, %v1068
        %v1071 = vmul.f32 0.5, %v1070
        %v1072 = vsub.f32 1.5, %v1071
        %v1073 = vmul.f32 %v1068, %v1072
        %vm1074 = vweird.f32 %v1067
        %vm1075 = vweird.f32 %v1068
        %vm1076 = vmor %vm1074, %vm1075
        %v1077 = vsel %vm1076, %v1068, %v1073
        %v1078 = vmul.f32 %v1061, %v1077
        %s1079 = scalar_lea.vmem %s13, 1
        %v1080 = vld [vmem:[%s1079] sm:$0x1]
        %v1082 = vperm.slane %v1080, 0
        %v1084 = vmul.f32 %v1078, %v1082
        %s1085 = scalar_lea.vmem %s14, 1
        %v1086 = vld [vmem:[%s1085] sm:$0x1]
        %v1088 = vperm.slane %v1086, 0
        %v1090 = vadd.f32 %v1084, %v1088
        %v1091 = vld [vmem:[%s9] sm:$0xff]
        %v1092 = vld [vmem:[%s9 + $0x8] sm:$0xff]
        %v1093 = vld [vmem:[%s9 + $0x10] sm:$0xff]
        %v1094 = vld [vmem:[%s9 + $0x18] sm:$0xff]
        %v1095 = vld [vmem:[%s10] sm:$0x1]
        %v1097 = vperm.slane %v1095, 0
        %v1100 = vsel %vm560, %v1090, 0
        %1102 = vmatpush.msra.mxu0 0.0
        %1103 = vmatpush.msra.mxu0 0.0
        %1104 = vmatpush.msra.mxu0 0.0
        %1105 = vmatpush.msra.mxu0 0.0
        %1106 = vmatpush.msra.mxu0 0.0
        %1107 = vmatpush.msra.mxu0 0.0
        %1108 = vmatpush.msra.mxu0 0.0
        %1109 = vmatpush.msra.mxu0 0.0
        %1110 = vmatpush.msra.mxu0 0.0
        %1111 = vmatpush.msra.mxu0 0.0
        %1112 = vmatpush.msra.mxu0 0.0
        %1113 = vmatpush.msra.mxu0 0.0
        %1114 = vmatpush.msra.mxu0 %v1094
        %1115 = vmatpush.msra.mxu0 %v1093
        %1116 = vmatpush.msra.mxu0 %v1092
        %1117 = vmatpush.msra.mxu0 %v1091
        %1118 = vmatmul.f32.gmra.mxu0 %v1100
        %v1119 = vpop.f32.mrf.mxu0
        %v1120 = vadd.f32 %v1097, %v1119
        %1121 = vdwg.mxu0
        %v1122 = vmax.f32 %v1120, 0.0
        %v1123 = vld [vmem:[%s11] sm:$0xff]
        %v1124 = vld [vmem:[%s11 + $0x8] sm:$0xff]
        %v1125 = vld [vmem:[%s11 + $0x10] sm:$0xff]
        %v1126 = vld [vmem:[%s11 + $0x18] sm:$0xff]
        %v1127 = vld [vmem:[%s11 + $0x20] sm:$0xff]
        %v1128 = vld [vmem:[%s11 + $0x28] sm:$0xff]
        %v1129 = vld [vmem:[%s11 + $0x30] sm:$0xff]
        %v1130 = vld [vmem:[%s11 + $0x38] sm:$0xff]
        %v1131 = vld [vmem:[#allocation2] sm:$0x1]
        %v1133 = vperm.slane %v1131, 0
        %vm1135 = vcmask 523264
        %v1137 = vsel %vm1135, %v1122, 0
        %1139 = vmatpush.msra.mxu0 0.0
        %1140 = vmatpush.msra.mxu0 0.0
        %1141 = vmatpush.msra.mxu0 0.0
        %1142 = vmatpush.msra.mxu0 0.0
        %1143 = vmatpush.msra.mxu0 0.0
        %1144 = vmatpush.msra.mxu0 0.0
        %1145 = vmatpush.msra.mxu0 0.0
        %1146 = vmatpush.msra.mxu0 0.0
        %1147 = vmatpush.msra.mxu0 %v1130
        %1148 = vmatpush.msra.mxu0 %v1129
        %1149 = vmatpush.msra.mxu0 %v1128
        %1150 = vmatpush.msra.mxu0 %v1127
        %1151 = vmatpush.msra.mxu0 %v1126
        %1152 = vmatpush.msra.mxu0 %v1125
        %1153 = vmatpush.msra.mxu0 %v1124
        %1154 = vmatpush.msra.mxu0 %v1123
        %1155 = vmatmul.f32.gmra.mxu0 %v1137
        %v1156 = vpop.f32.mrf.mxu0
        %v1157 = vadd.f32 %v1133, %v1156
        %1158 = vdwg.mxu0
        %v1159 = vadd.f32 %v1090, %v1157
        %v1160 = vsel %vm560, %v1159, 0.0
        %1161 = vadd.xlane.f32.xlu0 %v1160
        %v1162 = vpop.xlane.xlu0 %1161
        %v1163 = vmul.f32 %v1162, %v570
        %v1164 = vsub.f32 %v1159, %v1163
        %v1165 = vmul.f32 %v1164, %v1164
        %v1166 = vsel %vm560, %v1165, 0.0
        %1167 = vadd.xlane.f32.xlu0 %v1166
        %v1168 = vpop.xlane.xlu0 %1167
        %v1169 = vmul.f32 %v1168, %v570
        %v1170 = vadd.f32 %v1169, 1e-05
        %v1171 = vrsqrt.pop %v1170
        %v1172 = vmul.f32 %v1171, %v1170
        %v1173 = vmul.f32 %v1172, %v1171
        %v1174 = vmul.f32 0.5, %v1173
        %v1175 = vsub.f32 1.5, %v1174
        %v1176 = vmul.f32 %v1171, %v1175
        %vm1177 = vweird.f32 %v1170
        %vm1178 = vweird.f32 %v1171
        %vm1179 = vmor %vm1177, %vm1178
        %v1180 = vsel %vm1179, %v1171, %v1176
        %v1181 = vmul.f32 %v1164, %v1180
        %s1182 = scalar_lea.vmem %s13, 2
        %v1183 = vld [vmem:[%s1182] sm:$0x1]
        %v1185 = vperm.slane %v1183, 0
        %v1187 = vmul.f32 %v1181, %v1185
        %s1188 = scalar_lea.vmem %s14, 2
        %v1189 = vld [vmem:[%s1188] sm:$0x1]
        %v1191 = vperm.slane %v1189, 0
        %v1193 = vadd.f32 %v1187, %v1191
        %v1194 = vsel %vm560, %v1193, 0.0
        %1195 = vadd.xlane.f32.xlu0 %v1194
        %v1196 = vpop.xlane.xlu0 %1195
        %v1197 = vmul.f32 %v1196, %v570
        %v1198 = vsub.f32 %v1193, %v1197
        %v1199 = vmul.f32 %v1198, %v1198
        %v1200 = vsel %vm560, %v1199, 0.0
        %1201 = vadd.xlane.f32.xlu0 %v1200
        %v1202 = vpop.xlane.xlu0 %1201
        %v1203 = vmul.f32 %v1202, %v570
        %v1204 = vadd.f32 %v1203, 1e-05
        %v1205 = vrsqrt.pop %v1204
        %v1206 = vmul.f32 %v1205, %v1204
        %v1207 = vmul.f32 %v1206, %v1205
        %v1208 = vmul.f32 0.5, %v1207
        %v1209 = vsub.f32 1.5, %v1208
        %v1210 = vmul.f32 %v1205, %v1209
        %vm1211 = vweird.f32 %v1204
        %vm1212 = vweird.f32 %v1205
        %vm1213 = vmor %vm1211, %vm1212
        %v1214 = vsel %vm1213, %v1205, %v1210
        %v1215 = vmul.f32 %v1198, %v1214
        %s1216 = scalar_lea.vmem %s13, 3
        %v1217 = vld [vmem:[%s1216] sm:$0x1]
        %v1219 = vperm.slane %v1217, 0
        %v1221 = vmul.f32 %v1215, %v1219
        %s1222 = scalar_lea.vmem %s14, 3
        %v1223 = vld [vmem:[%s1222] sm:$0x1]
        %v1225 = vperm.slane %v1223, 0
        %v1227 = vadd.f32 %v1221, %v1225
        %1228 = vst.msk [vmem:[%s555] sm:$0xff] %vm560, %v1227
        %p1229 = scmp.lt.s32.totalorder %s27, 1
        %s1230 = scalar_select %p1229, %s27, 1
        %s1231 = smul.addr %s1230, 8
        %s1232 = scalar_lea.vmem %s15, %s1231
        // Predicated region
        $region85: #{decoder_forward.3} parent=79 // pred_check
          %p1233 = pneg %p380
        $region86: #{decoder_forward.3} parent=79 // pred_check_branch
          %1235 = sbr.rel (%p1233) target = $region88
        $region87: #{decoder_forward.3} parent=79 // pred_region
          _
        $region88: #{decoder_forward.3} parent=79 // pred_fallthru
          _
      $region80: #{decoder_forward.3} parent=5 // pred_fallthru
        _
      %p1236 = scmp.le.s32.totalorder 2, %s22
      // Predicated region
      $region89: #{decoder_forward.3} parent=5 // pred_check
        %p1237 = pneg %p1236
      $region90: #{decoder_forward.3} parent=5 // pred_check_branch
        %1239 = sbr.rel (%p1237) target = $region92
      $region91: #{decoder_forward.3} parent=5 // pred_region
        %s1240 = ssub.s32 %s22, 2
        // Predicated region
        $region93: #{decoder_forward.3} parent=91 // pred_check
          %p1241 = pneg %p386
        $region94: #{decoder_forward.3} parent=91 // pred_check_branch
          %1243 = sbr.rel (%p1241) target = $region96
        $region95: #{decoder_forward.3} parent=91 // pred_region
          %p1244 = scmp.lt.s32.totalorder %s28, 1
          %s1245 = scalar_select %p1244, %s28, 1
          %s1246 = smul.addr %s1245, 8
          %s1247 = scalar_lea.vmem %s15, %s1246
        $region96: #{decoder_forward.3} parent=91 // pred_fallthru
          _
      $region92: #{decoder_forward.3} parent=5 // pred_fallthru
        _
    $region6: #{decoder_forward.3} parent=1 // loop_footer
      %s26 = sadd.s32 1, %s22
    $region7: #{decoder_forward.3} parent=1 // loop_footer_branch
      %21 = sbr.rel target = $region3
    $region8: #{decoder_forward.3} parent=1 // loop_exit
      _
    %1248 = vsyncpa [#allocation3], 1
    %s1249 = scalar_lea.sflag [#allocation3], 1
    %1250 = vsyncpa %s1249, 1

// kernel: decoder_forward.2
$region0: #{decoder_forward.2}
  #allocation0 [shape = 'u32[]', space=smem, size = 0x4, offset = 0x4, fixed_abs, tag = 'smem constant byte address 0x4 - core index']
  #allocation1 [shape = 'u32[72,128]{1,0:T(1,128)}', space=vmem, size = 0x9000, scoped, tag = 'internal scratch']
  %s0 = inlined_call_operand.vmem [shape: f32[2,8,32], index: 0, kind: input, shape index: {}]
  %s1 = inlined_call_operand.vmem [shape: f32[2,8,32], index: 1, kind: input, shape index: {}]
  %s2 = inlined_call_operand.vmem [shape: f32[2,8,32], index: 2, kind: input, shape index: {}]
  %s3 = inlined_call_operand.vmem [shape: f32[2,8,32], index: 3, kind: input, shape index: {}]
  %s4 = inlined_call_operand.vmem [shape: f32[32,32], index: 4, kind: input, shape index: {}]
  %s5 = inlined_call_operand.vmem [shape: f32[32,32], index: 5, kind: input, shape index: {}]
  %s6 = inlined_call_operand.vmem [shape: f32[32,32], index: 6, kind: input, shape index: {}]
  %s7 = inlined_call_operand.vmem [shape: f32[32,32], index: 7, kind: input, shape index: {}]
  %s8 = inlined_call_operand.vmem [shape: f32[4,1,32], index: 8, kind: input, shape index: {}]
  %s9 = inlined_call_operand.vmem [shape: f32[32,64], index: 9, kind: input, shape index: {}]
  %s10 = inlined_call_operand.vmem [shape: f32[1,64], index: 10, kind: input, shape index: {}]
  %s11 = inlined_call_operand.vmem [shape: f32[64,32], index: 11, kind: input, shape index: {}]
  %s12 = inlined_call_operand.vmem [shape: f32[1,32], index: 12, kind: input, shape index: {}]
  %s13 = inlined_call_operand.vmem [shape: f32[4,1,32], index: 13, kind: input, shape index: {}]
  %s14 = inlined_call_operand.vmem [shape: f32[4,1,32], index: 14, kind: input, shape index: {}]
  %s15 = inlined_call_operand.vmem [shape: f32[2,8,32], index: 15, kind: output, shape index: {}]
  %s16 = sld [smem:[#allocation0]]
  $region93: #{decoder_forward.2} parent=0
    _
  %s18 = ssub.s32 1, %s16
  %s19 = scalar_select 0, %s18, %s16
  loop: start=0, step=1, limit=4
  $region2: #{decoder_forward.2} parent=0 // loop_pre_header
    _
  $region3: #{decoder_forward.2} parent=0 // loop_header
    %s21 = sphi 0, %s25
    %p22 = scmp.ge.s32.totalorder %s21, 4
    %s31 = sphi 0, %s33
    %s34 = sphi 0, %s31
    %s35 = sphi 0, %s34
    %s51 = sphi 0, %s35
    %s57 = sphi 0, %s59
    %s60 = sphi 0, %s57
    %s61 = sphi 0, %s60
    %s77 = sphi 0, %s61
    %s83 = sphi 0, %s85
    %s86 = sphi 0, %s83
    %s87 = sphi 0, %s86
    %s103 = sphi 0, %s87
    %s109 = sphi 0, %s111
    %s112 = sphi 0, %s109
    %s113 = sphi 0, %s112
    %s129 = sphi 0, %s113
    %s133 = sphi 0, %s133
    %s135 = sphi 0, %s133
    %s136 = sphi 0, %s135
    %s150 = sphi 0, %s136
    %s154 = sphi 0, %s154
    %s156 = sphi 0, %s154
    %s157 = sphi 0, %s156
    %s171 = sphi 0, %s157
    %s175 = sphi 0, %s175
    %s177 = sphi 0, %s175
    %s178 = sphi 0, %s177
    %s192 = sphi 0, %s178
    %s196 = sphi 0, %s196
    %s198 = sphi 0, %s196
    %s199 = sphi 0, %s198
    %s213 = sphi 0, %s199
    %s217 = sphi 0, %s217
    %s219 = sphi 0, %s217
    %s220 = sphi 0, %s219
    %s234 = sphi 0, %s220
    %s238 = sphi 0, %s238
    %s240 = sphi 0, %s238
    %s241 = sphi 0, %s240
    %s255 = sphi 0, %s241
    %s259 = sphi 0, %s259
    %s261 = sphi 0, %s259
    %s262 = sphi 0, %s261
    %s276 = sphi 0, %s262
    %s280 = sphi 0, %s280
    %s282 = sphi 0, %s280
    %s283 = sphi 0, %s282
    %s297 = sphi 0, %s283
    %s301 = sphi 0, %s301
    %s303 = sphi 0, %s301
    %s304 = sphi 0, %s303
    %s318 = sphi 0, %s304
    %s322 = sphi 0, %s322
    %s324 = sphi 0, %s322
    %s325 = sphi 0, %s324
    %s339 = sphi 0, %s325
    %s343 = sphi 0, %s343
    %s345 = sphi 0, %s343
    %s346 = sphi 0, %s345
    %s360 = sphi 0, %s346
    %s366 = sphi 0, %s368
    %s369 = sphi 0, %s366
    %s370 = sphi 0, %s369
    %s386 = sphi 0, %s370
  $region4: #{decoder_forward.2} parent=0 // loop_header_branch
    %24 = sbr.rel (%p22) target = $region8
  $region5: #{decoder_forward.2} parent=0 // loop_body
    %s26 = ssub.s32 %s21, 1
    %s27 = ssub.s32 %s21, 2
    %s28 = sadd.s32 %s21, 1
    %s29 = ssub.s32 %s21, %s28
    %p30 = scmp.eq.s32.totalorder %s29, 0
    %s32 = sadd.s32 %s31, 1
    %s33 = scalar_select %p30, %s31, %s32
    %p36 = pneg %p30
    %p37 = scmp.eq.s32.totalorder %s21, 1
    %p38 = por %p36, %p37
    %p39 = scmp.ne.s32.totalorder %s31, %s34
    %p40 = scmp.eq.s32.totalorder %s21, 0
    %p41 = por %p39, %p40
    %p42 = scmp.ne.s32.totalorder %s31, %s34
    %p43 = scmp.eq.s32.totalorder %s26, 1
    %p44 = por %p42, %p43
    %p45 = scmp.ne.s32.totalorder %s34, %s35
    %p46 = scmp.eq.s32.totalorder %s26, 0
    %p47 = por %p45, %p46
    %p48 = scmp.ne.s32.totalorder %s34, %s35
    %p49 = scmp.eq.s32.totalorder %s27, 1
    %p50 = por %p48, %p49
    %p52 = scmp.ne.s32.totalorder %s35, %s51
    %p53 = scmp.eq.s32.totalorder %s27, 0
    %p54 = por %p52, %p53
    %s55 = ssub.s32 %s21, %s28
    %p56 = scmp.eq.s32.totalorder %s55, 0
    %s58 = sadd.s32 %s57, 1
    %s59 = scalar_select %p56, %s57, %s58
    %p62 = pneg %p56
    %p63 = scmp.eq.s32.totalorder %s21, 1
    %p64 = por %p62, %p63
    %p65 = scmp.ne.s32.totalorder %s57, %s60
    %p66 = scmp.eq.s32.totalorder %s21, 0
    %p67 = por %p65, %p66
    %p68 = scmp.ne.s32.totalorder %s57, %s60
    %p69 = scmp.eq.s32.totalorder %s26, 1
    %p70 = por %p68, %p69
    %p71 = scmp.ne.s32.totalorder %s60, %s61
    %p72 = scmp.eq.s32.totalorder %s26, 0
    %p73 = por %p71, %p72
    %p74 = scmp.ne.s32.totalorder %s60, %s61
    %p75 = scmp.eq.s32.totalorder %s27, 1
    %p76 = por %p74, %p75
    %p78 = scmp.ne.s32.totalorder %s61, %s77
    %p79 = scmp.eq.s32.totalorder %s27, 0
    %p80 = por %p78, %p79
    %s81 = ssub.s32 %s21, %s28
    %p82 = scmp.eq.s32.totalorder %s81, 0
    %s84 = sadd.s32 %s83, 1
    %s85 = scalar_select %p82, %s83, %s84
    %p88 = pneg %p82
    %p89 = scmp.eq.s32.totalorder %s21, 1
    %p90 = por %p88, %p89
    %p91 = scmp.ne.s32.totalorder %s83, %s86
    %p92 = scmp.eq.s32.totalorder %s21, 0
    %p93 = por %p91, %p92
    %p94 = scmp.ne.s32.totalorder %s83, %s86
    %p95 = scmp.eq.s32.totalorder %s26, 1
    %p96 = por %p94, %p95
    %p97 = scmp.ne.s32.totalorder %s86, %s87
    %p98 = scmp.eq.s32.totalorder %s26, 0
    %p99 = por %p97, %p98
    %p100 = scmp.ne.s32.totalorder %s86, %s87
    %p101 = scmp.eq.s32.totalorder %s27, 1
    %p102 = por %p100, %p101
    %p104 = scmp.ne.s32.totalorder %s87, %s103
    %p105 = scmp.eq.s32.totalorder %s27, 0
    %p106 = por %p104, %p105
    %s107 = ssub.s32 %s21, %s28
    %p108 = scmp.eq.s32.totalorder %s107, 0
    %s110 = sadd.s32 %s109, 1
    %s111 = scalar_select %p108, %s109, %s110
    %p114 = pneg %p108
    %p115 = scmp.eq.s32.totalorder %s21, 1
    %p116 = por %p114, %p115
    %p117 = scmp.ne.s32.totalorder %s109, %s112
    %p118 = scmp.eq.s32.totalorder %s21, 0
    %p119 = por %p117, %p118
    %p120 = scmp.ne.s32.totalorder %s109, %s112
    %p121 = scmp.eq.s32.totalorder %s26, 1
    %p122 = por %p120, %p121
    %p123 = scmp.ne.s32.totalorder %s112, %s113
    %p124 = scmp.eq.s32.totalorder %s26, 0
    %p125 = por %p123, %p124
    %p126 = scmp.ne.s32.totalorder %s112, %s113
    %p127 = scmp.eq.s32.totalorder %s27, 1
    %p128 = por %p126, %p127
    %p130 = scmp.ne.s32.totalorder %s113, %s129
    %p131 = scmp.eq.s32.totalorder %s27, 0
    %p132 = por %p130, %p131
    %s134 = sadd.s32 %s133, 1
    %p137 = scmp.eq.s32.totalorder %s21, 1
    %p138 = scmp.ne.s32.totalorder %s133, %s135
    %p139 = scmp.eq.s32.totalorder %s21, 0
    %p140 = por %p138, %p139
    %p141 = scmp.ne.s32.totalorder %s133, %s135
    %p142 = scmp.eq.s32.totalorder %s26, 1
    %p143 = por %p141, %p142
    %p144 = scmp.ne.s32.totalorder %s135, %s136
    %p145 = scmp.eq.s32.totalorder %s26, 0
    %p146 = por %p144, %p145
    %p147 = scmp.ne.s32.totalorder %s135, %s136
    %p148 = scmp.eq.s32.totalorder %s27, 1
    %p149 = por %p147, %p148
    %p151 = scmp.ne.s32.totalorder %s136, %s150
    %p152 = scmp.eq.s32.totalorder %s27, 0
    %p153 = por %p151, %p152
    %s155 = sadd.s32 %s154, 1
    %p158 = scmp.eq.s32.totalorder %s21, 1
    %p159 = scmp.ne.s32.totalorder %s154, %s156
    %p160 = scmp.eq.s32.totalorder %s21, 0
    %p161 = por %p159, %p160
    %p162 = scmp.ne.s32.totalorder %s154, %s156
    %p163 = scmp.eq.s32.totalorder %s26, 1
    %p164 = por %p162, %p163
    %p165 = scmp.ne.s32.totalorder %s156, %s157
    %p166 = scmp.eq.s32.totalorder %s26, 0
    %p167 = por %p165, %p166
    %p168 = scmp.ne.s32.totalorder %s156, %s157
    %p169 = scmp.eq.s32.totalorder %s27, 1
    %p170 = por %p168, %p169
    %p172 = scmp.ne.s32.totalorder %s157, %s171
    %p173 = scmp.eq.s32.totalorder %s27, 0
    %p174 = por %p172, %p173
    %s176 = sadd.s32 %s175, 1
    %p179 = scmp.eq.s32.totalorder %s21, 1
    %p180 = scmp.ne.s32.totalorder %s175, %s177
    %p181 = scmp.eq.s32.totalorder %s21, 0
    %p182 = por %p180, %p181
    %p183 = scmp.ne.s32.totalorder %s175, %s177
    %p184 = scmp.eq.s32.totalorder %s26, 1
    %p185 = por %p183, %p184
    %p186 = scmp.ne.s32.totalorder %s177, %s178
    %p187 = scmp.eq.s32.totalorder %s26, 0
    %p188 = por %p186, %p187
    %p189 = scmp.ne.s32.totalorder %s177, %s178
    %p190 = scmp.eq.s32.totalorder %s27, 1
    %p191 = por %p189, %p190
    %p193 = scmp.ne.s32.totalorder %s178, %s192
    %p194 = scmp.eq.s32.totalorder %s27, 0
    %p195 = por %p193, %p194
    %s197 = sadd.s32 %s196, 1
    %p200 = scmp.eq.s32.totalorder %s21, 1
    %p201 = scmp.ne.s32.totalorder %s196, %s198
    %p202 = scmp.eq.s32.totalorder %s21, 0
    %p203 = por %p201, %p202
    %p204 = scmp.ne.s32.totalorder %s196, %s198
    %p205 = scmp.eq.s32.totalorder %s26, 1
    %p206 = por %p204, %p205
    %p207 = scmp.ne.s32.totalorder %s198, %s199
    %p208 = scmp.eq.s32.totalorder %s26, 0
    %p209 = por %p207, %p208
    %p210 = scmp.ne.s32.totalorder %s198, %s199
    %p211 = scmp.eq.s32.totalorder %s27, 1
    %p212 = por %p210, %p211
    %p214 = scmp.ne.s32.totalorder %s199, %s213
    %p215 = scmp.eq.s32.totalorder %s27, 0
    %p216 = por %p214, %p215
    %s218 = sadd.s32 %s217, 1
    %p221 = scmp.eq.s32.totalorder %s21, 1
    %p222 = scmp.ne.s32.totalorder %s217, %s219
    %p223 = scmp.eq.s32.totalorder %s21, 0
    %p224 = por %p222, %p223
    %p225 = scmp.ne.s32.totalorder %s217, %s219
    %p226 = scmp.eq.s32.totalorder %s26, 1
    %p227 = por %p225, %p226
    %p228 = scmp.ne.s32.totalorder %s219, %s220
    %p229 = scmp.eq.s32.totalorder %s26, 0
    %p230 = por %p228, %p229
    %p231 = scmp.ne.s32.totalorder %s219, %s220
    %p232 = scmp.eq.s32.totalorder %s27, 1
    %p233 = por %p231, %p232
    %p235 = scmp.ne.s32.totalorder %s220, %s234
    %p236 = scmp.eq.s32.totalorder %s27, 0
    %p237 = por %p235, %p236
    %s239 = sadd.s32 %s238, 1
    %p242 = scmp.eq.s32.totalorder %s21, 1
    %p243 = scmp.ne.s32.totalorder %s238, %s240
    %p244 = scmp.eq.s32.totalorder %s21, 0
    %p245 = por %p243, %p244
    %p246 = scmp.ne.s32.totalorder %s238, %s240
    %p247 = scmp.eq.s32.totalorder %s26, 1
    %p248 = por %p246, %p247
    %p249 = scmp.ne.s32.totalorder %s240, %s241
    %p250 = scmp.eq.s32.totalorder %s26, 0
    %p251 = por %p249, %p250
    %p252 = scmp.ne.s32.totalorder %s240, %s241
    %p253 = scmp.eq.s32.totalorder %s27, 1
    %p254 = por %p252, %p253
    %p256 = scmp.ne.s32.totalorder %s241, %s255
    %p257 = scmp.eq.s32.totalorder %s27, 0
    %p258 = por %p256, %p257
    %s260 = sadd.s32 %s259, 1
    %p263 = scmp.eq.s32.totalorder %s21, 1
    %p264 = scmp.ne.s32.totalorder %s259, %s261
    %p265 = scmp.eq.s32.totalorder %s21, 0
    %p266 = por %p264, %p265
    %p267 = scmp.ne.s32.totalorder %s259, %s261
    %p268 = scmp.eq.s32.totalorder %s26, 1
    %p269 = por %p267, %p268
    %p270 = scmp.ne.s32.totalorder %s261, %s262
    %p271 = scmp.eq.s32.totalorder %s26, 0
    %p272 = por %p270, %p271
    %p273 = scmp.ne.s32.totalorder %s261, %s262
    %p274 = scmp.eq.s32.totalorder %s27, 1
    %p275 = por %p273, %p274
    %p277 = scmp.ne.s32.totalorder %s262, %s276
    %p278 = scmp.eq.s32.totalorder %s27, 0
    %p279 = por %p277, %p278
    %s281 = sadd.s32 %s280, 1
    %p284 = scmp.eq.s32.totalorder %s21, 1
    %p285 = scmp.ne.s32.totalorder %s280, %s282
    %p286 = scmp.eq.s32.totalorder %s21, 0
    %p287 = por %p285, %p286
    %p288 = scmp.ne.s32.totalorder %s280, %s282
    %p289 = scmp.eq.s32.totalorder %s26, 1
    %p290 = por %p288, %p289
    %p291 = scmp.ne.s32.totalorder %s282, %s283
    %p292 = scmp.eq.s32.totalorder %s26, 0
    %p293 = por %p291, %p292
    %p294 = scmp.ne.s32.totalorder %s282, %s283
    %p295 = scmp.eq.s32.totalorder %s27, 1
    %p296 = por %p294, %p295
    %p298 = scmp.ne.s32.totalorder %s283, %s297
    %p299 = scmp.eq.s32.totalorder %s27, 0
    %p300 = por %p298, %p299
    %s302 = sadd.s32 %s301, 1
    %p305 = scmp.eq.s32.totalorder %s21, 1
    %p306 = scmp.ne.s32.totalorder %s301, %s303
    %p307 = scmp.eq.s32.totalorder %s21, 0
    %p308 = por %p306, %p307
    %p309 = scmp.ne.s32.totalorder %s301, %s303
    %p310 = scmp.eq.s32.totalorder %s26, 1
    %p311 = por %p309, %p310
    %p312 = scmp.ne.s32.totalorder %s303, %s304
    %p313 = scmp.eq.s32.totalorder %s26, 0
    %p314 = por %p312, %p313
    %p315 = scmp.ne.s32.totalorder %s303, %s304
    %p316 = scmp.eq.s32.totalorder %s27, 1
    %p317 = por %p315, %p316
    %p319 = scmp.ne.s32.totalorder %s304, %s318
    %p320 = scmp.eq.s32.totalorder %s27, 0
    %p321 = por %p319, %p320
    %s323 = sadd.s32 %s322, 1
    %p326 = scmp.eq.s32.totalorder %s21, 1
    %p327 = scmp.ne.s32.totalorder %s322, %s324
    %p328 = scmp.eq.s32.totalorder %s21, 0
    %p329 = por %p327, %p328
    %p330 = scmp.ne.s32.totalorder %s322, %s324
    %p331 = scmp.eq.s32.totalorder %s26, 1
    %p332 = por %p330, %p331
    %p333 = scmp.ne.s32.totalorder %s324, %s325
    %p334 = scmp.eq.s32.totalorder %s26, 0
    %p335 = por %p333, %p334
    %p336 = scmp.ne.s32.totalorder %s324, %s325
    %p337 = scmp.eq.s32.totalorder %s27, 1
    %p338 = por %p336, %p337
    %p340 = scmp.ne.s32.totalorder %s325, %s339
    %p341 = scmp.eq.s32.totalorder %s27, 0
    %p342 = por %p340, %p341
    %s344 = sadd.s32 %s343, 1
    %p347 = scmp.eq.s32.totalorder %s21, 1
    %p348 = scmp.ne.s32.totalorder %s343, %s345
    %p349 = scmp.eq.s32.totalorder %s21, 0
    %p350 = por %p348, %p349
    %p351 = scmp.ne.s32.totalorder %s343, %s345
    %p352 = scmp.eq.s32.totalorder %s26, 1
    %p353 = por %p351, %p352
    %p354 = scmp.ne.s32.totalorder %s345, %s346
    %p355 = scmp.eq.s32.totalorder %s26, 0
    %p356 = por %p354, %p355
    %p357 = scmp.ne.s32.totalorder %s345, %s346
    %p358 = scmp.eq.s32.totalorder %s27, 1
    %p359 = por %p357, %p358
    %p361 = scmp.ne.s32.totalorder %s346, %s360
    %p362 = scmp.eq.s32.totalorder %s27, 0
    %p363 = por %p361, %p362
    %s364 = ssub.s32 %s21, %s28
    %p365 = scmp.eq.s32.totalorder %s364, 0
    %s367 = sadd.s32 %s366, 1
    %s368 = scalar_select %p365, %s366, %s367
    %p371 = pneg %p365
    %p372 = scmp.eq.s32.totalorder %s21, 1
    %p373 = por %p371, %p372
    %p374 = scmp.ne.s32.totalorder %s366, %s369
    %p375 = scmp.eq.s32.totalorder %s21, 0
    %p376 = por %p374, %p375
    %p377 = scmp.ne.s32.totalorder %s366, %s369
    %p378 = scmp.eq.s32.totalorder %s26, 1
    %p379 = por %p377, %p378
    %p380 = scmp.ne.s32.totalorder %s369, %s370
    %p381 = scmp.eq.s32.totalorder %s26, 0
    %p382 = por %p380, %p381
    %p383 = scmp.ne.s32.totalorder %s369, %s370
    %p384 = scmp.eq.s32.totalorder %s27, 1
    %p385 = por %p383, %p384
    %p387 = scmp.ne.s32.totalorder %s370, %s386
    %p388 = scmp.eq.s32.totalorder %s27, 0
    %p389 = por %p387, %p388
    %p390 = scmp.le.s32.totalorder 1, %s21
    %p391 = scmp.lt.s32.totalorder %s21, 3
    %p392 = pnand %p390, %p391
    %p393 = pneg %p392
    // Predicated region
    $region9: #{decoder_forward.2} parent=5 // pred_check
      _
    $region10: #{decoder_forward.2} parent=5 // pred_check_branch
      %395 = sbr.rel (%p392) target = $region12
    $region11: #{decoder_forward.2} parent=5 // pred_region
      %s396 = ssub.s32 %s21, 1
      // Predicated region
      $region13: #{decoder_forward.2} parent=11 // pred_check
        %p397 = pneg %p146
      $region14: #{decoder_forward.2} parent=11 // pred_check_branch
        %399 = sbr.rel (%p397) target = $region16
      $region15: #{decoder_forward.2} parent=11 // pred_region
        _
      $region16: #{decoder_forward.2} parent=11 // pred_fallthru
        _
      // Predicated region
      $region17: #{decoder_forward.2} parent=11 // pred_check
        %p400 = pneg %p167
      $region18: #{decoder_forward.2} parent=11 // pred_check_branch
        %402 = sbr.rel (%p400) target = $region20
      $region19: #{decoder_forward.2} parent=11 // pred_region
        _
      $region20: #{decoder_forward.2} parent=11 // pred_fallthru
        _
      // Predicated region
      $region21: #{decoder_forward.2} parent=11 // pred_check
        %p403 = pneg %p188
      $region22: #{decoder_forward.2} parent=11 // pred_check_branch
        %405 = sbr.rel (%p403) target = $region24
      $region23: #{decoder_forward.2} parent=11 // pred_region
        _
      $region24: #{decoder_forward.2} parent=11 // pred_fallthru
        _
      // Predicated region
      $region25: #{decoder_forward.2} parent=11 // pred_check
        %p406 = pneg %p209
      $region26: #{decoder_forward.2} parent=11 // pred_check_branch
        %408 = sbr.rel (%p406) target = $region28
      $region27: #{decoder_forward.2} parent=11 // pred_region
        _
      $region28: #{decoder_forward.2} parent=11 // pred_fallthru
        _
      // Predicated region
      $region29: #{decoder_forward.2} parent=11 // pred_check
        %p409 = pneg %p230
      $region30: #{decoder_forward.2} parent=11 // pred_check_branch
        %411 = sbr.rel (%p409) target = $region32
      $region31: #{decoder_forward.2} parent=11 // pred_region
        _
      $region32: #{decoder_forward.2} parent=11 // pred_fallthru
        _
      // Predicated region
      $region33: #{decoder_forward.2} parent=11 // pred_check
        %p412 = pneg %p251
      $region34: #{decoder_forward.2} parent=11 // pred_check_branch
        %414 = sbr.rel (%p412) target = $region36
      $region35: #{decoder_forward.2} parent=11 // pred_region
        _
      $region36: #{decoder_forward.2} parent=11 // pred_fallthru
        _
      // Predicated region
      $region37: #{decoder_forward.2} parent=11 // pred_check
        %p415 = pneg %p272
      $region38: #{decoder_forward.2} parent=11 // pred_check_branch
        %417 = sbr.rel (%p415) target = $region40
      $region39: #{decoder_forward.2} parent=11 // pred_region
        _
      $region40: #{decoder_forward.2} parent=11 // pred_fallthru
        _
      // Predicated region
      $region41: #{decoder_forward.2} parent=11 // pred_check
        %p418 = pneg %p293
      $region42: #{decoder_forward.2} parent=11 // pred_check_branch
        %420 = sbr.rel (%p418) target = $region44
      $region43: #{decoder_forward.2} parent=11 // pred_region
        _
      $region44: #{decoder_forward.2} parent=11 // pred_fallthru
        _
      // Predicated region
      $region45: #{decoder_forward.2} parent=11 // pred_check
        %p421 = pneg %p314
      $region46: #{decoder_forward.2} parent=11 // pred_check_branch
        %423 = sbr.rel (%p421) target = $region48
      $region47: #{decoder_forward.2} parent=11 // pred_region
        _
      $region48: #{decoder_forward.2} parent=11 // pred_fallthru
        _
      // Predicated region
      $region49: #{decoder_forward.2} parent=11 // pred_check
        %p424 = pneg %p335
      $region50: #{decoder_forward.2} parent=11 // pred_check_branch
        %426 = sbr.rel (%p424) target = $region52
      $region51: #{decoder_forward.2} parent=11 // pred_region
        _
      $region52: #{decoder_forward.2} parent=11 // pred_fallthru
        _
      // Predicated region
      $region53: #{decoder_forward.2} parent=11 // pred_check
        %p427 = pneg %p356
      $region54: #{decoder_forward.2} parent=11 // pred_check_branch
        %429 = sbr.rel (%p427) target = $region56
      $region55: #{decoder_forward.2} parent=11 // pred_region
        _
      $region56: #{decoder_forward.2} parent=11 // pred_fallthru
        _
    $region12: #{decoder_forward.2} parent=5 // pred_fallthru
      _
    %p430 = scmp.lt.s32.totalorder %s21, 2
    // Predicated region
    $region57: #{decoder_forward.2} parent=5 // pred_check
      %p431 = pneg %p430
    $region58: #{decoder_forward.2} parent=5 // pred_check_branch
      %433 = sbr.rel (%p431) target = $region60
    $region59: #{decoder_forward.2} parent=5 // pred_region
      // Predicated region
      $region61: #{decoder_forward.2} parent=59 // pred_check
        %p434 = pneg %p41
      $region62: #{decoder_forward.2} parent=59 // pred_check_branch
        %436 = sbr.rel (%p434) target = $region64
      $region63: #{decoder_forward.2} parent=59 // pred_region
        %p437 = scmp.lt.s32.totalorder %s21, 1
        %s438 = scalar_select %p437, %s21, 1
        %s439 = smul.addr %s438, 8
        %s440 = scalar_lea.vmem %s0, %s439
      $region64: #{decoder_forward.2} parent=59 // pred_fallthru
        _
      // Predicated region
      $region65: #{decoder_forward.2} parent=59 // pred_check
        %p441 = pneg %p67
      $region66: #{decoder_forward.2} parent=59 // pred_check_branch
        %443 = sbr.rel (%p441) target = $region68
      $region67: #{decoder_forward.2} parent=59 // pred_region
        %p444 = scmp.lt.s32.totalorder %s21, 1
        %s445 = scalar_select %p444, %s21, 1
        %s446 = smul.addr %s445, 8
        %s447 = scalar_lea.vmem %s1, %s446
      $region68: #{decoder_forward.2} parent=59 // pred_fallthru
        _
      // Predicated region
      $region69: #{decoder_forward.2} parent=59 // pred_check
        %p448 = pneg %p93
      $region70: #{decoder_forward.2} parent=59 // pred_check_branch
        %450 = sbr.rel (%p448) target = $region72
      $region71: #{decoder_forward.2} parent=59 // pred_region
        %p451 = scmp.lt.s32.totalorder %s21, 1
        %s452 = scalar_select %p451, %s21, 1
        %s453 = smul.addr %s452, 8
        %s454 = scalar_lea.vmem %s2, %s453
      $region72: #{decoder_forward.2} parent=59 // pred_fallthru
        _
      // Predicated region
      $region73: #{decoder_forward.2} parent=59 // pred_check
        %p455 = pneg %p119
      $region74: #{decoder_forward.2} parent=59 // pred_check_branch
        %457 = sbr.rel (%p455) target = $region76
      $region75: #{decoder_forward.2} parent=59 // pred_region
        %p458 = scmp.lt.s32.totalorder %s21, 1
        %s459 = scalar_select %p458, %s21, 1
        %s460 = smul.addr %s459, 8
        %s461 = scalar_lea.vmem %s3, %s460
      $region76: #{decoder_forward.2} parent=59 // pred_fallthru
        _
    $region60: #{decoder_forward.2} parent=5 // pred_fallthru
      _
    %p462 = scmp.le.s32.totalorder 1, %s21
    %p463 = scmp.lt.s32.totalorder %s21, 3
    %p464 = pnand %p462, %p463
    %p465 = pneg %p464
    // Predicated region
    $region77: #{decoder_forward.2} parent=5 // pred_check
      _
    $region78: #{decoder_forward.2} parent=5 // pred_check_branch
      %467 = sbr.rel (%p464) target = $region80
    $region79: #{decoder_forward.2} parent=5 // pred_region
      %s468 = ssub.s32 %s21, 1
      %p469 = scmp.lt.s32.totalorder %s26, 1
      %s470 = scalar_select %p469, %s26, 1
      %s471 = smul.addr %s470, 8
      %s472 = scalar_lea.vmem %s0, %s471
      %p473 = pneg %p47
      %p474 = pneg %p44
      %p475 = scmp.lt.s32.totalorder %s26, 1
      %s476 = scalar_select %p475, %s26, 1
      %s477 = smul.addr %s476, 8
      %s478 = scalar_lea.vmem %s1, %s477
      %p479 = pneg %p73
      %p480 = pneg %p70
      %p481 = scmp.lt.s32.totalorder %s26, 1
      %s482 = scalar_select %p481, %s26, 1
      %s483 = smul.addr %s482, 8
      %s484 = scalar_lea.vmem %s2, %s483
      %p485 = pneg %p99
      %p486 = pneg %p96
      %p487 = scmp.lt.s32.totalorder %s26, 1
      %s488 = scalar_select %p487, %s26, 1
      %s489 = smul.addr %s488, 8
      %s490 = scalar_lea.vmem %s3, %s489
      %p491 = pneg %p125
      %p492 = pneg %p122
      %p493 = pneg %p146
      %p494 = pneg %p143
      %p495 = pneg %p167
      %p496 = pneg %p164
      %p497 = pneg %p188
      %p498 = pneg %p185
      %p499 = pneg %p209
      %p500 = pneg %p206
      %p501 = pneg %p230
      %p502 = pneg %p227
      %p503 = pneg %p251
      %p504 = pneg %p248
      %p505 = pneg %p272
      %p506 = pneg %p269
      %p507 = pneg %p293
      %p508 = pneg %p290
      %p509 = pneg %p314
      %p510 = pneg %p311
      %p511 = pneg %p335
      %p512 = pneg %p332
      %p513 = pneg %p356
      %p514 = pneg %p353
      %p515 = pneg %p382
      %p516 = pneg %p379
      %p517 = scmp.lt.s32.totalorder %s26, 1
      %s518 = scalar_select %p517, %s26, 1
      %s519 = smul.addr %s518, 8
      %s520 = scalar_lea.vmem %s15, %s519
      %p521 = scmp.lt.s32.totalorder %s26, 1
      %s522 = scalar_select %p521, %s26, 1
      %s523 = smul.addr %s522, 8
      %s524 = scalar_lea.vmem %s0, %s523
      %p525 = scmp.lt.s32.totalorder %s26, 1
      %s526 = scalar_select %p525, %s26, 1
      %s527 = smul.addr %s526, 8
      %s528 = scalar_lea.vmem %s1, %s527
      %p529 = scmp.lt.s32.totalorder %s26, 1
      %s530 = scalar_select %p529, %s26, 1
      %s531 = smul.addr %s530, 8
      %s532 = scalar_lea.vmem %s2, %s531
      %p533 = scmp.lt.s32.totalorder %s26, 1
      %s534 = scalar_select %p533, %s26, 1
      %s535 = smul.addr %s534, 8
      %s536 = scalar_lea.vmem %s3, %s535
      %p537 = scmp.lt.s32.totalorder %s26, 1
      %s538 = scalar_select %p537, %s26, 1
      %s539 = smul.addr %s538, 8
      %s540 = scalar_lea.vmem %s15, %s539
      %v541 = vld [vmem:[%s524] sm:$0xff]
      %v542 = vld [vmem:[%s528] sm:$0xff]
      %v543 = vld [vmem:[%s532] sm:$0xff]
      %v544 = vld [vmem:[%s536] sm:$0xff]
      %vm545 = vcmask 261120
      %v546 = vsel %vm545, %v541, 0.0
      %547 = vadd.xlane.f32.xlu0 %v546
      %v548 = vpop.xlane.xlu0 %547
      %v549 = vrcp.pop 32.0
      %v550 = vmul.f32 32.0, %v549
      %v551 = vsub.f32 1.0, %v550
      %v552 = vmul.f32 %v549, %v551
      %v553 = vadd.f32 %v549, %v552
      %vm554 = vweird.f32 %v549
      %v555 = vsel %vm554, %v549, %v553
      %v556 = vmul.f32 %v548, %v555
      %v557 = vsub.f32 %v541, %v556
      %v558 = vmul.f32 %v557, %v557
      %v559 = vsel %vm545, %v558, 0.0
      %560 = vadd.xlane.f32.xlu0 %v559
      %v561 = vpop.xlane.xlu0 %560
      %v562 = vmul.f32 %v561, %v555
      %v563 = vadd.f32 %v562, 1e-05
      %v564 = vrsqrt.pop %v563
      %v565 = vmul.f32 %v564, %v563
      %v566 = vmul.f32 %v565, %v564
      %v567 = vmul.f32 0.5, %v566
      %v568 = vsub.f32 1.5, %v567
      %v569 = vmul.f32 %v564, %v568
      %vm570 = vweird.f32 %v563
      %vm571 = vweird.f32 %v564
      %vm572 = vmor %vm570, %vm571
      %v573 = vsel %vm572, %v564, %v569
      %v574 = vmul.f32 %v557, %v573
      %v575 = vld [vmem:[%s13] sm:$0x1]
      %v577 = vperm.slane %v575, 0
      %v579 = vmul.f32 %v574, %v577
      %v580 = vld [vmem:[%s14] sm:$0x1]
      %v582 = vperm.slane %v580, 0
      %v584 = vadd.f32 %v579, %v582
      %v585 = vadd.f32 %v584, %v543
      %v586 = vld [vmem:[%s4] sm:$0xff]
      %v587 = vld [vmem:[%s4 + $0x8] sm:$0xff]
      %v588 = vld [vmem:[%s4 + $0x10] sm:$0xff]
      %v589 = vld [vmem:[%s4 + $0x18] sm:$0xff]
      %v590 = vld [vmem:[%s8] sm:$0x1]
      %v592 = vperm.slane %v590, 0
      %v595 = vsel %vm545, %v585, 0
      %597 = vmatpush.msra.mxu0 0.0
      %598 = vmatpush.msra.mxu0 0.0
      %599 = vmatpush.msra.mxu0 0.0
      %600 = vmatpush.msra.mxu0 0.0
      %601 = vmatpush.msra.mxu0 0.0
      %602 = vmatpush.msra.mxu0 0.0
      %603 = vmatpush.msra.mxu0 0.0
      %604 = vmatpush.msra.mxu0 0.0
      %605 = vmatpush.msra.mxu0 0.0
      %606 = vmatpush.msra.mxu0 0.0
      %607 = vmatpush.msra.mxu0 0.0
      %608 = vmatpush.msra.mxu0 0.0
      %609 = vmatpush.msra.mxu0 %v589
      %610 = vmatpush.msra.mxu0 %v588
      %611 = vmatpush.msra.mxu0 %v587
      %612 = vmatpush.msra.mxu0 %v586
      %613 = vmatmul.f32.gmra.mxu0 %v595
      %v614 = vpop.f32.mrf.mxu0
      %v615 = vadd.f32 %v592, %v614
      %616 = vdwg.mxu0
      %v617 = vmul.f32 %v615, 0.35355338
      %v618 = vadd.f32 %v542, %v544
      %v619 = vld [vmem:[%s5] sm:$0xff]
      %v620 = vld [vmem:[%s5 + $0x8] sm:$0xff]
      %v621 = vld [vmem:[%s5 + $0x10] sm:$0xff]
      %v622 = vld [vmem:[%s5 + $0x18] sm:$0xff]
      %s623 = scalar_lea.vmem %s8, 1
      %v624 = vld [vmem:[%s623] sm:$0x1]
      %v626 = vperm.slane %v624, 0
      %v629 = vsel %vm545, %v618, 0
      %631 = vmatpush.msra.mxu0 0.0
      %632 = vmatpush.msra.mxu0 0.0
      %633 = vmatpush.msra.mxu0 0.0
      %634 = vmatpush.msra.mxu0 0.0
      %635 = vmatpush.msra.mxu0 0.0
      %636 = vmatpush.msra.mxu0 0.0
      %637 = vmatpush.msra.mxu0 0.0
      %638 = vmatpush.msra.mxu0 0.0
      %639 = vmatpush.msra.mxu0 0.0
      %640 = vmatpush.msra.mxu0 0.0
      %641 = vmatpush.msra.mxu0 0.0
      %642 = vmatpush.msra.mxu0 0.0
      %643 = vmatpush.msra.mxu0 %v622
      %644 = vmatpush.msra.mxu0 %v621
      %645 = vmatpush.msra.mxu0 %v620
      %646 = vmatpush.msra.mxu0 %v619
      %647 = vmatmul.f32.gmra.mxu0 %v629
      %v648 = vpop.f32.mrf.mxu0
      %v649 = vadd.f32 %v626, %v648
      %650 = vdwg.mxu0
      %v651 = vld [vmem:[%s6] sm:$0xff]
      %v652 = vld [vmem:[%s6 + $0x8] sm:$0xff]
      %v653 = vld [vmem:[%s6 + $0x10] sm:$0xff]
      %v654 = vld [vmem:[%s6 + $0x18] sm:$0xff]
      %s655 = scalar_lea.vmem %s8, 2
      %v656 = vld [vmem:[%s655] sm:$0x1]
      %v658 = vperm.slane %v656, 0
      %v661 = vsel %vm545, %v542, 0
      %663 = vmatpush.msra.mxu0 0.0
      %664 = vmatpush.msra.mxu0 0.0
      %665 = vmatpush.msra.mxu0 0.0
      %666 = vmatpush.msra.mxu0 0.0
      %667 = vmatpush.msra.mxu0 0.0
      %668 = vmatpush.msra.mxu0 0.0
      %669 = vmatpush.msra.mxu0 0.0
      %670 = vmatpush.msra.mxu0 0.0
      %671 = vmatpush.msra.mxu0 0.0
      %672 = vmatpush.msra.mxu0 0.0
      %673 = vmatpush.msra.mxu0 0.0
      %674 = vmatpush.msra.mxu0 0.0
      %675 = vmatpush.msra.mxu0 %v654
      %676 = vmatpush.msra.mxu0 %v653
      %677 = vmatpush.msra.mxu0 %v652
      %678 = vmatpush.msra.mxu0 %v651
      %679 = vmatmul.f32.gmra.mxu0 %v661
      %v680 = vpop.f32.mrf.mxu0
      %v681 = vadd.f32 %v658, %v680
      %682 = vdwg.mxu0
      %vm683 = vcmask 64512
      %v685 = vsel %vm683, %v617, 0
      %v688 = vsel %vm683, %v649, 0
      %690 = vmatpush.xpose.msra.mxu0 0.0
      %691 = vmatpush.xpose.msra.mxu0 0.0
      %692 = vmatpush.xpose.msra.mxu0 0.0
      %693 = vmatpush.xpose.msra.mxu0 0.0
      %694 = vmatpush.xpose.msra.mxu0 0.0
      %695 = vmatpush.xpose.msra.mxu0 0.0
      %696 = vmatpush.xpose.msra.mxu0 0.0
      %697 = vmatpush.xpose.msra.mxu0 0.0
      %698 = vmatpush.xpose.msra.mxu0 0.0
      %699 = vmatpush.xpose.msra.mxu0 0.0
      %700 = vmatpush.xpose.msra.mxu0 0.0
      %701 = vmatpush.xpose.msra.mxu0 0.0
      %702 = vmatpush.xpose.msra.mxu0 0.0
      %703 = vmatpush.xpose.msra.mxu0 0.0
      %704 = vmatpush.xpose.msra.mxu0 0.0
      %705 = vmatpush.xpose.msra.mxu0 %v688
      %706 = vmatmul.f32.gmra.mxu0 %v685
      %v707 = vpop.f32.mrf.mxu0
      %v708 = vadd.f32 0.0, %v707
      %709 = vdwg.mxu0
      %v710 = vsel %vm683, %v708, -inf
      %711 = vmax.xlane.f32.xlu0 %v710
      %v712 = vpop.xlane.xlu0 %711
      %v713 = vsub.f32 %v708, %v712
      %v714 = vmul.f32 %v713, 1.442695
      %v715 = vpow.pop %v714
      %v716 = vsel %vm683, %v715, 0.0
      %717 = vadd.xlane.f32.xlu0 %v716
      %v718 = vpop.xlane.xlu0 %717
      %v719 = vrcp.pop %v718
      %v720 = vmul.f32 %v718, %v719
      %v721 = vsub.f32 1.0, %v720
      %v722 = vmul.f32 %v719, %v721
      %v723 = vadd.f32 %v719, %v722
      %vm724 = vweird.f32 %v718
      %vm725 = vweird.f32 %v719
      %vm726 = vmor %vm724, %vm725
      %v727 = vsel %vm726, %v719, %v723
      %v728 = vand.u32 2147483647, %v718
      %vm729 = vcmp.eq.f32.partialorder %v728, 8.507059e+37
      %v730 = vand.u32 %v718, 2147483648
      %v731 = vor.u32 1.1754944e-38, %v730
      %v732 = vsel %vm729, %v731, %v727
      %v733 = vmul.f32 %v715, %v732
      %v735 = vsel %vm683, %v733, 0
      %737 = vmatpush.msra.mxu0 0.0
      %738 = vmatpush.msra.mxu0 0.0
      %739 = vmatpush.msra.mxu0 0.0
      %740 = vmatpush.msra.mxu0 0.0
      %741 = vmatpush.msra.mxu0 0.0
      %742 = vmatpush.msra.mxu0 0.0
      %743 = vmatpush.msra.mxu0 0.0
      %744 = vmatpush.msra.mxu0 0.0
      %745 = vmatpush.msra.mxu0 0.0
      %746 = vmatpush.msra.mxu0 0.0
      %747 = vmatpush.msra.mxu0 0.0
      %748 = vmatpush.msra.mxu0 0.0
      %749 = vmatpush.msra.mxu0 0.0
      %750 = vmatpush.msra.mxu0 0.0
      %751 = vmatpush.msra.mxu0 0.0
      %752 = vmatpush.msra.mxu0 %v681
      %753 = vmatmul.f32.gmra.mxu0 %v735
      %v754 = vpop.f32.mrf.mxu0
      %v755 = vadd.f32 0.0, %v754
      %756 = vdwg.mxu0
      %757 = vrot.lane.b32.xlu0 %v617, 120
      %v758 = vpop.permute.xlu0 %757
      %759 = vrot.lane.b32.xlu0 %v649, 120
      %v760 = vpop.permute.xlu0 %759
      %v761 = vsel %vm683, %v758, 0
      %v763 = vsel %vm683, %v760, 0
      %765 = vmatpush.xpose.msra.mxu0 0.0
      %766 = vmatpush.xpose.msra.mxu0 0.0
      %767 = vmatpush.xpose.msra.mxu0 0.0
      %768 = vmatpush.xpose.msra.mxu0 0.0
      %769 = vmatpush.xpose.msra.mxu0 0.0
      %770 = vmatpush.xpose.msra.mxu0 0.0
      %771 = vmatpush.xpose.msra.mxu0 0.0
      %772 = vmatpush.xpose.msra.mxu0 0.0
      %773 = vmatpush.xpose.msra.mxu0 0.0
      %774 = vmatpush.xpose.msra.mxu0 0.0
      %775 = vmatpush.xpose.msra.mxu0 0.0
      %776 = vmatpush.xpose.msra.mxu0 0.0
      %777 = vmatpush.xpose.msra.mxu0 0.0
      %778 = vmatpush.xpose.msra.mxu0 0.0
      %779 = vmatpush.xpose.msra.mxu0 0.0
      %780 = vmatpush.xpose.msra.mxu0 %v763
      %781 = vmatmul.f32.gmra.mxu0 %v761
      %v782 = vpop.f32.mrf.mxu0
      %v783 = vadd.f32 0.0, %v782
      %784 = vdwg.mxu0
      %v785 = vsel %vm683, %v783, -inf
      %786 = vmax.xlane.f32.xlu0 %v785
      %v787 = vpop.xlane.xlu0 %786
      %v788 = vsub.f32 %v783, %v787
      %v789 = vmul.f32 %v788, 1.442695
      %v790 = vpow.pop %v789
      %v791 = vsel %vm683, %v790, 0.0
      %792 = vadd.xlane.f32.xlu0 %v791
      %v793 = vpop.xlane.xlu0 %792
      %v794 = vrcp.pop %v793
      %v795 = vmul.f32 %v793, %v794
      %v796 = vsub.f32 1.0, %v795
      %v797 = vmul.f32 %v794, %v796
      %v798 = vadd.f32 %v794, %v797
      %vm799 = vweird.f32 %v793
      %vm800 = vweird.f32 %v794
      %vm801 = vmor %vm799, %vm800
      %v802 = vsel %vm801, %v794, %v798
      %v803 = vand.u32 2147483647, %v793
      %vm804 = vcmp.eq.f32.partialorder %v803, 8.507059e+37
      %v805 = vand.u32 %v793, 2147483648
      %v806 = vor.u32 1.1754944e-38, %v805
      %v807 = vsel %vm804, %v806, %v802
      %v808 = vmul.f32 %v790, %v807
      %810 = vrot.lane.b32.xlu0 %v681, 120
      %v811 = vpop.permute.xlu0 %810
      %v814 = vsel %vm683, %v808, 0
      %816 = vmatpush.msra.mxu0 0.0
      %817 = vmatpush.msra.mxu0 0.0
      %818 = vmatpush.msra.mxu0 0.0
      %819 = vmatpush.msra.mxu0 0.0
      %820 = vmatpush.msra.mxu0 0.0
      %821 = vmatpush.msra.mxu0 0.0
      %822 = vmatpush.msra.mxu0 0.0
      %823 = vmatpush.msra.mxu0 0.0
      %824 = vmatpush.msra.mxu0 0.0
      %825 = vmatpush.msra.mxu0 0.0
      %826 = vmatpush.msra.mxu0 0.0
      %827 = vmatpush.msra.mxu0 0.0
      %828 = vmatpush.msra.mxu0 0.0
      %829 = vmatpush.msra.mxu0 0.0
      %830 = vmatpush.msra.mxu0 0.0
      %831 = vmatpush.msra.mxu0 %v811
      %832 = vmatmul.f32.gmra.mxu0 %v814
      %v833 = vpop.f32.mrf.mxu0
      %v834 = vadd.f32 0.0, %v833
      %835 = vdwg.mxu0
      %836 = vrot.lane.b32.xlu0 %v617, 112
      %v837 = vpop.permute.xlu0 %836
      %838 = vrot.lane.b32.xlu0 %v649, 112
      %v839 = vpop.permute.xlu0 %838
      %v840 = vsel %vm683, %v837, 0
      %v842 = vsel %vm683, %v839, 0
      %844 = vmatpush.xpose.msra.mxu0 0.0
      %845 = vmatpush.xpose.msra.mxu0 0.0
      %846 = vmatpush.xpose.msra.mxu0 0.0
      %847 = vmatpush.xpose.msra.mxu0 0.0
      %848 = vmatpush.xpose.msra.mxu0 0.0
      %849 = vmatpush.xpose.msra.mxu0 0.0
      %850 = vmatpush.xpose.msra.mxu0 0.0
      %851 = vmatpush.xpose.msra.mxu0 0.0
      %852 = vmatpush.xpose.msra.mxu0 0.0
      %853 = vmatpush.xpose.msra.mxu0 0.0
      %854 = vmatpush.xpose.msra.mxu0 0.0
      %855 = vmatpush.xpose.msra.mxu0 0.0
      %856 = vmatpush.xpose.msra.mxu0 0.0
      %857 = vmatpush.xpose.msra.mxu0 0.0
      %858 = vmatpush.xpose.msra.mxu0 0.0
      %859 = vmatpush.xpose.msra.mxu0 %v842
      %860 = vmatmul.f32.gmra.mxu0 %v840
      %v861 = vpop.f32.mrf.mxu0
      %v862 = vadd.f32 0.0, %v861
      %863 = vdwg.mxu0
      %v864 = vsel %vm683, %v862, -inf
      %865 = vmax.xlane.f32.xlu0 %v864
      %v866 = vpop.xlane.xlu0 %865
      %v867 = vsub.f32 %v862, %v866
      %v868 = vmul.f32 %v867, 1.442695
      %v869 = vpow.pop %v868
      %v870 = vsel %vm683, %v869, 0.0
      %871 = vadd.xlane.f32.xlu0 %v870
      %v872 = vpop.xlane.xlu0 %871
      %v873 = vrcp.pop %v872
      %v874 = vmul.f32 %v872, %v873
      %v875 = vsub.f32 1.0, %v874
      %v876 = vmul.f32 %v873, %v875
      %v877 = vadd.f32 %v873, %v876
      %vm878 = vweird.f32 %v872
      %vm879 = vweird.f32 %v873
      %vm880 = vmor %vm878, %vm879
      %v881 = vsel %vm880, %v873, %v877
      %v882 = vand.u32 2147483647, %v872
      %vm883 = vcmp.eq.f32.partialorder %v882, 8.507059e+37
      %v884 = vand.u32 %v872, 2147483648
      %v885 = vor.u32 1.1754944e-38, %v884
      %v886 = vsel %vm883, %v885, %v881
      %v887 = vmul.f32 %v869, %v886
      %888 = vrot.lane.b32.xlu0 %v681, 112
      %v889 = vpop.permute.xlu0 %888
      %v892 = vsel %vm683, %v887, 0
      %894 = vmatpush.msra.mxu0 0.0
      %895 = vmatpush.msra.mxu0 0.0
      %896 = vmatpush.msra.mxu0 0.0
      %897 = vmatpush.msra.mxu0 0.0
      %898 = vmatpush.msra.mxu0 0.0
      %899 = vmatpush.msra.mxu0 0.0
      %900 = vmatpush.msra.mxu0 0.0
      %901 = vmatpush.msra.mxu0 0.0
      %902 = vmatpush.msra.mxu0 0.0
      %903 = vmatpush.msra.mxu0 0.0
      %904 = vmatpush.msra.mxu0 0.0
      %905 = vmatpush.msra.mxu0 0.0
      %906 = vmatpush.msra.mxu0 0.0
      %907 = vmatpush.msra.mxu0 0.0
      %908 = vmatpush.msra.mxu0 0.0
      %909 = vmatpush.msra.mxu0 %v889
      %910 = vmatmul.f32.gmra.mxu0 %v892
      %v911 = vpop.f32.mrf.mxu0
      %v912 = vadd.f32 0.0, %v911
      %913 = vdwg.mxu0
      %914 = vrot.lane.b32.xlu0 %v617, 104
      %v915 = vpop.permute.xlu0 %914
      %916 = vrot.lane.b32.xlu0 %v649, 104
      %v917 = vpop.permute.xlu0 %916
      %v918 = vsel %vm683, %v915, 0
      %v920 = vsel %vm683, %v917, 0
      %922 = vmatpush.xpose.msra.mxu0 0.0
      %923 = vmatpush.xpose.msra.mxu0 0.0
      %924 = vmatpush.xpose.msra.mxu0 0.0
      %925 = vmatpush.xpose.msra.mxu0 0.0
      %926 = vmatpush.xpose.msra.mxu0 0.0
      %927 = vmatpush.xpose.msra.mxu0 0.0
      %928 = vmatpush.xpose.msra.mxu0 0.0
      %929 = vmatpush.xpose.msra.mxu0 0.0
      %930 = vmatpush.xpose.msra.mxu0 0.0
      %931 = vmatpush.xpose.msra.mxu0 0.0
      %932 = vmatpush.xpose.msra.mxu0 0.0
      %933 = vmatpush.xpose.msra.mxu0 0.0
      %934 = vmatpush.xpose.msra.mxu0 0.0
      %935 = vmatpush.xpose.msra.mxu0 0.0
      %936 = vmatpush.xpose.msra.mxu0 0.0
      %937 = vmatpush.xpose.msra.mxu0 %v920
      %938 = vmatmul.f32.gmra.mxu0 %v918
      %v939 = vpop.f32.mrf.mxu0
      %v940 = vadd.f32 0.0, %v939
      %941 = vdwg.mxu0
      %v942 = vsel %vm683, %v940, -inf
      %943 = vmax.xlane.f32.xlu0 %v942
      %v944 = vpop.xlane.xlu0 %943
      %v945 = vsub.f32 %v940, %v944
      %v946 = vmul.f32 %v945, 1.442695
      %v947 = vpow.pop %v946
      %v948 = vsel %vm683, %v947, 0.0
      %949 = vadd.xlane.f32.xlu0 %v948
      %v950 = vpop.xlane.xlu0 %949
      %v951 = vrcp.pop %v950
      %v952 = vmul.f32 %v950, %v951
      %v953 = vsub.f32 1.0, %v952
      %v954 = vmul.f32 %v951, %v953
      %v955 = vadd.f32 %v951, %v954
      %vm956 = vweird.f32 %v950
      %vm957 = vweird.f32 %v951
      %vm958 = vmor %vm956, %vm957
      %v959 = vsel %vm958, %v951, %v955
      %v960 = vand.u32 2147483647, %v950
      %vm961 = vcmp.eq.f32.partialorder %v960, 8.507059e+37
      %v962 = vand.u32 %v950, 2147483648
      %v963 = vor.u32 1.1754944e-38, %v962
      %v964 = vsel %vm961, %v963, %v959
      %v965 = vmul.f32 %v947, %v964
      %966 = vrot.lane.b32.xlu0 %v681, 104
      %v967 = vpop.permute.xlu0 %966
      %v970 = vsel %vm683, %v965, 0
      %972 = vmatpush.msra.mxu0 0.0
      %973 = vmatpush.msra.mxu0 0.0
      %974 = vmatpush.msra.mxu0 0.0
      %975 = vmatpush.msra.mxu0 0.0
      %976 = vmatpush.msra.mxu0 0.0
      %977 = vmatpush.msra.mxu0 0.0
      %978 = vmatpush.msra.mxu0 0.0
      %979 = vmatpush.msra.mxu0 0.0
      %980 = vmatpush.msra.mxu0 0.0
      %981 = vmatpush.msra.mxu0 0.0
      %982 = vmatpush.msra.mxu0 0.0
      %983 = vmatpush.msra.mxu0 0.0
      %984 = vmatpush.msra.mxu0 0.0
      %985 = vmatpush.msra.mxu0 0.0
      %986 = vmatpush.msra.mxu0 0.0
      %987 = vmatpush.msra.mxu0 %v967
      %988 = vmatmul.f32.gmra.mxu0 %v970
      %v989 = vpop.f32.mrf.mxu0
      %v990 = vadd.f32 0.0, %v989
      %991 = vdwg.mxu0
      %993 = vrot.lane.b32.xlu0 %v834, 8
      %v994 = vpop.permute.xlu0 %993
      %997 = vrot.lane.b32.xlu0 %v912, 16
      %v998 = vpop.permute.xlu0 %997
      %1001 = vrot.lane.b32.xlu0 %v990, 24
      %v1002 = vpop.permute.xlu0 %1001
      %v1004 = vsel %vm683, %v755, %v994
      %vm1005 = vcmask 130048
      %v1006 = vsel %vm1005, %v1004, %v998
      %vm1007 = vcmask 195584
      %v1008 = vsel %vm1007, %v1006, %v1002
      %v1009 = vld [vmem:[%s7] sm:$0xff]
      %v1010 = vld [vmem:[%s7 + $0x8] sm:$0xff]
      %v1011 = vld [vmem:[%s7 + $0x10] sm:$0xff]
      %v1012 = vld [vmem:[%s7 + $0x18] sm:$0xff]
      %s1013 = scalar_lea.vmem %s8, 3
      %v1014 = vld [vmem:[%s1013] sm:$0x1]
      %v1016 = vperm.slane %v1014, 0
      %v1019 = vsel %vm545, %v1008, 0
      %1021 = vmatpush.msra.mxu0 0.0
      %1022 = vmatpush.msra.mxu0 0.0
      %1023 = vmatpush.msra.mxu0 0.0
      %1024 = vmatpush.msra.mxu0 0.0
      %1025 = vmatpush.msra.mxu0 0.0
      %1026 = vmatpush.msra.mxu0 0.0
      %1027 = vmatpush.msra.mxu0 0.0
      %1028 = vmatpush.msra.mxu0 0.0
      %1029 = vmatpush.msra.mxu0 0.0
      %1030 = vmatpush.msra.mxu0 0.0
      %1031 = vmatpush.msra.mxu0 0.0
      %1032 = vmatpush.msra.mxu0 0.0
      %1033 = vmatpush.msra.mxu0 %v1012
      %1034 = vmatpush.msra.mxu0 %v1011
      %1035 = vmatpush.msra.mxu0 %v1010
      %1036 = vmatpush.msra.mxu0 %v1009
      %1037 = vmatmul.f32.gmra.mxu0 %v1019
      %v1038 = vpop.f32.mrf.mxu0
      %v1039 = vadd.f32 %v1016, %v1038
      %1040 = vdwg.mxu0
      %v1041 = vadd.f32 %v584, %v1039
      %v1042 = vsel %vm545, %v1041, 0.0
      %1043 = vadd.xlane.f32.xlu0 %v1042
      %v1044 = vpop.xlane.xlu0 %1043
      %v1045 = vmul.f32 %v1044, %v555
      %v1046 = vsub.f32 %v1041, %v1045
      %v1047 = vmul.f32 %v1046, %v1046
      %v1048 = vsel %vm545, %v1047, 0.0
      %1049 = vadd.xlane.f32.xlu0 %v1048
      %v1050 = vpop.xlane.xlu0 %1049
      %v1051 = vmul.f32 %v1050, %v555
      %v1052 = vadd.f32 %v1051, 1e-05
      %v1053 = vrsqrt.pop %v1052
      %v1054 = vmul.f32 %v1053, %v1052
      %v1055 = vmul.f32 %v1054, %v1053
      %v1056 = vmul.f32 0.5, %v1055
      %v1057 = vsub.f32 1.5, %v1056
      %v1058 = vmul.f32 %v1053, %v1057
      %vm1059 = vweird.f32 %v1052
      %vm1060 = vweird.f32 %v1053
      %vm1061 = vmor %vm1059, %vm1060
      %v1062 = vsel %vm1061, %v1053, %v1058
      %v1063 = vmul.f32 %v1046, %v1062
      %s1064 = scalar_lea.vmem %s13, 1
      %v1065 = vld [vmem:[%s1064] sm:$0x1]
      %v1067 = vperm.slane %v1065, 0
      %v1069 = vmul.f32 %v1063, %v1067
      %s1070 = scalar_lea.vmem %s14, 1
      %v1071 = vld [vmem:[%s1070] sm:$0x1]
      %v1073 = vperm.slane %v1071, 0
      %v1075 = vadd.f32 %v1069, %v1073
      %v1076 = vld [vmem:[%s9] sm:$0xff]
      %v1077 = vld [vmem:[%s9 + $0x8] sm:$0xff]
      %v1078 = vld [vmem:[%s9 + $0x10] sm:$0xff]
      %v1079 = vld [vmem:[%s9 + $0x18] sm:$0xff]
      %v1080 = vld [vmem:[%s10] sm:$0x1]
      %v1082 = vperm.slane %v1080, 0
      %v1085 = vsel %vm545, %v1075, 0
      %1087 = vmatpush.msra.mxu0 0.0
      %1088 = vmatpush.msra.mxu0 0.0
      %1089 = vmatpush.msra.mxu0 0.0
      %1090 = vmatpush.msra.mxu0 0.0
      %1091 = vmatpush.msra.mxu0 0.0
      %1092 = vmatpush.msra.mxu0 0.0
      %1093 = vmatpush.msra.mxu0 0.0
      %1094 = vmatpush.msra.mxu0 0.0
      %1095 = vmatpush.msra.mxu0 0.0
      %1096 = vmatpush.msra.mxu0 0.0
      %1097 = vmatpush.msra.mxu0 0.0
      %1098 = vmatpush.msra.mxu0 0.0
      %1099 = vmatpush.msra.mxu0 %v1079
      %1100 = vmatpush.msra.mxu0 %v1078
      %1101 = vmatpush.msra.mxu0 %v1077
      %1102 = vmatpush.msra.mxu0 %v1076
      %1103 = vmatmul.f32.gmra.mxu0 %v1085
      %v1104 = vpop.f32.mrf.mxu0
      %v1105 = vadd.f32 %v1082, %v1104
      %1106 = vdwg.mxu0
      %v1107 = vmax.f32 %v1105, 0.0
      %v1108 = vld [vmem:[%s11] sm:$0xff]
      %v1109 = vld [vmem:[%s11 + $0x8] sm:$0xff]
      %v1110 = vld [vmem:[%s11 + $0x10] sm:$0xff]
      %v1111 = vld [vmem:[%s11 + $0x18] sm:$0xff]
      %v1112 = vld [vmem:[%s11 + $0x20] sm:$0xff]
      %v1113 = vld [vmem:[%s11 + $0x28] sm:$0xff]
      %v1114 = vld [vmem:[%s11 + $0x30] sm:$0xff]
      %v1115 = vld [vmem:[%s11 + $0x38] sm:$0xff]
      %v1116 = vld [vmem:[%s12] sm:$0x1]
      %v1118 = vperm.slane %v1116, 0
      %vm1120 = vcmask 523264
      %v1122 = vsel %vm1120, %v1107, 0
      %1124 = vmatpush.msra.mxu0 0.0
      %1125 = vmatpush.msra.mxu0 0.0
      %1126 = vmatpush.msra.mxu0 0.0
      %1127 = vmatpush.msra.mxu0 0.0
      %1128 = vmatpush.msra.mxu0 0.0
      %1129 = vmatpush.msra.mxu0 0.0
      %1130 = vmatpush.msra.mxu0 0.0
      %1131 = vmatpush.msra.mxu0 0.0
      %1132 = vmatpush.msra.mxu0 %v1115
      %1133 = vmatpush.msra.mxu0 %v1114
      %1134 = vmatpush.msra.mxu0 %v1113
      %1135 = vmatpush.msra.mxu0 %v1112
      %1136 = vmatpush.msra.mxu0 %v1111
      %1137 = vmatpush.msra.mxu0 %v1110
      %1138 = vmatpush.msra.mxu0 %v1109
      %1139 = vmatpush.msra.mxu0 %v1108
      %1140 = vmatmul.f32.gmra.mxu0 %v1122
      %v1141 = vpop.f32.mrf.mxu0
      %v1142 = vadd.f32 %v1118, %v1141
      %1143 = vdwg.mxu0
      %v1144 = vadd.f32 %v1075, %v1142
      %v1145 = vsel %vm545, %v1144, 0.0
      %1146 = vadd.xlane.f32.xlu0 %v1145
      %v1147 = vpop.xlane.xlu0 %1146
      %v1148 = vmul.f32 %v1147, %v555
      %v1149 = vsub.f32 %v1144, %v1148
      %v1150 = vmul.f32 %v1149, %v1149
      %v1151 = vsel %vm545, %v1150, 0.0
      %1152 = vadd.xlane.f32.xlu0 %v1151
      %v1153 = vpop.xlane.xlu0 %1152
      %v1154 = vmul.f32 %v1153, %v555
      %v1155 = vadd.f32 %v1154, 1e-05
      %v1156 = vrsqrt.pop %v1155
      %v1157 = vmul.f32 %v1156, %v1155
      %v1158 = vmul.f32 %v1157, %v1156
      %v1159 = vmul.f32 0.5, %v1158
      %v1160 = vsub.f32 1.5, %v1159
      %v1161 = vmul.f32 %v1156, %v1160
      %vm1162 = vweird.f32 %v1155
      %vm1163 = vweird.f32 %v1156
      %vm1164 = vmor %vm1162, %vm1163
      %v1165 = vsel %vm1164, %v1156, %v1161
      %v1166 = vmul.f32 %v1149, %v1165
      %s1167 = scalar_lea.vmem %s13, 2
      %v1168 = vld [vmem:[%s1167] sm:$0x1]
      %v1170 = vperm.slane %v1168, 0
      %v1172 = vmul.f32 %v1166, %v1170
      %s1173 = scalar_lea.vmem %s14, 2
      %v1174 = vld [vmem:[%s1173] sm:$0x1]
      %v1176 = vperm.slane %v1174, 0
      %v1178 = vadd.f32 %v1172, %v1176
      %1179 = vst.msk [vmem:[%s540] sm:$0xff] %vm545, %v1178
      %p1180 = scmp.lt.s32.totalorder %s26, 1
      %s1181 = scalar_select %p1180, %s26, 1
      %s1182 = smul.addr %s1181, 8
      %s1183 = scalar_lea.vmem %s15, %s1182
      // Predicated region
      $region81: #{decoder_forward.2} parent=79 // pred_check
        %p1184 = pneg %p379
      $region82: #{decoder_forward.2} parent=79 // pred_check_branch
        %1186 = sbr.rel (%p1184) target = $region84
      $region83: #{decoder_forward.2} parent=79 // pred_region
        _
      $region84: #{decoder_forward.2} parent=79 // pred_fallthru
        _
    $region80: #{decoder_forward.2} parent=5 // pred_fallthru
      _
    %p1187 = scmp.le.s32.totalorder 2, %s21
    // Predicated region
    $region85: #{decoder_forward.2} parent=5 // pred_check
      %p1188 = pneg %p1187
    $region86: #{decoder_forward.2} parent=5 // pred_check_branch
      %1190 = sbr.rel (%p1188) target = $region88
    $region87: #{decoder_forward.2} parent=5 // pred_region
      %s1191 = ssub.s32 %s21, 2
      // Predicated region
      $region89: #{decoder_forward.2} parent=87 // pred_check
        %p1192 = pneg %p385
      $region90: #{decoder_forward.2} parent=87 // pred_check_branch
        %1194 = sbr.rel (%p1192) target = $region92
      $region91: #{decoder_forward.2} parent=87 // pred_region
        %p1195 = scmp.lt.s32.totalorder %s27, 1
        %s1196 = scalar_select %p1195, %s27, 1
        %s1197 = smul.addr %s1196, 8
        %s1198 = scalar_lea.vmem %s15, %s1197
      $region92: #{decoder_forward.2} parent=87 // pred_fallthru
        _
    $region88: #{decoder_forward.2} parent=5 // pred_fallthru
      _
  $region6: #{decoder_forward.2} parent=0 // loop_footer
    %s25 = sadd.s32 1, %s21
  $region7: #{decoder_forward.2} parent=0 // loop_footer_branch
    %20 = sbr.rel target = $region3
  $region8: #{decoder_forward.2} parent=0 // loop_exit
    _

</llo_original>
